<compile_context>
chip_gen: v6e
topology: v6e:2x2x1
jax: 0.10.0
libtpu: 0.0.40
codegen_flags: <defaults>
</compile_context>

<pallas_src>
import functools

import jax
import jax.numpy as jnp
from jax.experimental import pallas as pl
from jax.experimental.pallas import tpu as pltpu


# ----------------------------------------------------------------------------
# Fused forward kernel: conv1 -> conv2 -> FC -> LSTM (unrolled) -> logits
# ----------------------------------------------------------------------------
def _fused_kernel(seq_ref,                                   # SMEM [B, T] int32
                  xrow_ref,                                  # [(HG+2)*B, (WG+2)*CI]
                  band1_ref, b1_ref,                         # [3, (WG+2)*CI, WG*CO], [1, WG*CO]
                  band2_ref, b2_ref,                         # [3, (WG+2)*CO, WG*CO], [1, WG*CO]
                  fcw_ref, fcb_ref,                          # [HG*WG*CO, IO], [1, IO]
                  emb_ref,                                   # [V, E_tok]
                  wtok_ref, wio_ref, whh_ref, blstm_ref,     # gate-padded LSTM weights
                  woutblk_ref, boutrow_ref,                  # [T*HID, T*V], [1, T*V]
                  h0_ref, c0_ref,                            # [B, HID]
                  logits_ref, state_ref,                     # [B, T*V], [B, 2*HID]
                  *, B, T, HG, WG, CO, HID, GP):
    f32 = jnp.float32
    LOUT = WG * CO                                           # lane width of conv outputs

    # --- banded conv: 3 matmuls (one per dy row-shift), lane-dense layout ----
    def conv_band(x2d, band_ref, brow_ref):
        acc = jnp.zeros((HG * B, LOUT), f32)
        for dy in range(3):
            xs = x2d[dy * B:(dy + HG) * B, :]                # rows (i+dy, b)
            acc = acc + jnp.dot(xs, band_ref[dy],
                                preferred_element_type=f32)
        return jnp.maximum(acc + brow_ref[...], 0.0)         # [HG*B, LOUT]

    # ---------------- encoder (all in VMEM) ----------------
    y1 = conv_band(xrow_ref[...], band1_ref, b1_ref)         # [HG*B, WG*CO]

    # re-pad conv1 output with a 1-pixel zero border (lane + row concat)
    zl = jnp.zeros((HG * B, CO), f32)
    zr = jnp.zeros((B, (WG + 2) * CO), f32)
    x2 = jnp.concatenate([zl, y1, zl], axis=1)               # [HG*B, (WG+2)*CO]
    x2 = jnp.concatenate([zr, x2, zr], axis=0)               # [(HG+2)*B, (WG+2)*CO]

    y2 = conv_band(x2, band2_ref, b2_ref)                    # [HG*B, WG*CO]

    # fully connected I/O embedding: accumulate per spatial row (no reshapes)
    IO = fcw_ref.shape[1]
    io = jnp.zeros((B, IO), f32)
    for i in range(HG):
        io = io + jnp.dot(y2[i * B:(i + 1) * B, :],
                          fcw_ref[pl.ds(i * LOUT, LOUT), :],
                          preferred_element_type=f32)
    io_emb = jnp.maximum(io + fcb_ref[...], 0.0)             # [B, IO]

    # ---------------- decoder ----------------
    # in-kernel token-embedding gather from SMEM-prefetched seq ids
    rows = []
    for t in range(T):
        for b in range(B):
            rows.append(emb_ref[pl.ds(seq_ref[b, t], 1), :])  # [1, E_tok]
    tok = jnp.concatenate(rows, axis=0)                       # [T*B, E_tok]

    # hoisted input projection (all T steps at once) + time-invariant io term
    gx = jnp.dot(tok, wtok_ref[...], preferred_element_type=f32)          # [T*B, 4*GP]
    io_gate = (jnp.dot(io_emb, wio_ref[...], preferred_element_type=f32)
               + blstm_ref[...])                                          # [B, 4*GP]

    # LSTM recurrence, fully unrolled; gate g lives in lanes [g*GP, g*GP+HID)
    h = h0_ref[...].astype(f32)
    c = c0_ref[...].astype(f32)
    h_cols = []
    for t in range(T):
        gates = (gx[t * B:(t + 1) * B, :] + io_gate
                 + jnp.dot(h, whh_ref[...], preferred_element_type=f32))  # [B, 4*GP]
        i_g = jax.nn.sigmoid(gates[:, 0 * GP:0 * GP + HID])
        f_g = jax.nn.sigmoid(gates[:, 1 * GP:1 * GP + HID])
        g_g = jnp.tanh(gates[:, 2 * GP:2 * GP + HID])
        o_g = jax.nn.sigmoid(gates[:, 3 * GP:3 * GP + HID])
        c = f_g * c + i_g * g_g
        h = o_g * jnp.tanh(c)
        h_cols.append(h)                                      # projection deferred

    # single block-diagonal output projection + single lane-dense store:
    # [B, T*HID] @ [T*HID, T*V] -> [B, T*V]  (= [2, 128] at default sizes)
    hs = jnp.concatenate(h_cols, axis=1)                      # [B, T*HID]
    logits_ref[...] = (jnp.dot(hs, woutblk_ref[...],
                               preferred_element_type=f32) + boutrow_ref[...])
    state_ref[...] = jnp.concatenate([h, c], axis=1)          # [B, 2*HID] = (h_T | c_T)


# ----------------------------------------------------------------------------
# Wrapper-side (trace-time) weight re-layout helpers
# ----------------------------------------------------------------------------
def _make_bands(w_hwio, wp, wout):
    """Conv [3,3,Cin,Cout] -> banded row-matmul weights [3, wp*Cin, wout*Cout]."""
    w_hwio = w_hwio.astype(jnp.float32)
    cin, cout = w_hwio.shape[2], w_hwio.shape[3]
    dx = jnp.arange(3)[:, None, None]
    jin = jnp.arange(wp)[None, :, None]
    jout = jnp.arange(wout)[None, None, :]
    ind = (jin == jout + dx).astype(jnp.float32)              # [3, wp, wout]
    bands = jnp.einsum('xJj,yxco->yJcjo', ind, w_hwio)        # [3, wp, cin, wout, cout]
    return bands.reshape(3, wp * cin, wout * cout)


def _gate_pad(w2d, hid, gp):
    """[K, 4*hid] -> [K, 4*gp]; gate g occupies columns [g*gp, g*gp+hid)."""
    blocks = []
    for g in range(4):
        blk = w2d[:, g * hid:(g + 1) * hid]
        blocks.append(jnp.pad(blk, ((0, 0), (0, gp - hid))))
    return jnp.concatenate(blocks, axis=1).astype(jnp.float32)


def _full_spec(a):
    return pl.BlockSpec(a.shape, lambda *_, n=a.ndim: (0,) * n)


# ----------------------------------------------------------------------------
# Synthetic Synthesizer parameters (deterministic) and forward pass.
# ----------------------------------------------------------------------------
def init_params(key, *, cin=4, conv_ch=8, grid_hw=16, io_dim=32,
                vocab=16, tok_dim=16, lstm_h=32):
    ks = jax.random.split(key, 10)
    s = 0.1
    return {
        "conv1_w": s * jax.random.normal(ks[0], (3, 3, 2 * cin, conv_ch), jnp.float32),
        "conv1_b": jnp.zeros((conv_ch,), jnp.float32),
        "conv2_w": s * jax.random.normal(ks[1], (3, 3, conv_ch, conv_ch), jnp.float32),
        "conv2_b": jnp.zeros((conv_ch,), jnp.float32),
        "fc_w": s * jax.random.normal(ks[2], (conv_ch * grid_hw * grid_hw, io_dim), jnp.float32),
        "fc_b": jnp.zeros((io_dim,), jnp.float32),
        "tok_emb": s * jax.random.normal(ks[3], (vocab, tok_dim), jnp.float32),
        "w_ih": s * jax.random.normal(ks[4], (tok_dim + io_dim, 4 * lstm_h), jnp.float32),
        "w_hh": s * jax.random.normal(ks[5], (lstm_h, 4 * lstm_h), jnp.float32),
        "lstm_b": jnp.zeros((4 * lstm_h,), jnp.float32),
        "out_w": s * jax.random.normal(ks[6], (lstm_h, vocab), jnp.float32),
        "out_b": jnp.zeros((vocab,), jnp.float32),
    }


def finetune_synth_forward(params, inp, out, seq, lstm_states=None,
                           grammar_state=None):
    """FineTuneSynth.forward == Synthesizer.forward.

    inp, out : float32 [B, C, H, W]  (NCHW, as in PyTorch)
    seq      : int32   [B, T] token ids
    Returns (logits [B, T, V], (h_T [B, HID], c_T [B, HID])).
    """
    B, C, HG, WG = inp.shape
    T = seq.shape[1]
    CI = 2 * C
    CO = params["conv1_w"].shape[3]
    HID = params["w_hh"].shape[0]
    V = params["out_w"].shape[1]
    E_tok = params["tok_emb"].shape[1]
    GP = 128
    assert HID <= GP

    # ---- input prep: NCHW -> row-flattened padded [(HG+2)*B, (WG+2)*CI] ----
    x = jnp.concatenate([inp, out], axis=1).astype(jnp.float32)   # [B, CI, HG, WG]
    x = jnp.transpose(x, (2, 0, 3, 1))                            # [HG, B, WG, CI]
    x = jnp.pad(x, ((1, 1), (0, 0), (1, 1), (0, 0)))              # [HG+2, B, WG+2, CI]
    xrow = x.reshape((HG + 2) * B, (WG + 2) * CI)

    # ---- conv weights as banded row-matmul weights (built once per trace) ----
    band1 = _make_bands(params["conv1_w"], WG + 2, WG)
    band2 = _make_bands(params["conv2_w"], WG + 2, WG)
    b1row = jnp.tile(params["conv1_b"].astype(jnp.float32), WG)[None, :]
    b2row = jnp.tile(params["conv2_b"].astype(jnp.float32), WG)[None, :]
    fcb = params["fc_b"].astype(jnp.float32)[None, :]

    # ---- LSTM weights: split token/io parts, pad each gate to its own 128 lanes
    w_ih = params["w_ih"].astype(jnp.float32)
    w_tok = _gate_pad(w_ih[:E_tok], HID, GP)
    w_io = _gate_pad(w_ih[E_tok:], HID, GP)
    w_hh = _gate_pad(params["w_hh"].astype(jnp.float32), HID, GP)
    b_lstm = _gate_pad(params["lstm_b"].astype(jnp.float32)[None, :], HID, GP)

    # ---- output projection as a single block-diagonal matmul over all T steps
    # [T*HID, T*V] block-diag(out_w, ..., out_w); bias tiled to [1, T*V]
    w_out_blk = jnp.kron(jnp.eye(T, dtype=jnp.float32),
                         params["out_w"].astype(jnp.float32))     # [T*HID, T*V]
    b_out_row = jnp.tile(params["out_b"].astype(jnp.float32), T)[None, :]  # [1, T*V]

    if lstm_states is None:
        h0 = jnp.zeros((B, HID), jnp.float32)
        c0 = jnp.zeros((B, HID), jnp.float32)
    else:
        h0, c0 = lstm_states
        h0 = h0.astype(jnp.float32)
        c0 = c0.astype(jnp.float32)

    inputs = (xrow, band1, b1row, band2, b2row,
              params["fc_w"].astype(jnp.float32), fcb,
              params["tok_emb"].astype(jnp.float32),
              w_tok, w_io, w_hh, b_lstm,
              w_out_blk, b_out_row, h0, c0)

    kernel = functools.partial(_fused_kernel, B=B, T=T, HG=HG, WG=WG,
                               CO=CO, HID=HID, GP=GP)

    grid_spec = pltpu.PrefetchScalarGridSpec(
        num_scalar_prefetch=1,                    # seq -> SMEM, gathered in-kernel
        grid=(1,),                                # single fused program
        in_specs=[_full_spec(a) for a in inputs],
        out_specs=[pl.BlockSpec((B, T * V), lambda *_: (0, 0)),
                   pl.BlockSpec((B, 2 * HID), lambda *_: (0, 0))],
    )

    logits_flat, state = pl.pallas_call(
        kernel,
        out_shape=(jax.ShapeDtypeStruct((B, T * V), jnp.float32),
                   jax.ShapeDtypeStruct((B, 2 * HID), jnp.float32)),
        grid_spec=grid_spec,
        compiler_params=pltpu.CompilerParams(
            dimension_semantics=("arbitrary",)),
    )(seq.astype(jnp.int32), *inputs)

    logits = logits_flat.reshape(B, T, V)
    h_T = state[:, :HID]
    c_T = state[:, HID:]
    # TODO(synk): grammar_state / check_syntax_mode logits masking not defined
    #             in the provided source; not applied.
    return logits, (h_T, c_T)


if __name__ == "__main__":
    key = jax.random.PRNGKey(0)
    k_inp, k_out, k_seq, k_par = jax.random.split(key, 4)

    B, C, HW, T, V = 2, 4, 16, 8, 16
    inp = jax.random.normal(k_inp, (B, C, HW, HW), jnp.float32)   # NCHW
    out = jax.random.normal(k_out, (B, C, HW, HW), jnp.float32)   # NCHW
    seq = jax.random.randint(k_seq, (B, T), 0, V, jnp.int32)

    params = init_params(k_par, cin=C, grid_hw=HW, vocab=V)

    fwd = jax.jit(finetune_synth_forward)
    logits, (h_T, c_T) = fwd(params, inp, out, seq)
    jax.block_until_ready((logits, h_T, c_T))

    assert logits.shape == (B, T, V)
    assert h_T.shape == (B, 32) and c_T.shape == (B, 32)
    assert bool(jnp.all(jnp.isfinite(logits)))
    print("KERNEL_OK")
</pallas_src>

<mosaic_0001>
module attributes {stable_mosaic.version = 11 : i64} {
  func.func @_fused_kernel(%arg0: i32, %arg1: memref<2x8xi32, #tpu.memory_space<smem>>, %arg2: memref<36x144xf32, #tpu.memory_space<vmem>>, %arg3: memref<3x144x128xf32, #tpu.memory_space<vmem>>, %arg4: memref<1x128xf32, #tpu.memory_space<vmem>>, %arg5: memref<3x144x128xf32, #tpu.memory_space<vmem>>, %arg6: memref<1x128xf32, #tpu.memory_space<vmem>>, %arg7: memref<2048x32xf32, #tpu.memory_space<vmem>>, %arg8: memref<1x32xf32, #tpu.memory_space<vmem>>, %arg9: memref<16x16xf32, #tpu.memory_space<vmem>>, %arg10: memref<16x512xf32, #tpu.memory_space<vmem>>, %arg11: memref<32x512xf32, #tpu.memory_space<vmem>>, %arg12: memref<32x512xf32, #tpu.memory_space<vmem>>, %arg13: memref<1x512xf32, #tpu.memory_space<vmem>>, %arg14: memref<256x128xf32, #tpu.memory_space<vmem>>, %arg15: memref<1x128xf32, #tpu.memory_space<vmem>>, %arg16: memref<2x32xf32, #tpu.memory_space<vmem>>, %arg17: memref<2x32xf32, #tpu.memory_space<vmem>>, %arg18: memref<2x128xf32, #tpu.memory_space<vmem>>, %arg19: memref<2x64xf32, #tpu.memory_space<vmem>>) attributes {dimension_semantics = [#tpu.dimension_semantics<arbitrary>], iteration_bounds = array<i64: 1>, scalar_prefetch = 1 : i64, scratch_operands = 0 : i64, tpu.core_type = #tpu.core_type<tc>, window_params = [{pipeline_mode = #tpu.pipeline_mode<synchronous>, transform_indices = @transform_0, window_bounds = array<i64: 36, 144>}, {pipeline_mode = #tpu.pipeline_mode<synchronous>, transform_indices = @transform_1, window_bounds = array<i64: 3, 144, 128>}, {pipeline_mode = #tpu.pipeline_mode<synchronous>, transform_indices = @transform_2, window_bounds = array<i64: 1, 128>}, {pipeline_mode = #tpu.pipeline_mode<synchronous>, transform_indices = @transform_3, window_bounds = array<i64: 3, 144, 128>}, {pipeline_mode = #tpu.pipeline_mode<synchronous>, transform_indices = @transform_4, window_bounds = array<i64: 1, 128>}, {pipeline_mode = #tpu.pipeline_mode<synchronous>, transform_indices = @transform_5, window_bounds = array<i64: 2048, 32>}, {pipeline_mode = #tpu.pipeline_mode<synchronous>, transform_indices = @transform_6, window_bounds = array<i64: 1, 32>}, {pipeline_mode = #tpu.pipeline_mode<synchronous>, transform_indices = @transform_7, window_bounds = array<i64: 16, 16>}, {pipeline_mode = #tpu.pipeline_mode<synchronous>, transform_indices = @transform_8, window_bounds = array<i64: 16, 512>}, {pipeline_mode = #tpu.pipeline_mode<synchronous>, transform_indices = @transform_9, window_bounds = array<i64: 32, 512>}, {pipeline_mode = #tpu.pipeline_mode<synchronous>, transform_indices = @transform_10, window_bounds = array<i64: 32, 512>}, {pipeline_mode = #tpu.pipeline_mode<synchronous>, transform_indices = @transform_11, window_bounds = array<i64: 1, 512>}, {pipeline_mode = #tpu.pipeline_mode<synchronous>, transform_indices = @transform_12, window_bounds = array<i64: 256, 128>}, {pipeline_mode = #tpu.pipeline_mode<synchronous>, transform_indices = @transform_13, window_bounds = array<i64: 1, 128>}, {pipeline_mode = #tpu.pipeline_mode<synchronous>, transform_indices = @transform_14, window_bounds = array<i64: 2, 32>}, {pipeline_mode = #tpu.pipeline_mode<synchronous>, transform_indices = @transform_15, window_bounds = array<i64: 2, 32>}, {pipeline_mode = #tpu.pipeline_mode<synchronous>, transform_indices = @transform_16, window_bounds = array<i64: 2, 128>}, {pipeline_mode = #tpu.pipeline_mode<synchronous>, transform_indices = @transform_17, window_bounds = array<i64: 2, 64>}]} {
    %c0 = arith.constant 0 : index
    %c0_0 = arith.constant 0 : index
    %0 = vector.load %arg2[%c0, %c0_0] : memref<36x144xf32, #tpu.memory_space<vmem>>, vector<36x144xf32>
    %cst = arith.constant 0.000000e+00 : f32
    %1 = vector.broadcast %cst : f32 to vector<32x128xf32>
    %2 = vector.extract_strided_slice %0 {offsets = [0, 0], sizes = [32, 144], strides = [1, 1]} : vector<36x144xf32> to vector<32x144xf32>
    %c0_1 = arith.constant 0 : index
    %c0_2 = arith.constant 0 : index
    %c0_3 = arith.constant 0 : index
    %3 = vector.load %arg3[%c0_1, %c0_2, %c0_3] : memref<3x144x128xf32, #tpu.memory_space<vmem>>, vector<1x144x128xf32>
    %4 = vector.shape_cast %3 : vector<1x144x128xf32> to vector<144x128xf32>
    %cst_4 = arith.constant dense<0.000000e+00> : vector<32x128xf32>
    %5 = tpu.matmul %2, %4, %cst_4 {dimension_numbers = #tpu.dot_dimension_numbers<[1], [0], [0], [1], [0, 0, 1, 1], [], []>} : vector<32x144xf32>, vector<144x128xf32>, vector<32x128xf32> -> vector<32x128xf32>
    %6 = arith.addf %1, %5 : vector<32x128xf32>
    %7 = vector.extract_strided_slice %0 {offsets = [2, 0], sizes = [32, 144], strides = [1, 1]} : vector<36x144xf32> to vector<32x144xf32>
    %c1 = arith.constant 1 : index
    %c0_5 = arith.constant 0 : index
    %c0_6 = arith.constant 0 : index
    %8 = vector.load %arg3[%c1, %c0_5, %c0_6] : memref<3x144x128xf32, #tpu.memory_space<vmem>>, vector<1x144x128xf32>
    %9 = vector.shape_cast %8 : vector<1x144x128xf32> to vector<144x128xf32>
    %cst_7 = arith.constant dense<0.000000e+00> : vector<32x128xf32>
    %10 = tpu.matmul %7, %9, %cst_7 {dimension_numbers = #tpu.dot_dimension_numbers<[1], [0], [0], [1], [0, 0, 1, 1], [], []>} : vector<32x144xf32>, vector<144x128xf32>, vector<32x128xf32> -> vector<32x128xf32>
    %11 = arith.addf %6, %10 : vector<32x128xf32>
    %12 = vector.extract_strided_slice %0 {offsets = [4, 0], sizes = [32, 144], strides = [1, 1]} : vector<36x144xf32> to vector<32x144xf32>
    %c2 = arith.constant 2 : index
    %c0_8 = arith.constant 0 : index
    %c0_9 = arith.constant 0 : index
    %13 = vector.load %arg3[%c2, %c0_8, %c0_9] : memref<3x144x128xf32, #tpu.memory_space<vmem>>, vector<1x144x128xf32>
    %14 = vector.shape_cast %13 : vector<1x144x128xf32> to vector<144x128xf32>
    %cst_10 = arith.constant dense<0.000000e+00> : vector<32x128xf32>
    %15 = tpu.matmul %12, %14, %cst_10 {dimension_numbers = #tpu.dot_dimension_numbers<[1], [0], [0], [1], [0, 0, 1, 1], [], []>} : vector<32x144xf32>, vector<144x128xf32>, vector<32x128xf32> -> vector<32x128xf32>
    %16 = arith.addf %11, %15 : vector<32x128xf32>
    %c0_11 = arith.constant 0 : index
    %c0_12 = arith.constant 0 : index
    %17 = vector.load %arg4[%c0_11, %c0_12] : memref<1x128xf32, #tpu.memory_space<vmem>>, vector<1x128xf32>
    %18 = vector.broadcast %17 : vector<1x128xf32> to vector<32x128xf32>
    %19 = arith.addf %16, %18 : vector<32x128xf32>
    %cst_13 = arith.constant 0.000000e+00 : f32
    %20 = vector.broadcast %cst_13 : f32 to vector<32x128xf32>
    %21 = arith.maximumf %19, %20 : vector<32x128xf32>
    %cst_14 = arith.constant 0.000000e+00 : f32
    %22 = vector.broadcast %cst_14 : f32 to vector<32x8xf32>
    %cst_15 = arith.constant 0.000000e+00 : f32
    %23 = vector.broadcast %cst_15 : f32 to vector<2x144xf32>
    %24 = tpu.concatenate %22, %21, %22 in 1 : vector<32x8xf32>, vector<32x128xf32>, vector<32x8xf32> -> vector<32x144xf32>
    %25 = tpu.concatenate %23, %24, %23 in 0 : vector<2x144xf32>, vector<32x144xf32>, vector<2x144xf32> -> vector<36x144xf32>
    %cst_16 = arith.constant 0.000000e+00 : f32
    %26 = vector.broadcast %cst_16 : f32 to vector<32x128xf32>
    %27 = vector.extract_strided_slice %25 {offsets = [0, 0], sizes = [32, 144], strides = [1, 1]} : vector<36x144xf32> to vector<32x144xf32>
    %c0_17 = arith.constant 0 : index
    %c0_18 = arith.constant 0 : index
    %c0_19 = arith.constant 0 : index
    %28 = vector.load %arg5[%c0_17, %c0_18, %c0_19] : memref<3x144x128xf32, #tpu.memory_space<vmem>>, vector<1x144x128xf32>
    %29 = vector.shape_cast %28 : vector<1x144x128xf32> to vector<144x128xf32>
    %cst_20 = arith.constant dense<0.000000e+00> : vector<32x128xf32>
    %30 = tpu.matmul %27, %29, %cst_20 {dimension_numbers = #tpu.dot_dimension_numbers<[1], [0], [0], [1], [0, 0, 1, 1], [], []>} : vector<32x144xf32>, vector<144x128xf32>, vector<32x128xf32> -> vector<32x128xf32>
    %31 = arith.addf %26, %30 : vector<32x128xf32>
    %32 = vector.extract_strided_slice %25 {offsets = [2, 0], sizes = [32, 144], strides = [1, 1]} : vector<36x144xf32> to vector<32x144xf32>
    %c1_21 = arith.constant 1 : index
    %c0_22 = arith.constant 0 : index
    %c0_23 = arith.constant 0 : index
    %33 = vector.load %arg5[%c1_21, %c0_22, %c0_23] : memref<3x144x128xf32, #tpu.memory_space<vmem>>, vector<1x144x128xf32>
    %34 = vector.shape_cast %33 : vector<1x144x128xf32> to vector<144x128xf32>
    %cst_24 = arith.constant dense<0.000000e+00> : vector<32x128xf32>
    %35 = tpu.matmul %32, %34, %cst_24 {dimension_numbers = #tpu.dot_dimension_numbers<[1], [0], [0], [1], [0, 0, 1, 1], [], []>} : vector<32x144xf32>, vector<144x128xf32>, vector<32x128xf32> -> vector<32x128xf32>
    %36 = arith.addf %31, %35 : vector<32x128xf32>
    %37 = vector.extract_strided_slice %25 {offsets = [4, 0], sizes = [32, 144], strides = [1, 1]} : vector<36x144xf32> to vector<32x144xf32>
    %c2_25 = arith.constant 2 : index
    %c0_26 = arith.constant 0 : index
    %c0_27 = arith.constant 0 : index
    %38 = vector.load %arg5[%c2_25, %c0_26, %c0_27] : memref<3x144x128xf32, #tpu.memory_space<vmem>>, vector<1x144x128xf32>
    %39 = vector.shape_cast %38 : vector<1x144x128xf32> to vector<144x128xf32>
    %cst_28 = arith.constant dense<0.000000e+00> : vector<32x128xf32>
    %40 = tpu.matmul %37, %39, %cst_28 {dimension_numbers = #tpu.dot_dimension_numbers<[1], [0], [0], [1], [0, 0, 1, 1], [], []>} : vector<32x144xf32>, vector<144x128xf32>, vector<32x128xf32> -> vector<32x128xf32>
    %41 = arith.addf %36, %40 : vector<32x128xf32>
    %c0_29 = arith.constant 0 : index
    %c0_30 = arith.constant 0 : index
    %42 = vector.load %arg6[%c0_29, %c0_30] : memref<1x128xf32, #tpu.memory_space<vmem>>, vector<1x128xf32>
    %43 = vector.broadcast %42 : vector<1x128xf32> to vector<32x128xf32>
    %44 = arith.addf %41, %43 : vector<32x128xf32>
    %cst_31 = arith.constant 0.000000e+00 : f32
    %45 = vector.broadcast %cst_31 : f32 to vector<32x128xf32>
    %46 = arith.maximumf %44, %45 : vector<32x128xf32>
    %cst_32 = arith.constant 0.000000e+00 : f32
    %47 = vector.broadcast %cst_32 : f32 to vector<2x32xf32>
    %48 = vector.extract_strided_slice %46 {offsets = [0, 0], sizes = [2, 128], strides = [1, 1]} : vector<32x128xf32> to vector<2x128xf32>
    %c0_33 = arith.constant 0 : index
    %c0_34 = arith.constant 0 : index
    %49 = vector.load %arg7[%c0_33, %c0_34] : memref<2048x32xf32, #tpu.memory_space<vmem>>, vector<128x32xf32>
    %cst_35 = arith.constant dense<0.000000e+00> : vector<2x32xf32>
    %50 = tpu.matmul %48, %49, %cst_35 {dimension_numbers = #tpu.dot_dimension_numbers<[1], [0], [0], [1], [0, 0, 1, 1], [], []>} : vector<2x128xf32>, vector<128x32xf32>, vector<2x32xf32> -> vector<2x32xf32>
    %51 = arith.addf %47, %50 : vector<2x32xf32>
    %52 = vector.extract_strided_slice %46 {offsets = [2, 0], sizes = [2, 128], strides = [1, 1]} : vector<32x128xf32> to vector<2x128xf32>
    %c128 = arith.constant 128 : index
    %c0_36 = arith.constant 0 : index
    %53 = vector.load %arg7[%c128, %c0_36] : memref<2048x32xf32, #tpu.memory_space<vmem>>, vector<128x32xf32>
    %cst_37 = arith.constant dense<0.000000e+00> : vector<2x32xf32>
    %54 = tpu.matmul %52, %53, %cst_37 {dimension_numbers = #tpu.dot_dimension_numbers<[1], [0], [0], [1], [0, 0, 1, 1], [], []>} : vector<2x128xf32>, vector<128x32xf32>, vector<2x32xf32> -> vector<2x32xf32>
    %55 = arith.addf %51, %54 : vector<2x32xf32>
    %56 = vector.extract_strided_slice %46 {offsets = [4, 0], sizes = [2, 128], strides = [1, 1]} : vector<32x128xf32> to vector<2x128xf32>
    %c256 = arith.constant 256 : index
    %c0_38 = arith.constant 0 : index
    %57 = vector.load %arg7[%c256, %c0_38] : memref<2048x32xf32, #tpu.memory_space<vmem>>, vector<128x32xf32>
    %cst_39 = arith.constant dense<0.000000e+00> : vector<2x32xf32>
    %58 = tpu.matmul %56, %57, %cst_39 {dimension_numbers = #tpu.dot_dimension_numbers<[1], [0], [0], [1], [0, 0, 1, 1], [], []>} : vector<2x128xf32>, vector<128x32xf32>, vector<2x32xf32> -> vector<2x32xf32>
    %59 = arith.addf %55, %58 : vector<2x32xf32>
    %60 = vector.extract_strided_slice %46 {offsets = [6, 0], sizes = [2, 128], strides = [1, 1]} : vector<32x128xf32> to vector<2x128xf32>
    %c384 = arith.constant 384 : index
    %c0_40 = arith.constant 0 : index
    %61 = vector.load %arg7[%c384, %c0_40] : memref<2048x32xf32, #tpu.memory_space<vmem>>, vector<128x32xf32>
    %cst_41 = arith.constant dense<0.000000e+00> : vector<2x32xf32>
    %62 = tpu.matmul %60, %61, %cst_41 {dimension_numbers = #tpu.dot_dimension_numbers<[1], [0], [0], [1], [0, 0, 1, 1], [], []>} : vector<2x128xf32>, vector<128x32xf32>, vector<2x32xf32> -> vector<2x32xf32>
    %63 = arith.addf %59, %62 : vector<2x32xf32>
    %64 = vector.extract_strided_slice %46 {offsets = [8, 0], sizes = [2, 128], strides = [1, 1]} : vector<32x128xf32> to vector<2x128xf32>
    %c512 = arith.constant 512 : index
    %c0_42 = arith.constant 0 : index
    %65 = vector.load %arg7[%c512, %c0_42] : memref<2048x32xf32, #tpu.memory_space<vmem>>, vector<128x32xf32>
    %cst_43 = arith.constant dense<0.000000e+00> : vector<2x32xf32>
    %66 = tpu.matmul %64, %65, %cst_43 {dimension_numbers = #tpu.dot_dimension_numbers<[1], [0], [0], [1], [0, 0, 1, 1], [], []>} : vector<2x128xf32>, vector<128x32xf32>, vector<2x32xf32> -> vector<2x32xf32>
    %67 = arith.addf %63, %66 : vector<2x32xf32>
    %68 = vector.extract_strided_slice %46 {offsets = [10, 0], sizes = [2, 128], strides = [1, 1]} : vector<32x128xf32> to vector<2x128xf32>
    %c640 = arith.constant 640 : index
    %c0_44 = arith.constant 0 : index
    %69 = vector.load %arg7[%c640, %c0_44] : memref<2048x32xf32, #tpu.memory_space<vmem>>, vector<128x32xf32>
    %cst_45 = arith.constant dense<0.000000e+00> : vector<2x32xf32>
    %70 = tpu.matmul %68, %69, %cst_45 {dimension_numbers = #tpu.dot_dimension_numbers<[1], [0], [0], [1], [0, 0, 1, 1], [], []>} : vector<2x128xf32>, vector<128x32xf32>, vector<2x32xf32> -> vector<2x32xf32>
    %71 = arith.addf %67, %70 : vector<2x32xf32>
    %72 = vector.extract_strided_slice %46 {offsets = [12, 0], sizes = [2, 128], strides = [1, 1]} : vector<32x128xf32> to vector<2x128xf32>
    %c768 = arith.constant 768 : index
    %c0_46 = arith.constant 0 : index
    %73 = vector.load %arg7[%c768, %c0_46] : memref<2048x32xf32, #tpu.memory_space<vmem>>, vector<128x32xf32>
    %cst_47 = arith.constant dense<0.000000e+00> : vector<2x32xf32>
    %74 = tpu.matmul %72, %73, %cst_47 {dimension_numbers = #tpu.dot_dimension_numbers<[1], [0], [0], [1], [0, 0, 1, 1], [], []>} : vector<2x128xf32>, vector<128x32xf32>, vector<2x32xf32> -> vector<2x32xf32>
    %75 = arith.addf %71, %74 : vector<2x32xf32>
    %76 = vector.extract_strided_slice %46 {offsets = [14, 0], sizes = [2, 128], strides = [1, 1]} : vector<32x128xf32> to vector<2x128xf32>
    %c896 = arith.constant 896 : index
    %c0_48 = arith.constant 0 : index
    %77 = vector.load %arg7[%c896, %c0_48] : memref<2048x32xf32, #tpu.memory_space<vmem>>, vector<128x32xf32>
    %cst_49 = arith.constant dense<0.000000e+00> : vector<2x32xf32>
    %78 = tpu.matmul %76, %77, %cst_49 {dimension_numbers = #tpu.dot_dimension_numbers<[1], [0], [0], [1], [0, 0, 1, 1], [], []>} : vector<2x128xf32>, vector<128x32xf32>, vector<2x32xf32> -> vector<2x32xf32>
    %79 = arith.addf %75, %78 : vector<2x32xf32>
    %80 = vector.extract_strided_slice %46 {offsets = [16, 0], sizes = [2, 128], strides = [1, 1]} : vector<32x128xf32> to vector<2x128xf32>
    %c1024 = arith.constant 1024 : index
    %c0_50 = arith.constant 0 : index
    %81 = vector.load %arg7[%c1024, %c0_50] : memref<2048x32xf32, #tpu.memory_space<vmem>>, vector<128x32xf32>
    %cst_51 = arith.constant dense<0.000000e+00> : vector<2x32xf32>
    %82 = tpu.matmul %80, %81, %cst_51 {dimension_numbers = #tpu.dot_dimension_numbers<[1], [0], [0], [1], [0, 0, 1, 1], [], []>} : vector<2x128xf32>, vector<128x32xf32>, vector<2x32xf32> -> vector<2x32xf32>
    %83 = arith.addf %79, %82 : vector<2x32xf32>
    %84 = vector.extract_strided_slice %46 {offsets = [18, 0], sizes = [2, 128], strides = [1, 1]} : vector<32x128xf32> to vector<2x128xf32>
    %c1152 = arith.constant 1152 : index
    %c0_52 = arith.constant 0 : index
    %85 = vector.load %arg7[%c1152, %c0_52] : memref<2048x32xf32, #tpu.memory_space<vmem>>, vector<128x32xf32>
    %cst_53 = arith.constant dense<0.000000e+00> : vector<2x32xf32>
    %86 = tpu.matmul %84, %85, %cst_53 {dimension_numbers = #tpu.dot_dimension_numbers<[1], [0], [0], [1], [0, 0, 1, 1], [], []>} : vector<2x128xf32>, vector<128x32xf32>, vector<2x32xf32> -> vector<2x32xf32>
    %87 = arith.addf %83, %86 : vector<2x32xf32>
    %88 = vector.extract_strided_slice %46 {offsets = [20, 0], sizes = [2, 128], strides = [1, 1]} : vector<32x128xf32> to vector<2x128xf32>
    %c1280 = arith.constant 1280 : index
    %c0_54 = arith.constant 0 : index
    %89 = vector.load %arg7[%c1280, %c0_54] : memref<2048x32xf32, #tpu.memory_space<vmem>>, vector<128x32xf32>
    %cst_55 = arith.constant dense<0.000000e+00> : vector<2x32xf32>
    %90 = tpu.matmul %88, %89, %cst_55 {dimension_numbers = #tpu.dot_dimension_numbers<[1], [0], [0], [1], [0, 0, 1, 1], [], []>} : vector<2x128xf32>, vector<128x32xf32>, vector<2x32xf32> -> vector<2x32xf32>
    %91 = arith.addf %87, %90 : vector<2x32xf32>
    %92 = vector.extract_strided_slice %46 {offsets = [22, 0], sizes = [2, 128], strides = [1, 1]} : vector<32x128xf32> to vector<2x128xf32>
    %c1408 = arith.constant 1408 : index
    %c0_56 = arith.constant 0 : index
    %93 = vector.load %arg7[%c1408, %c0_56] : memref<2048x32xf32, #tpu.memory_space<vmem>>, vector<128x32xf32>
    %cst_57 = arith.constant dense<0.000000e+00> : vector<2x32xf32>
    %94 = tpu.matmul %92, %93, %cst_57 {dimension_numbers = #tpu.dot_dimension_numbers<[1], [0], [0], [1], [0, 0, 1, 1], [], []>} : vector<2x128xf32>, vector<128x32xf32>, vector<2x32xf32> -> vector<2x32xf32>
    %95 = arith.addf %91, %94 : vector<2x32xf32>
    %96 = vector.extract_strided_slice %46 {offsets = [24, 0], sizes = [2, 128], strides = [1, 1]} : vector<32x128xf32> to vector<2x128xf32>
    %c1536 = arith.constant 1536 : index
    %c0_58 = arith.constant 0 : index
    %97 = vector.load %arg7[%c1536, %c0_58] : memref<2048x32xf32, #tpu.memory_space<vmem>>, vector<128x32xf32>
    %cst_59 = arith.constant dense<0.000000e+00> : vector<2x32xf32>
    %98 = tpu.matmul %96, %97, %cst_59 {dimension_numbers = #tpu.dot_dimension_numbers<[1], [0], [0], [1], [0, 0, 1, 1], [], []>} : vector<2x128xf32>, vector<128x32xf32>, vector<2x32xf32> -> vector<2x32xf32>
    %99 = arith.addf %95, %98 : vector<2x32xf32>
    %100 = vector.extract_strided_slice %46 {offsets = [26, 0], sizes = [2, 128], strides = [1, 1]} : vector<32x128xf32> to vector<2x128xf32>
    %c1664 = arith.constant 1664 : index
    %c0_60 = arith.constant 0 : index
    %101 = vector.load %arg7[%c1664, %c0_60] : memref<2048x32xf32, #tpu.memory_space<vmem>>, vector<128x32xf32>
    %cst_61 = arith.constant dense<0.000000e+00> : vector<2x32xf32>
    %102 = tpu.matmul %100, %101, %cst_61 {dimension_numbers = #tpu.dot_dimension_numbers<[1], [0], [0], [1], [0, 0, 1, 1], [], []>} : vector<2x128xf32>, vector<128x32xf32>, vector<2x32xf32> -> vector<2x32xf32>
    %103 = arith.addf %99, %102 : vector<2x32xf32>
    %104 = vector.extract_strided_slice %46 {offsets = [28, 0], sizes = [2, 128], strides = [1, 1]} : vector<32x128xf32> to vector<2x128xf32>
    %c1792 = arith.constant 1792 : index
    %c0_62 = arith.constant 0 : index
    %105 = vector.load %arg7[%c1792, %c0_62] : memref<2048x32xf32, #tpu.memory_space<vmem>>, vector<128x32xf32>
    %cst_63 = arith.constant dense<0.000000e+00> : vector<2x32xf32>
    %106 = tpu.matmul %104, %105, %cst_63 {dimension_numbers = #tpu.dot_dimension_numbers<[1], [0], [0], [1], [0, 0, 1, 1], [], []>} : vector<2x128xf32>, vector<128x32xf32>, vector<2x32xf32> -> vector<2x32xf32>
    %107 = arith.addf %103, %106 : vector<2x32xf32>
    %108 = vector.extract_strided_slice %46 {offsets = [30, 0], sizes = [2, 128], strides = [1, 1]} : vector<32x128xf32> to vector<2x128xf32>
    %c1920 = arith.constant 1920 : index
    %c0_64 = arith.constant 0 : index
    %109 = vector.load %arg7[%c1920, %c0_64] : memref<2048x32xf32, #tpu.memory_space<vmem>>, vector<128x32xf32>
    %cst_65 = arith.constant dense<0.000000e+00> : vector<2x32xf32>
    %110 = tpu.matmul %108, %109, %cst_65 {dimension_numbers = #tpu.dot_dimension_numbers<[1], [0], [0], [1], [0, 0, 1, 1], [], []>} : vector<2x128xf32>, vector<128x32xf32>, vector<2x32xf32> -> vector<2x32xf32>
    %111 = arith.addf %107, %110 : vector<2x32xf32>
    %c0_66 = arith.constant 0 : index
    %c0_67 = arith.constant 0 : index
    %112 = vector.load %arg8[%c0_66, %c0_67] : memref<1x32xf32, #tpu.memory_space<vmem>>, vector<1x32xf32>
    %113 = vector.broadcast %112 : vector<1x32xf32> to vector<2x32xf32>
    %114 = arith.addf %111, %113 : vector<2x32xf32>
    %cst_68 = arith.constant 0.000000e+00 : f32
    %115 = vector.broadcast %cst_68 : f32 to vector<2x32xf32>
    %116 = arith.maximumf %114, %115 : vector<2x32xf32>
    %c0_69 = arith.constant 0 : index
    %c0_70 = arith.constant 0 : index
    %117 = memref.load %arg1[%c0_69, %c0_70] : memref<2x8xi32, #tpu.memory_space<smem>>
    %118 = arith.index_cast %117 : i32 to index
    %c0_71 = arith.constant 0 : index
    %119 = vector.load %arg9[%118, %c0_71] : memref<16x16xf32, #tpu.memory_space<vmem>>, vector<1x16xf32>
    %c1_72 = arith.constant 1 : index
    %c0_73 = arith.constant 0 : index
    %120 = memref.load %arg1[%c1_72, %c0_73] : memref<2x8xi32, #tpu.memory_space<smem>>
    %121 = arith.index_cast %120 : i32 to index
    %c0_74 = arith.constant 0 : index
    %122 = vector.load %arg9[%121, %c0_74] : memref<16x16xf32, #tpu.memory_space<vmem>>, vector<1x16xf32>
    %c0_75 = arith.constant 0 : index
    %c1_76 = arith.constant 1 : index
    %123 = memref.load %arg1[%c0_75, %c1_76] : memref<2x8xi32, #tpu.memory_space<smem>>
    %124 = arith.index_cast %123 : i32 to index
    %c0_77 = arith.constant 0 : index
    %125 = vector.load %arg9[%124, %c0_77] : memref<16x16xf32, #tpu.memory_space<vmem>>, vector<1x16xf32>
    %c1_78 = arith.constant 1 : index
    %c1_79 = arith.constant 1 : index
    %126 = memref.load %arg1[%c1_78, %c1_79] : memref<2x8xi32, #tpu.memory_space<smem>>
    %127 = arith.index_cast %126 : i32 to index
    %c0_80 = arith.constant 0 : index
    %128 = vector.load %arg9[%127, %c0_80] : memref<16x16xf32, #tpu.memory_space<vmem>>, vector<1x16xf32>
    %c0_81 = arith.constant 0 : index
    %c2_82 = arith.constant 2 : index
    %129 = memref.load %arg1[%c0_81, %c2_82] : memref<2x8xi32, #tpu.memory_space<smem>>
    %130 = arith.index_cast %129 : i32 to index
    %c0_83 = arith.constant 0 : index
    %131 = vector.load %arg9[%130, %c0_83] : memref<16x16xf32, #tpu.memory_space<vmem>>, vector<1x16xf32>
    %c1_84 = arith.constant 1 : index
    %c2_85 = arith.constant 2 : index
    %132 = memref.load %arg1[%c1_84, %c2_85] : memref<2x8xi32, #tpu.memory_space<smem>>
    %133 = arith.index_cast %132 : i32 to index
    %c0_86 = arith.constant 0 : index
    %134 = vector.load %arg9[%133, %c0_86] : memref<16x16xf32, #tpu.memory_space<vmem>>, vector<1x16xf32>
    %c0_87 = arith.constant 0 : index
    %c3 = arith.constant 3 : index
    %135 = memref.load %arg1[%c0_87, %c3] : memref<2x8xi32, #tpu.memory_space<smem>>
    %136 = arith.index_cast %135 : i32 to index
    %c0_88 = arith.constant 0 : index
    %137 = vector.load %arg9[%136, %c0_88] : memref<16x16xf32, #tpu.memory_space<vmem>>, vector<1x16xf32>
    %c1_89 = arith.constant 1 : index
    %c3_90 = arith.constant 3 : index
    %138 = memref.load %arg1[%c1_89, %c3_90] : memref<2x8xi32, #tpu.memory_space<smem>>
    %139 = arith.index_cast %138 : i32 to index
    %c0_91 = arith.constant 0 : index
    %140 = vector.load %arg9[%139, %c0_91] : memref<16x16xf32, #tpu.memory_space<vmem>>, vector<1x16xf32>
    %c0_92 = arith.constant 0 : index
    %c4 = arith.constant 4 : index
    %141 = memref.load %arg1[%c0_92, %c4] : memref<2x8xi32, #tpu.memory_space<smem>>
    %142 = arith.index_cast %141 : i32 to index
    %c0_93 = arith.constant 0 : index
    %143 = vector.load %arg9[%142, %c0_93] : memref<16x16xf32, #tpu.memory_space<vmem>>, vector<1x16xf32>
    %c1_94 = arith.constant 1 : index
    %c4_95 = arith.constant 4 : index
    %144 = memref.load %arg1[%c1_94, %c4_95] : memref<2x8xi32, #tpu.memory_space<smem>>
    %145 = arith.index_cast %144 : i32 to index
    %c0_96 = arith.constant 0 : index
    %146 = vector.load %arg9[%145, %c0_96] : memref<16x16xf32, #tpu.memory_space<vmem>>, vector<1x16xf32>
    %c0_97 = arith.constant 0 : index
    %c5 = arith.constant 5 : index
    %147 = memref.load %arg1[%c0_97, %c5] : memref<2x8xi32, #tpu.memory_space<smem>>
    %148 = arith.index_cast %147 : i32 to index
    %c0_98 = arith.constant 0 : index
    %149 = vector.load %arg9[%148, %c0_98] : memref<16x16xf32, #tpu.memory_space<vmem>>, vector<1x16xf32>
    %c1_99 = arith.constant 1 : index
    %c5_100 = arith.constant 5 : index
    %150 = memref.load %arg1[%c1_99, %c5_100] : memref<2x8xi32, #tpu.memory_space<smem>>
    %151 = arith.index_cast %150 : i32 to index
    %c0_101 = arith.constant 0 : index
    %152 = vector.load %arg9[%151, %c0_101] : memref<16x16xf32, #tpu.memory_space<vmem>>, vector<1x16xf32>
    %c0_102 = arith.constant 0 : index
    %c6 = arith.constant 6 : index
    %153 = memref.load %arg1[%c0_102, %c6] : memref<2x8xi32, #tpu.memory_space<smem>>
    %154 = arith.index_cast %153 : i32 to index
    %c0_103 = arith.constant 0 : index
    %155 = vector.load %arg9[%154, %c0_103] : memref<16x16xf32, #tpu.memory_space<vmem>>, vector<1x16xf32>
    %c1_104 = arith.constant 1 : index
    %c6_105 = arith.constant 6 : index
    %156 = memref.load %arg1[%c1_104, %c6_105] : memref<2x8xi32, #tpu.memory_space<smem>>
    %157 = arith.index_cast %156 : i32 to index
    %c0_106 = arith.constant 0 : index
    %158 = vector.load %arg9[%157, %c0_106] : memref<16x16xf32, #tpu.memory_space<vmem>>, vector<1x16xf32>
    %c0_107 = arith.constant 0 : index
    %c7 = arith.constant 7 : index
    %159 = memref.load %arg1[%c0_107, %c7] : memref<2x8xi32, #tpu.memory_space<smem>>
    %160 = arith.index_cast %159 : i32 to index
    %c0_108 = arith.constant 0 : index
    %161 = vector.load %arg9[%160, %c0_108] : memref<16x16xf32, #tpu.memory_space<vmem>>, vector<1x16xf32>
    %c1_109 = arith.constant 1 : index
    %c7_110 = arith.constant 7 : index
    %162 = memref.load %arg1[%c1_109, %c7_110] : memref<2x8xi32, #tpu.memory_space<smem>>
    %163 = arith.index_cast %162 : i32 to index
    %c0_111 = arith.constant 0 : index
    %164 = vector.load %arg9[%163, %c0_111] : memref<16x16xf32, #tpu.memory_space<vmem>>, vector<1x16xf32>
    %165 = tpu.concatenate %119, %122, %125, %128, %131, %134, %137, %140, %143, %146, %149, %152, %155, %158, %161, %164 in 0 : vector<1x16xf32>, vector<1x16xf32>, vector<1x16xf32>, vector<1x16xf32>, vector<1x16xf32>, vector<1x16xf32>, vector<1x16xf32>, vector<1x16xf32>, vector<1x16xf32>, vector<1x16xf32>, vector<1x16xf32>, vector<1x16xf32>, vector<1x16xf32>, vector<1x16xf32>, vector<1x16xf32>, vector<1x16xf32> -> vector<16x16xf32>
    %c0_112 = arith.constant 0 : index
    %c0_113 = arith.constant 0 : index
    %166 = vector.load %arg10[%c0_112, %c0_113] : memref<16x512xf32, #tpu.memory_space<vmem>>, vector<16x512xf32>
    %cst_114 = arith.constant dense<0.000000e+00> : vector<16x512xf32>
    %167 = tpu.matmul %165, %166, %cst_114 {dimension_numbers = #tpu.dot_dimension_numbers<[1], [0], [0], [1], [0, 0, 1, 1], [], []>} : vector<16x16xf32>, vector<16x512xf32>, vector<16x512xf32> -> vector<16x512xf32>
    %c0_115 = arith.constant 0 : index
    %c0_116 = arith.constant 0 : index
    %168 = vector.load %arg11[%c0_115, %c0_116] : memref<32x512xf32, #tpu.memory_space<vmem>>, vector<32x512xf32>
    %cst_117 = arith.constant dense<0.000000e+00> : vector<2x512xf32>
    %169 = tpu.matmul %116, %168, %cst_117 {dimension_numbers = #tpu.dot_dimension_numbers<[1], [0], [0], [1], [0, 0, 1, 1], [], []>} : vector<2x32xf32>, vector<32x512xf32>, vector<2x512xf32> -> vector<2x512xf32>
    %c0_118 = arith.constant 0 : index
    %c0_119 = arith.constant 0 : index
    %170 = vector.load %arg13[%c0_118, %c0_119] : memref<1x512xf32, #tpu.memory_space<vmem>>, vector<1x512xf32>
    %171 = vector.broadcast %170 : vector<1x512xf32> to vector<2x512xf32>
    %172 = arith.addf %169, %171 : vector<2x512xf32>
    %c0_120 = arith.constant 0 : index
    %c0_121 = arith.constant 0 : index
    %173 = vector.load %arg16[%c0_120, %c0_121] : memref<2x32xf32, #tpu.memory_space<vmem>>, vector<2x32xf32>
    %c0_122 = arith.constant 0 : index
    %c0_123 = arith.constant 0 : index
    %174 = vector.load %arg17[%c0_122, %c0_123] : memref<2x32xf32, #tpu.memory_space<vmem>>, vector<2x32xf32>
    %175 = vector.extract_strided_slice %167 {offsets = [0, 0], sizes = [2, 512], strides = [1, 1]} : vector<16x512xf32> to vector<2x512xf32>
    %176 = arith.addf %175, %172 : vector<2x512xf32>
    %c0_124 = arith.constant 0 : index
    %c0_125 = arith.constant 0 : index
    %177 = vector.load %arg12[%c0_124, %c0_125] : memref<32x512xf32, #tpu.memory_space<vmem>>, vector<32x512xf32>
    %cst_126 = arith.constant dense<0.000000e+00> : vector<2x512xf32>
    %178 = tpu.matmul %173, %177, %cst_126 {dimension_numbers = #tpu.dot_dimension_numbers<[1], [0], [0], [1], [0, 0, 1, 1], [], []>} : vector<2x32xf32>, vector<32x512xf32>, vector<2x512xf32> -> vector<2x512xf32>
    %179 = arith.addf %176, %178 : vector<2x512xf32>
    %180 = vector.extract_strided_slice %179 {offsets = [0, 0], sizes = [2, 32], strides = [1, 1]} : vector<2x512xf32> to vector<2x32xf32>
    %181 = arith.negf %180 : vector<2x32xf32>
    %182 = math.exp %181 : vector<2x32xf32>
    %cst_127 = arith.constant 1.000000e+00 : f32
    %183 = vector.broadcast %cst_127 : f32 to vector<2x32xf32>
    %184 = arith.addf %183, %182 : vector<2x32xf32>
    %185 = arith.divf %183, %184 : vector<2x32xf32>
    %186 = vector.extract_strided_slice %179 {offsets = [0, 128], sizes = [2, 32], strides = [1, 1]} : vector<2x512xf32> to vector<2x32xf32>
    %187 = arith.negf %186 : vector<2x32xf32>
    %188 = math.exp %187 : vector<2x32xf32>
    %cst_128 = arith.constant 1.000000e+00 : f32
    %189 = vector.broadcast %cst_128 : f32 to vector<2x32xf32>
    %190 = arith.addf %189, %188 : vector<2x32xf32>
    %191 = arith.divf %189, %190 : vector<2x32xf32>
    %192 = vector.extract_strided_slice %179 {offsets = [0, 256], sizes = [2, 32], strides = [1, 1]} : vector<2x512xf32> to vector<2x32xf32>
    %193 = math.tanh %192 : vector<2x32xf32>
    %194 = vector.extract_strided_slice %179 {offsets = [0, 384], sizes = [2, 32], strides = [1, 1]} : vector<2x512xf32> to vector<2x32xf32>
    %195 = arith.negf %194 : vector<2x32xf32>
    %196 = math.exp %195 : vector<2x32xf32>
    %cst_129 = arith.constant 1.000000e+00 : f32
    %197 = vector.broadcast %cst_129 : f32 to vector<2x32xf32>
    %198 = arith.addf %197, %196 : vector<2x32xf32>
    %199 = arith.divf %197, %198 : vector<2x32xf32>
    %200 = arith.mulf %191, %174 : vector<2x32xf32>
    %201 = arith.mulf %185, %193 : vector<2x32xf32>
    %202 = arith.addf %200, %201 : vector<2x32xf32>
    %203 = math.tanh %202 : vector<2x32xf32>
    %204 = arith.mulf %199, %203 : vector<2x32xf32>
    %205 = vector.extract_strided_slice %167 {offsets = [2, 0], sizes = [2, 512], strides = [1, 1]} : vector<16x512xf32> to vector<2x512xf32>
    %206 = arith.addf %205, %172 : vector<2x512xf32>
    %c0_130 = arith.constant 0 : index
    %c0_131 = arith.constant 0 : index
    %207 = vector.load %arg12[%c0_130, %c0_131] : memref<32x512xf32, #tpu.memory_space<vmem>>, vector<32x512xf32>
    %cst_132 = arith.constant dense<0.000000e+00> : vector<2x512xf32>
    %208 = tpu.matmul %204, %207, %cst_132 {dimension_numbers = #tpu.dot_dimension_numbers<[1], [0], [0], [1], [0, 0, 1, 1], [], []>} : vector<2x32xf32>, vector<32x512xf32>, vector<2x512xf32> -> vector<2x512xf32>
    %209 = arith.addf %206, %208 : vector<2x512xf32>
    %210 = vector.extract_strided_slice %209 {offsets = [0, 0], sizes = [2, 32], strides = [1, 1]} : vector<2x512xf32> to vector<2x32xf32>
    %211 = arith.negf %210 : vector<2x32xf32>
    %212 = math.exp %211 : vector<2x32xf32>
    %cst_133 = arith.constant 1.000000e+00 : f32
    %213 = vector.broadcast %cst_133 : f32 to vector<2x32xf32>
    %214 = arith.addf %213, %212 : vector<2x32xf32>
    %215 = arith.divf %213, %214 : vector<2x32xf32>
    %216 = vector.extract_strided_slice %209 {offsets = [0, 128], sizes = [2, 32], strides = [1, 1]} : vector<2x512xf32> to vector<2x32xf32>
    %217 = arith.negf %216 : vector<2x32xf32>
    %218 = math.exp %217 : vector<2x32xf32>
    %cst_134 = arith.constant 1.000000e+00 : f32
    %219 = vector.broadcast %cst_134 : f32 to vector<2x32xf32>
    %220 = arith.addf %219, %218 : vector<2x32xf32>
    %221 = arith.divf %219, %220 : vector<2x32xf32>
    %222 = vector.extract_strided_slice %209 {offsets = [0, 256], sizes = [2, 32], strides = [1, 1]} : vector<2x512xf32> to vector<2x32xf32>
    %223 = math.tanh %222 : vector<2x32xf32>
    %224 = vector.extract_strided_slice %209 {offsets = [0, 384], sizes = [2, 32], strides = [1, 1]} : vector<2x512xf32> to vector<2x32xf32>
    %225 = arith.negf %224 : vector<2x32xf32>
    %226 = math.exp %225 : vector<2x32xf32>
    %cst_135 = arith.constant 1.000000e+00 : f32
    %227 = vector.broadcast %cst_135 : f32 to vector<2x32xf32>
    %228 = arith.addf %227, %226 : vector<2x32xf32>
    %229 = arith.divf %227, %228 : vector<2x32xf32>
    %230 = arith.mulf %221, %202 : vector<2x32xf32>
    %231 = arith.mulf %215, %223 : vector<2x32xf32>
    %232 = arith.addf %230, %231 : vector<2x32xf32>
    %233 = math.tanh %232 : vector<2x32xf32>
    %234 = arith.mulf %229, %233 : vector<2x32xf32>
    %235 = vector.extract_strided_slice %167 {offsets = [4, 0], sizes = [2, 512], strides = [1, 1]} : vector<16x512xf32> to vector<2x512xf32>
    %236 = arith.addf %235, %172 : vector<2x512xf32>
    %c0_136 = arith.constant 0 : index
    %c0_137 = arith.constant 0 : index
    %237 = vector.load %arg12[%c0_136, %c0_137] : memref<32x512xf32, #tpu.memory_space<vmem>>, vector<32x512xf32>
    %cst_138 = arith.constant dense<0.000000e+00> : vector<2x512xf32>
    %238 = tpu.matmul %234, %237, %cst_138 {dimension_numbers = #tpu.dot_dimension_numbers<[1], [0], [0], [1], [0, 0, 1, 1], [], []>} : vector<2x32xf32>, vector<32x512xf32>, vector<2x512xf32> -> vector<2x512xf32>
    %239 = arith.addf %236, %238 : vector<2x512xf32>
    %240 = vector.extract_strided_slice %239 {offsets = [0, 0], sizes = [2, 32], strides = [1, 1]} : vector<2x512xf32> to vector<2x32xf32>
    %241 = arith.negf %240 : vector<2x32xf32>
    %242 = math.exp %241 : vector<2x32xf32>
    %cst_139 = arith.constant 1.000000e+00 : f32
    %243 = vector.broadcast %cst_139 : f32 to vector<2x32xf32>
    %244 = arith.addf %243, %242 : vector<2x32xf32>
    %245 = arith.divf %243, %244 : vector<2x32xf32>
    %246 = vector.extract_strided_slice %239 {offsets = [0, 128], sizes = [2, 32], strides = [1, 1]} : vector<2x512xf32> to vector<2x32xf32>
    %247 = arith.negf %246 : vector<2x32xf32>
    %248 = math.exp %247 : vector<2x32xf32>
    %cst_140 = arith.constant 1.000000e+00 : f32
    %249 = vector.broadcast %cst_140 : f32 to vector<2x32xf32>
    %250 = arith.addf %249, %248 : vector<2x32xf32>
    %251 = arith.divf %249, %250 : vector<2x32xf32>
    %252 = vector.extract_strided_slice %239 {offsets = [0, 256], sizes = [2, 32], strides = [1, 1]} : vector<2x512xf32> to vector<2x32xf32>
    %253 = math.tanh %252 : vector<2x32xf32>
    %254 = vector.extract_strided_slice %239 {offsets = [0, 384], sizes = [2, 32], strides = [1, 1]} : vector<2x512xf32> to vector<2x32xf32>
    %255 = arith.negf %254 : vector<2x32xf32>
    %256 = math.exp %255 : vector<2x32xf32>
    %cst_141 = arith.constant 1.000000e+00 : f32
    %257 = vector.broadcast %cst_141 : f32 to vector<2x32xf32>
    %258 = arith.addf %257, %256 : vector<2x32xf32>
    %259 = arith.divf %257, %258 : vector<2x32xf32>
    %260 = arith.mulf %251, %232 : vector<2x32xf32>
    %261 = arith.mulf %245, %253 : vector<2x32xf32>
    %262 = arith.addf %260, %261 : vector<2x32xf32>
    %263 = math.tanh %262 : vector<2x32xf32>
    %264 = arith.mulf %259, %263 : vector<2x32xf32>
    %265 = vector.extract_strided_slice %167 {offsets = [6, 0], sizes = [2, 512], strides = [1, 1]} : vector<16x512xf32> to vector<2x512xf32>
    %266 = arith.addf %265, %172 : vector<2x512xf32>
    %c0_142 = arith.constant 0 : index
    %c0_143 = arith.constant 0 : index
    %267 = vector.load %arg12[%c0_142, %c0_143] : memref<32x512xf32, #tpu.memory_space<vmem>>, vector<32x512xf32>
    %cst_144 = arith.constant dense<0.000000e+00> : vector<2x512xf32>
    %268 = tpu.matmul %264, %267, %cst_144 {dimension_numbers = #tpu.dot_dimension_numbers<[1], [0], [0], [1], [0, 0, 1, 1], [], []>} : vector<2x32xf32>, vector<32x512xf32>, vector<2x512xf32> -> vector<2x512xf32>
    %269 = arith.addf %266, %268 : vector<2x512xf32>
    %270 = vector.extract_strided_slice %269 {offsets = [0, 0], sizes = [2, 32], strides = [1, 1]} : vector<2x512xf32> to vector<2x32xf32>
    %271 = arith.negf %270 : vector<2x32xf32>
    %272 = math.exp %271 : vector<2x32xf32>
    %cst_145 = arith.constant 1.000000e+00 : f32
    %273 = vector.broadcast %cst_145 : f32 to vector<2x32xf32>
    %274 = arith.addf %273, %272 : vector<2x32xf32>
    %275 = arith.divf %273, %274 : vector<2x32xf32>
    %276 = vector.extract_strided_slice %269 {offsets = [0, 128], sizes = [2, 32], strides = [1, 1]} : vector<2x512xf32> to vector<2x32xf32>
    %277 = arith.negf %276 : vector<2x32xf32>
    %278 = math.exp %277 : vector<2x32xf32>
    %cst_146 = arith.constant 1.000000e+00 : f32
    %279 = vector.broadcast %cst_146 : f32 to vector<2x32xf32>
    %280 = arith.addf %279, %278 : vector<2x32xf32>
    %281 = arith.divf %279, %280 : vector<2x32xf32>
    %282 = vector.extract_strided_slice %269 {offsets = [0, 256], sizes = [2, 32], strides = [1, 1]} : vector<2x512xf32> to vector<2x32xf32>
    %283 = math.tanh %282 : vector<2x32xf32>
    %284 = vector.extract_strided_slice %269 {offsets = [0, 384], sizes = [2, 32], strides = [1, 1]} : vector<2x512xf32> to vector<2x32xf32>
    %285 = arith.negf %284 : vector<2x32xf32>
    %286 = math.exp %285 : vector<2x32xf32>
    %cst_147 = arith.constant 1.000000e+00 : f32
    %287 = vector.broadcast %cst_147 : f32 to vector<2x32xf32>
    %288 = arith.addf %287, %286 : vector<2x32xf32>
    %289 = arith.divf %287, %288 : vector<2x32xf32>
    %290 = arith.mulf %281, %262 : vector<2x32xf32>
    %291 = arith.mulf %275, %283 : vector<2x32xf32>
    %292 = arith.addf %290, %291 : vector<2x32xf32>
    %293 = math.tanh %292 : vector<2x32xf32>
    %294 = arith.mulf %289, %293 : vector<2x32xf32>
    %295 = vector.extract_strided_slice %167 {offsets = [8, 0], sizes = [2, 512], strides = [1, 1]} : vector<16x512xf32> to vector<2x512xf32>
    %296 = arith.addf %295, %172 : vector<2x512xf32>
    %c0_148 = arith.constant 0 : index
    %c0_149 = arith.constant 0 : index
    %297 = vector.load %arg12[%c0_148, %c0_149] : memref<32x512xf32, #tpu.memory_space<vmem>>, vector<32x512xf32>
    %cst_150 = arith.constant dense<0.000000e+00> : vector<2x512xf32>
    %298 = tpu.matmul %294, %297, %cst_150 {dimension_numbers = #tpu.dot_dimension_numbers<[1], [0], [0], [1], [0, 0, 1, 1], [], []>} : vector<2x32xf32>, vector<32x512xf32>, vector<2x512xf32> -> vector<2x512xf32>
    %299 = arith.addf %296, %298 : vector<2x512xf32>
    %300 = vector.extract_strided_slice %299 {offsets = [0, 0], sizes = [2, 32], strides = [1, 1]} : vector<2x512xf32> to vector<2x32xf32>
    %301 = arith.negf %300 : vector<2x32xf32>
    %302 = math.exp %301 : vector<2x32xf32>
    %cst_151 = arith.constant 1.000000e+00 : f32
    %303 = vector.broadcast %cst_151 : f32 to vector<2x32xf32>
    %304 = arith.addf %303, %302 : vector<2x32xf32>
    %305 = arith.divf %303, %304 : vector<2x32xf32>
    %306 = vector.extract_strided_slice %299 {offsets = [0, 128], sizes = [2, 32], strides = [1, 1]} : vector<2x512xf32> to vector<2x32xf32>
    %307 = arith.negf %306 : vector<2x32xf32>
    %308 = math.exp %307 : vector<2x32xf32>
    %cst_152 = arith.constant 1.000000e+00 : f32
    %309 = vector.broadcast %cst_152 : f32 to vector<2x32xf32>
    %310 = arith.addf %309, %308 : vector<2x32xf32>
    %311 = arith.divf %309, %310 : vector<2x32xf32>
    %312 = vector.extract_strided_slice %299 {offsets = [0, 256], sizes = [2, 32], strides = [1, 1]} : vector<2x512xf32> to vector<2x32xf32>
    %313 = math.tanh %312 : vector<2x32xf32>
    %314 = vector.extract_strided_slice %299 {offsets = [0, 384], sizes = [2, 32], strides = [1, 1]} : vector<2x512xf32> to vector<2x32xf32>
    %315 = arith.negf %314 : vector<2x32xf32>
    %316 = math.exp %315 : vector<2x32xf32>
    %cst_153 = arith.constant 1.000000e+00 : f32
    %317 = vector.broadcast %cst_153 : f32 to vector<2x32xf32>
    %318 = arith.addf %317, %316 : vector<2x32xf32>
    %319 = arith.divf %317, %318 : vector<2x32xf32>
    %320 = arith.mulf %311, %292 : vector<2x32xf32>
    %321 = arith.mulf %305, %313 : vector<2x32xf32>
    %322 = arith.addf %320, %321 : vector<2x32xf32>
    %323 = math.tanh %322 : vector<2x32xf32>
    %324 = arith.mulf %319, %323 : vector<2x32xf32>
    %325 = vector.extract_strided_slice %167 {offsets = [10, 0], sizes = [2, 512], strides = [1, 1]} : vector<16x512xf32> to vector<2x512xf32>
    %326 = arith.addf %325, %172 : vector<2x512xf32>
    %c0_154 = arith.constant 0 : index
    %c0_155 = arith.constant 0 : index
    %327 = vector.load %arg12[%c0_154, %c0_155] : memref<32x512xf32, #tpu.memory_space<vmem>>, vector<32x512xf32>
    %cst_156 = arith.constant dense<0.000000e+00> : vector<2x512xf32>
    %328 = tpu.matmul %324, %327, %cst_156 {dimension_numbers = #tpu.dot_dimension_numbers<[1], [0], [0], [1], [0, 0, 1, 1], [], []>} : vector<2x32xf32>, vector<32x512xf32>, vector<2x512xf32> -> vector<2x512xf32>
    %329 = arith.addf %326, %328 : vector<2x512xf32>
    %330 = vector.extract_strided_slice %329 {offsets = [0, 0], sizes = [2, 32], strides = [1, 1]} : vector<2x512xf32> to vector<2x32xf32>
    %331 = arith.negf %330 : vector<2x32xf32>
    %332 = math.exp %331 : vector<2x32xf32>
    %cst_157 = arith.constant 1.000000e+00 : f32
    %333 = vector.broadcast %cst_157 : f32 to vector<2x32xf32>
    %334 = arith.addf %333, %332 : vector<2x32xf32>
    %335 = arith.divf %333, %334 : vector<2x32xf32>
    %336 = vector.extract_strided_slice %329 {offsets = [0, 128], sizes = [2, 32], strides = [1, 1]} : vector<2x512xf32> to vector<2x32xf32>
    %337 = arith.negf %336 : vector<2x32xf32>
    %338 = math.exp %337 : vector<2x32xf32>
    %cst_158 = arith.constant 1.000000e+00 : f32
    %339 = vector.broadcast %cst_158 : f32 to vector<2x32xf32>
    %340 = arith.addf %339, %338 : vector<2x32xf32>
    %341 = arith.divf %339, %340 : vector<2x32xf32>
    %342 = vector.extract_strided_slice %329 {offsets = [0, 256], sizes = [2, 32], strides = [1, 1]} : vector<2x512xf32> to vector<2x32xf32>
    %343 = math.tanh %342 : vector<2x32xf32>
    %344 = vector.extract_strided_slice %329 {offsets = [0, 384], sizes = [2, 32], strides = [1, 1]} : vector<2x512xf32> to vector<2x32xf32>
    %345 = arith.negf %344 : vector<2x32xf32>
    %346 = math.exp %345 : vector<2x32xf32>
    %cst_159 = arith.constant 1.000000e+00 : f32
    %347 = vector.broadcast %cst_159 : f32 to vector<2x32xf32>
    %348 = arith.addf %347, %346 : vector<2x32xf32>
    %349 = arith.divf %347, %348 : vector<2x32xf32>
    %350 = arith.mulf %341, %322 : vector<2x32xf32>
    %351 = arith.mulf %335, %343 : vector<2x32xf32>
    %352 = arith.addf %350, %351 : vector<2x32xf32>
    %353 = math.tanh %352 : vector<2x32xf32>
    %354 = arith.mulf %349, %353 : vector<2x32xf32>
    %355 = vector.extract_strided_slice %167 {offsets = [12, 0], sizes = [2, 512], strides = [1, 1]} : vector<16x512xf32> to vector<2x512xf32>
    %356 = arith.addf %355, %172 : vector<2x512xf32>
    %c0_160 = arith.constant 0 : index
    %c0_161 = arith.constant 0 : index
    %357 = vector.load %arg12[%c0_160, %c0_161] : memref<32x512xf32, #tpu.memory_space<vmem>>, vector<32x512xf32>
    %cst_162 = arith.constant dense<0.000000e+00> : vector<2x512xf32>
    %358 = tpu.matmul %354, %357, %cst_162 {dimension_numbers = #tpu.dot_dimension_numbers<[1], [0], [0], [1], [0, 0, 1, 1], [], []>} : vector<2x32xf32>, vector<32x512xf32>, vector<2x512xf32> -> vector<2x512xf32>
    %359 = arith.addf %356, %358 : vector<2x512xf32>
    %360 = vector.extract_strided_slice %359 {offsets = [0, 0], sizes = [2, 32], strides = [1, 1]} : vector<2x512xf32> to vector<2x32xf32>
    %361 = arith.negf %360 : vector<2x32xf32>
    %362 = math.exp %361 : vector<2x32xf32>
    %cst_163 = arith.constant 1.000000e+00 : f32
    %363 = vector.broadcast %cst_163 : f32 to vector<2x32xf32>
    %364 = arith.addf %363, %362 : vector<2x32xf32>
    %365 = arith.divf %363, %364 : vector<2x32xf32>
    %366 = vector.extract_strided_slice %359 {offsets = [0, 128], sizes = [2, 32], strides = [1, 1]} : vector<2x512xf32> to vector<2x32xf32>
    %367 = arith.negf %366 : vector<2x32xf32>
    %368 = math.exp %367 : vector<2x32xf32>
    %cst_164 = arith.constant 1.000000e+00 : f32
    %369 = vector.broadcast %cst_164 : f32 to vector<2x32xf32>
    %370 = arith.addf %369, %368 : vector<2x32xf32>
    %371 = arith.divf %369, %370 : vector<2x32xf32>
    %372 = vector.extract_strided_slice %359 {offsets = [0, 256], sizes = [2, 32], strides = [1, 1]} : vector<2x512xf32> to vector<2x32xf32>
    %373 = math.tanh %372 : vector<2x32xf32>
    %374 = vector.extract_strided_slice %359 {offsets = [0, 384], sizes = [2, 32], strides = [1, 1]} : vector<2x512xf32> to vector<2x32xf32>
    %375 = arith.negf %374 : vector<2x32xf32>
    %376 = math.exp %375 : vector<2x32xf32>
    %cst_165 = arith.constant 1.000000e+00 : f32
    %377 = vector.broadcast %cst_165 : f32 to vector<2x32xf32>
    %378 = arith.addf %377, %376 : vector<2x32xf32>
    %379 = arith.divf %377, %378 : vector<2x32xf32>
    %380 = arith.mulf %371, %352 : vector<2x32xf32>
    %381 = arith.mulf %365, %373 : vector<2x32xf32>
    %382 = arith.addf %380, %381 : vector<2x32xf32>
    %383 = math.tanh %382 : vector<2x32xf32>
    %384 = arith.mulf %379, %383 : vector<2x32xf32>
    %385 = vector.extract_strided_slice %167 {offsets = [14, 0], sizes = [2, 512], strides = [1, 1]} : vector<16x512xf32> to vector<2x512xf32>
    %386 = arith.addf %385, %172 : vector<2x512xf32>
    %c0_166 = arith.constant 0 : index
    %c0_167 = arith.constant 0 : index
    %387 = vector.load %arg12[%c0_166, %c0_167] : memref<32x512xf32, #tpu.memory_space<vmem>>, vector<32x512xf32>
    %cst_168 = arith.constant dense<0.000000e+00> : vector<2x512xf32>
    %388 = tpu.matmul %384, %387, %cst_168 {dimension_numbers = #tpu.dot_dimension_numbers<[1], [0], [0], [1], [0, 0, 1, 1], [], []>} : vector<2x32xf32>, vector<32x512xf32>, vector<2x512xf32> -> vector<2x512xf32>
    %389 = arith.addf %386, %388 : vector<2x512xf32>
    %390 = vector.extract_strided_slice %389 {offsets = [0, 0], sizes = [2, 32], strides = [1, 1]} : vector<2x512xf32> to vector<2x32xf32>
    %391 = arith.negf %390 : vector<2x32xf32>
    %392 = math.exp %391 : vector<2x32xf32>
    %cst_169 = arith.constant 1.000000e+00 : f32
    %393 = vector.broadcast %cst_169 : f32 to vector<2x32xf32>
    %394 = arith.addf %393, %392 : vector<2x32xf32>
    %395 = arith.divf %393, %394 : vector<2x32xf32>
    %396 = vector.extract_strided_slice %389 {offsets = [0, 128], sizes = [2, 32], strides = [1, 1]} : vector<2x512xf32> to vector<2x32xf32>
    %397 = arith.negf %396 : vector<2x32xf32>
    %398 = math.exp %397 : vector<2x32xf32>
    %cst_170 = arith.constant 1.000000e+00 : f32
    %399 = vector.broadcast %cst_170 : f32 to vector<2x32xf32>
    %400 = arith.addf %399, %398 : vector<2x32xf32>
    %401 = arith.divf %399, %400 : vector<2x32xf32>
    %402 = vector.extract_strided_slice %389 {offsets = [0, 256], sizes = [2, 32], strides = [1, 1]} : vector<2x512xf32> to vector<2x32xf32>
    %403 = math.tanh %402 : vector<2x32xf32>
    %404 = vector.extract_strided_slice %389 {offsets = [0, 384], sizes = [2, 32], strides = [1, 1]} : vector<2x512xf32> to vector<2x32xf32>
    %405 = arith.negf %404 : vector<2x32xf32>
    %406 = math.exp %405 : vector<2x32xf32>
    %cst_171 = arith.constant 1.000000e+00 : f32
    %407 = vector.broadcast %cst_171 : f32 to vector<2x32xf32>
    %408 = arith.addf %407, %406 : vector<2x32xf32>
    %409 = arith.divf %407, %408 : vector<2x32xf32>
    %410 = arith.mulf %401, %382 : vector<2x32xf32>
    %411 = arith.mulf %395, %403 : vector<2x32xf32>
    %412 = arith.addf %410, %411 : vector<2x32xf32>
    %413 = math.tanh %412 : vector<2x32xf32>
    %414 = arith.mulf %409, %413 : vector<2x32xf32>
    %415 = tpu.concatenate %204, %234, %264, %294, %324, %354, %384, %414 in 1 : vector<2x32xf32>, vector<2x32xf32>, vector<2x32xf32>, vector<2x32xf32>, vector<2x32xf32>, vector<2x32xf32>, vector<2x32xf32>, vector<2x32xf32> -> vector<2x256xf32>
    %c0_172 = arith.constant 0 : index
    %c0_173 = arith.constant 0 : index
    %416 = vector.load %arg14[%c0_172, %c0_173] : memref<256x128xf32, #tpu.memory_space<vmem>>, vector<256x128xf32>
    %cst_174 = arith.constant dense<0.000000e+00> : vector<2x128xf32>
    %417 = tpu.matmul %415, %416, %cst_174 {dimension_numbers = #tpu.dot_dimension_numbers<[1], [0], [0], [1], [0, 0, 1, 1], [], []>} : vector<2x256xf32>, vector<256x128xf32>, vector<2x128xf32> -> vector<2x128xf32>
    %c0_175 = arith.constant 0 : index
    %c0_176 = arith.constant 0 : index
    %418 = vector.load %arg15[%c0_175, %c0_176] : memref<1x128xf32, #tpu.memory_space<vmem>>, vector<1x128xf32>
    %419 = vector.broadcast %418 : vector<1x128xf32> to vector<2x128xf32>
    %420 = arith.addf %417, %419 : vector<2x128xf32>
    %c0_177 = arith.constant 0 : index
    %c0_178 = arith.constant 0 : index
    %421 = vector.load %arg18[%c0_177, %c0_178] : memref<2x128xf32, #tpu.memory_space<vmem>>, vector<2x128xf32>
    tpu.vector_store %arg18[%c0_177, %c0_178], %420 {strides = array<i32>} : memref<2x128xf32, #tpu.memory_space<vmem>>, vector<2x128xf32>,
    %422 = tpu.concatenate %414, %412 in 1 : vector<2x32xf32>, vector<2x32xf32> -> vector<2x64xf32>
    %c0_179 = arith.constant 0 : index
    %c0_180 = arith.constant 0 : index
    %423 = vector.load %arg19[%c0_179, %c0_180] : memref<2x64xf32, #tpu.memory_space<vmem>>, vector<2x64xf32>
    tpu.vector_store %arg19[%c0_179, %c0_180], %422 {strides = array<i32>} : memref<2x64xf32, #tpu.memory_space<vmem>>, vector<2x64xf32>,
    return
  }
  func.func @transform_0(%arg0: i32, %arg1: memref<2x8xi32, #tpu.memory_space<smem>>) -> (i32, i32) {
    %c0_i32 = arith.constant 0 : i32
    %c0_i32_0 = arith.constant 0 : i32
    %c0_i32_1 = arith.constant 0 : i32
    return %c0_i32, %c0_i32_0 : i32, i32
  }
  func.func @transform_1(%arg0: i32, %arg1: memref<2x8xi32, #tpu.memory_space<smem>>) -> (i32, i32, i32) {
    %c0_i32 = arith.constant 0 : i32
    %c0_i32_0 = arith.constant 0 : i32
    %c0_i32_1 = arith.constant 0 : i32
    %c0_i32_2 = arith.constant 0 : i32
    return %c0_i32, %c0_i32_0, %c0_i32_1 : i32, i32, i32
  }
  func.func @transform_2(%arg0: i32, %arg1: memref<2x8xi32, #tpu.memory_space<smem>>) -> (i32, i32) {
    %c0_i32 = arith.constant 0 : i32
    %c0_i32_0 = arith.constant 0 : i32
    %c0_i32_1 = arith.constant 0 : i32
    return %c0_i32, %c0_i32_0 : i32, i32
  }
  func.func @transform_3(%arg0: i32, %arg1: memref<2x8xi32, #tpu.memory_space<smem>>) -> (i32, i32, i32) {
    %c0_i32 = arith.constant 0 : i32
    %c0_i32_0 = arith.constant 0 : i32
    %c0_i32_1 = arith.constant 0 : i32
    %c0_i32_2 = arith.constant 0 : i32
    return %c0_i32, %c0_i32_0, %c0_i32_1 : i32, i32, i32
  }
  func.func @transform_4(%arg0: i32, %arg1: memref<2x8xi32, #tpu.memory_space<smem>>) -> (i32, i32) {
    %c0_i32 = arith.constant 0 : i32
    %c0_i32_0 = arith.constant 0 : i32
    %c0_i32_1 = arith.constant 0 : i32
    return %c0_i32, %c0_i32_0 : i32, i32
  }
  func.func @transform_5(%arg0: i32, %arg1: memref<2x8xi32, #tpu.memory_space<smem>>) -> (i32, i32) {
    %c0_i32 = arith.constant 0 : i32
    %c0_i32_0 = arith.constant 0 : i32
    %c0_i32_1 = arith.constant 0 : i32
    return %c0_i32, %c0_i32_0 : i32, i32
  }
  func.func @transform_6(%arg0: i32, %arg1: memref<2x8xi32, #tpu.memory_space<smem>>) -> (i32, i32) {
    %c0_i32 = arith.constant 0 : i32
    %c0_i32_0 = arith.constant 0 : i32
    %c0_i32_1 = arith.constant 0 : i32
    return %c0_i32, %c0_i32_0 : i32, i32
  }
  func.func @transform_7(%arg0: i32, %arg1: memref<2x8xi32, #tpu.memory_space<smem>>) -> (i32, i32) {
    %c0_i32 = arith.constant 0 : i32
    %c0_i32_0 = arith.constant 0 : i32
    %c0_i32_1 = arith.constant 0 : i32
    return %c0_i32, %c0_i32_0 : i32, i32
  }
  func.func @transform_8(%arg0: i32, %arg1: memref<2x8xi32, #tpu.memory_space<smem>>) -> (i32, i32) {
    %c0_i32 = arith.constant 0 : i32
    %c0_i32_0 = arith.constant 0 : i32
    %c0_i32_1 = arith.constant 0 : i32
    return %c0_i32, %c0_i32_0 : i32, i32
  }
  func.func @transform_9(%arg0: i32, %arg1: memref<2x8xi32, #tpu.memory_space<smem>>) -> (i32, i32) {
    %c0_i32 = arith.constant 0 : i32
    %c0_i32_0 = arith.constant 0 : i32
    %c0_i32_1 = arith.constant 0 : i32
    return %c0_i32, %c0_i32_0 : i32, i32
  }
  func.func @transform_10(%arg0: i32, %arg1: memref<2x8xi32, #tpu.memory_space<smem>>) -> (i32, i32) {
    %c0_i32 = arith.constant 0 : i32
    %c0_i32_0 = arith.constant 0 : i32
    %c0_i32_1 = arith.constant 0 : i32
    return %c0_i32, %c0_i32_0 : i32, i32
  }
  func.func @transform_11(%arg0: i32, %arg1: memref<2x8xi32, #tpu.memory_space<smem>>) -> (i32, i32) {
    %c0_i32 = arith.constant 0 : i32
    %c0_i32_0 = arith.constant 0 : i32
    %c0_i32_1 = arith.constant 0 : i32
    return %c0_i32, %c0_i32_0 : i32, i32
  }
  func.func @transform_12(%arg0: i32, %arg1: memref<2x8xi32, #tpu.memory_space<smem>>) -> (i32, i32) {
    %c0_i32 = arith.constant 0 : i32
    %c0_i32_0 = arith.constant 0 : i32
    %c0_i32_1 = arith.constant 0 : i32
    return %c0_i32, %c0_i32_0 : i32, i32
  }
  func.func @transform_13(%arg0: i32, %arg1: memref<2x8xi32, #tpu.memory_space<smem>>) -> (i32, i32) {
    %c0_i32 = arith.constant 0 : i32
    %c0_i32_0 = arith.constant 0 : i32
    %c0_i32_1 = arith.constant 0 : i32
    return %c0_i32, %c0_i32_0 : i32, i32
  }
  func.func @transform_14(%arg0: i32, %arg1: memref<2x8xi32, #tpu.memory_space<smem>>) -> (i32, i32) {
    %c0_i32 = arith.constant 0 : i32
    %c0_i32_0 = arith.constant 0 : i32
    %c0_i32_1 = arith.constant 0 : i32
    return %c0_i32, %c0_i32_0 : i32, i32
  }
  func.func @transform_15(%arg0: i32, %arg1: memref<2x8xi32, #tpu.memory_space<smem>>) -> (i32, i32) {
    %c0_i32 = arith.constant 0 : i32
    %c0_i32_0 = arith.constant 0 : i32
    %c0_i32_1 = arith.constant 0 : i32
    return %c0_i32, %c0_i32_0 : i32, i32
  }
  func.func @transform_16(%arg0: i32, %arg1: memref<2x8xi32, #tpu.memory_space<smem>>) -> (i32, i32) {
    %c0_i32 = arith.constant 0 : i32
    %c0_i32_0 = arith.constant 0 : i32
    %c0_i32_1 = arith.constant 0 : i32
    return %c0_i32, %c0_i32_0 : i32, i32
  }
  func.func @transform_17(%arg0: i32, %arg1: memref<2x8xi32, #tpu.memory_space<smem>>) -> (i32, i32) {
    %c0_i32 = arith.constant 0 : i32
    %c0_i32_0 = arith.constant 0 : i32
    %c0_i32_1 = arith.constant 0 : i32
    return %c0_i32, %c0_i32_0 : i32, i32
  }
}

</mosaic_0001>

<llo_original>
// kernel: tile.18
$region0: #{tile.18}
  #allocation0 [shape = 's32[1]{0}', space=sflag, size = 0x4, scoped, tag = 'scoped memory for tile.18']
  %s0 = inlined_call_operand.vmem [shape: f32[8], index: 0, kind: input, shape index: {}]
  %s1 = inlined_call_operand.vmem [shape: f32[16,8], index: 1, kind: output, shape index: {}]
  // Predicated region
  $region2: #{tile.18} parent=0 // pred_check
    _
  $region3: #{tile.18} parent=0 // pred_check_branch
    %3 = sbr.rel (0) target = $region5
  $region4: #{tile.18} parent=0 // pred_region
    _
  $region5: #{tile.18} parent=0 // pred_fallthru
    _
  %v4 = vld [vmem:[%s0] ss:$0 sm:$0xff]
  %5 = vst [vmem:[%s1] sm:$0xff] %v4
  %s6 = scalar_lea.vmem %s1, 8
  %7 = vst [vmem:[%s6] sm:$0xff] %v4

// kernel: tile.19
$region0: #{tile.19}
  %s0 = inlined_call_operand.vmem [shape: f32[16,8], index: 0, kind: input, shape index: {}]
  %s1 = inlined_call_operand.vmem [shape: f32[1,128], index: 1, kind: output, shape index: {}]
  $region1: #{tile.19} parent=0
    #allocation0 [shape = 'u8[4096]{0}', space=vmem, size = 0x1000, scoped, tag = 'scoped mem for output reshape']
    %v2 = vld [vmem:[%s0] sm:$0x1]
    %vm3 = vcmask 64512
    %4 = vst.msk [vmem:[#allocation0] sm:$0x1] %vm3, %v2
    %s5 = scalar_lea.vmem %s0, 15
    %v6 = vld [vmem:[%s5] sm:$0x1]
    %7 = vrot.lane.b32.xlu0 %v6, 120
    %v8 = vpop.permute.xlu0 %7
    %vm9 = vcmask 1048512
    %10 = vst.msk [vmem:[#allocation0] sm:$0x1] %vm9, %v8
    %s11 = scalar_lea.vmem %s0, 14
    %v12 = vld [vmem:[%s11] sm:$0x1]
    %13 = vrot.lane.b32.xlu0 %v12, 112
    %v14 = vpop.permute.xlu0 %13
    %vm15 = vcmask 982912
    %16 = vst.msk [vmem:[#allocation0] sm:$0x1] %vm15, %v14
    %s17 = scalar_lea.vmem %s0, 13
    %v18 = vld [vmem:[%s17] sm:$0x1]
    %19 = vrot.lane.b32.xlu0 %v18, 104
    %v20 = vpop.permute.xlu0 %19
    %vm21 = vcmask 917312
    %22 = vst.msk [vmem:[#allocation0] sm:$0x1] %vm21, %v20
    %s23 = scalar_lea.vmem %s0, 12
    %v24 = vld [vmem:[%s23] sm:$0x1]
    %25 = vrot.lane.b32.xlu0 %v24, 96
    %v26 = vpop.permute.xlu0 %25
    %vm27 = vcmask 851712
    %28 = vst.msk [vmem:[#allocation0] sm:$0x1] %vm27, %v26
    %s29 = scalar_lea.vmem %s0, 11
    %v30 = vld [vmem:[%s29] sm:$0x1]
    %31 = vrot.lane.b32.xlu0 %v30, 88
    %v32 = vpop.permute.xlu0 %31
    %vm33 = vcmask 786112
    %34 = vst.msk [vmem:[#allocation0] sm:$0x1] %vm33, %v32
    %s35 = scalar_lea.vmem %s0, 10
    %v36 = vld [vmem:[%s35] sm:$0x1]
    %37 = vrot.lane.b32.xlu0 %v36, 80
    %v38 = vpop.permute.xlu0 %37
    %vm39 = vcmask 720512
    %40 = vst.msk [vmem:[#allocation0] sm:$0x1] %vm39, %v38
    %s41 = scalar_lea.vmem %s0, 9
    %v42 = vld [vmem:[%s41] sm:$0x1]
    %43 = vrot.lane.b32.xlu0 %v42, 72
    %v44 = vpop.permute.xlu0 %43
    %vm45 = vcmask 654912
    %46 = vst.msk [vmem:[#allocation0] sm:$0x1] %vm45, %v44
    %s47 = scalar_lea.vmem %s0, 8
    %v48 = vld [vmem:[%s47] sm:$0x1]
    %49 = vrot.lane.b32.xlu0 %v48, 64
    %v50 = vpop.permute.xlu0 %49
    %vm51 = vcmask 589312
    %52 = vst.msk [vmem:[#allocation0] sm:$0x1] %vm51, %v50
    %s53 = scalar_lea.vmem %s0, 7
    %v54 = vld [vmem:[%s53] sm:$0x1]
    %55 = vrot.lane.b32.xlu0 %v54, 56
    %v56 = vpop.permute.xlu0 %55
    %vm57 = vcmask 523712
    %58 = vst.msk [vmem:[#allocation0] sm:$0x1] %vm57, %v56
    %s59 = scalar_lea.vmem %s0, 6
    %v60 = vld [vmem:[%s59] sm:$0x1]
    %61 = vrot.lane.b32.xlu0 %v60, 48
    %v62 = vpop.permute.xlu0 %61
    %vm63 = vcmask 458112
    %64 = vst.msk [vmem:[#allocation0] sm:$0x1] %vm63, %v62
    %s65 = scalar_lea.vmem %s0, 5
    %v66 = vld [vmem:[%s65] sm:$0x1]
    %67 = vrot.lane.b32.xlu0 %v66, 40
    %v68 = vpop.permute.xlu0 %67
    %vm69 = vcmask 392512
    %70 = vst.msk [vmem:[#allocation0] sm:$0x1] %vm69, %v68
    %s71 = scalar_lea.vmem %s0, 4
    %v72 = vld [vmem:[%s71] sm:$0x1]
    %73 = vrot.lane.b32.xlu0 %v72, 32
    %v74 = vpop.permute.xlu0 %73
    %vm75 = vcmask 326912
    %76 = vst.msk [vmem:[#allocation0] sm:$0x1] %vm75, %v74
    %s77 = scalar_lea.vmem %s0, 3
    %v78 = vld [vmem:[%s77] sm:$0x1]
    %79 = vrot.lane.b32.xlu0 %v78, 24
    %v80 = vpop.permute.xlu0 %79
    %vm81 = vcmask 261312
    %82 = vst.msk [vmem:[#allocation0] sm:$0x1] %vm81, %v80
    %s83 = scalar_lea.vmem %s0, 2
    %v84 = vld [vmem:[%s83] sm:$0x1]
    %85 = vrot.lane.b32.xlu0 %v84, 16
    %v86 = vpop.permute.xlu0 %85
    %vm87 = vcmask 195712
    %88 = vst.msk [vmem:[#allocation0] sm:$0x1] %vm87, %v86
    %s89 = scalar_lea.vmem %s0, 1
    %v90 = vld [vmem:[%s89] sm:$0x1]
    %91 = vrot.lane.b32.xlu0 %v90, 8
    %v92 = vpop.permute.xlu0 %91
    %vm93 = vcmask 130112
    %94 = vst.msk [vmem:[#allocation0] sm:$0x1] %vm93, %v92
    %s96 = sshll.u32 1, 1
    %s97 = ssub.s32 %s96, 1
    %v99 = vld [vmem:[#allocation0] sm:%s97]
    %s100 = sshll.u32 1, 1
    %s101 = ssub.s32 %s100, 1
    %102 = vst [vmem:[%s1] sm:%s101] %v99

// kernel: tile.28
$region0: #{tile.28}
  #allocation0 [shape = 's32[1]{0}', space=sflag, size = 0x4, scoped, tag = 'scoped memory for tile.28']
  %s0 = inlined_call_operand.vmem [shape: f32[16], index: 0, kind: input, shape index: {}]
  %s1 = inlined_call_operand.vmem [shape: f32[8,16], index: 1, kind: output, shape index: {}]
  // Predicated region
  $region2: #{tile.28} parent=0 // pred_check
    _
  $region3: #{tile.28} parent=0 // pred_check_branch
    %3 = sbr.rel (0) target = $region5
  $region4: #{tile.28} parent=0 // pred_region
    _
  $region5: #{tile.28} parent=0 // pred_fallthru
    _
  %v4 = vld [vmem:[%s0] ss:$0 sm:$0xff]
  %5 = vst [vmem:[%s1] sm:$0xff] %v4

// kernel: tile.29
$region0: #{tile.29}
  %s0 = inlined_call_operand.vmem [shape: f32[8,16], index: 0, kind: input, shape index: {}]
  %s1 = inlined_call_operand.vmem [shape: f32[1,128], index: 1, kind: output, shape index: {}]
  $region1: #{tile.29} parent=0
    #allocation0 [shape = 'u8[4096]{0}', space=vmem, size = 0x1000, scoped, tag = 'scoped mem for output reshape']
    %v2 = vld [vmem:[%s0] sm:$0x1]
    %vm3 = vcmask 130048
    %4 = vst.msk [vmem:[#allocation0] sm:$0x1] %vm3, %v2
    %s5 = scalar_lea.vmem %s0, 7
    %v6 = vld [vmem:[%s5] sm:$0x1]
    %7 = vrot.lane.b32.xlu0 %v6, 112
    %v8 = vpop.permute.xlu0 %7
    %vm9 = vcmask 1048448
    %10 = vst.msk [vmem:[#allocation0] sm:$0x1] %vm9, %v8
    %s11 = scalar_lea.vmem %s0, 6
    %v12 = vld [vmem:[%s11] sm:$0x1]
    %13 = vrot.lane.b32.xlu0 %v12, 96
    %v14 = vpop.permute.xlu0 %13
    %vm15 = vcmask 917248
    %16 = vst.msk [vmem:[#allocation0] sm:$0x1] %vm15, %v14
    %s17 = scalar_lea.vmem %s0, 5
    %v18 = vld [vmem:[%s17] sm:$0x1]
    %19 = vrot.lane.b32.xlu0 %v18, 80
    %v20 = vpop.permute.xlu0 %19
    %vm21 = vcmask 786048
    %22 = vst.msk [vmem:[#allocation0] sm:$0x1] %vm21, %v20
    %s23 = scalar_lea.vmem %s0, 4
    %v24 = vld [vmem:[%s23] sm:$0x1]
    %25 = vrot.lane.b32.xlu0 %v24, 64
    %v26 = vpop.permute.xlu0 %25
    %vm27 = vcmask 654848
    %28 = vst.msk [vmem:[#allocation0] sm:$0x1] %vm27, %v26
    %s29 = scalar_lea.vmem %s0, 3
    %v30 = vld [vmem:[%s29] sm:$0x1]
    %31 = vrot.lane.b32.xlu0 %v30, 48
    %v32 = vpop.permute.xlu0 %31
    %vm33 = vcmask 523648
    %34 = vst.msk [vmem:[#allocation0] sm:$0x1] %vm33, %v32
    %s35 = scalar_lea.vmem %s0, 2
    %v36 = vld [vmem:[%s35] sm:$0x1]
    %37 = vrot.lane.b32.xlu0 %v36, 32
    %v38 = vpop.permute.xlu0 %37
    %vm39 = vcmask 392448
    %40 = vst.msk [vmem:[#allocation0] sm:$0x1] %vm39, %v38
    %s41 = scalar_lea.vmem %s0, 1
    %v42 = vld [vmem:[%s41] sm:$0x1]
    %43 = vrot.lane.b32.xlu0 %v42, 16
    %v44 = vpop.permute.xlu0 %43
    %vm45 = vcmask 261248
    %46 = vst.msk [vmem:[#allocation0] sm:$0x1] %vm45, %v44
    %s48 = sshll.u32 1, 1
    %s49 = ssub.s32 %s48, 1
    %v51 = vld [vmem:[#allocation0] sm:%s49]
    %s52 = sshll.u32 1, 1
    %s53 = ssub.s32 %s52, 1
    %54 = vst [vmem:[%s1] sm:%s53] %v51

// kernel: finetune_synth_forward.1
$region0: #{finetune_synth_forward.1}
  #allocation0 [shape = 'u32[]', space=smem, size = 0x4, offset = 0x4, fixed_abs, tag = 'smem constant byte address 0x4 - core index']
  #allocation1 [shape = 'u32[144,128]{1,0:T(1,128)}', space=vmem, size = 0x12000, scoped, tag = 'internal scratch']
  #allocation2 [shape = 's32[1]{0}', space=sflag, size = 0x4, scoped, tag = 'scoped memory for finetune_synth_forward.1']
  #allocation3 [shape = 'u8[1024]{0}', space=smem, size = 0x400, scoped, tag = 'prefetched SMEM operand 0']
  %s0 = inlined_call_operand.vmem [shape: s32[2,8], index: 0, kind: input, shape index: {}]
  %s1 = inlined_call_operand.vmem [shape: f32[36,144], index: 1, kind: input, shape index: {}]
  %s2 = inlined_call_operand.vmem [shape: f32[3,144,128], index: 2, kind: input, shape index: {}]
  %s3 = inlined_call_operand.vmem [shape: f32[1,128], index: 3, kind: input, shape index: {}]
  %s4 = inlined_call_operand.vmem [shape: f32[3,144,128], index: 4, kind: input, shape index: {}]
  %s5 = inlined_call_operand.vmem [shape: f32[1,128], index: 5, kind: input, shape index: {}]
  %s6 = inlined_call_operand.vmem [shape: f32[2048,32], index: 6, kind: input, shape index: {}]
  %s7 = inlined_call_operand.vmem [shape: f32[1,32], index: 7, kind: input, shape index: {}]
  %s8 = inlined_call_operand.vmem [shape: f32[16,16], index: 8, kind: input, shape index: {}]
  %s9 = inlined_call_operand.vmem [shape: f32[16,512], index: 9, kind: input, shape index: {}]
  %s10 = inlined_call_operand.vmem [shape: f32[32,512], index: 10, kind: input, shape index: {}]
  %s11 = inlined_call_operand.vmem [shape: f32[32,512], index: 11, kind: input, shape index: {}]
  %s12 = inlined_call_operand.vmem [shape: f32[1,512], index: 12, kind: input, shape index: {}]
  %s13 = inlined_call_operand.vmem [shape: f32[256,128], index: 13, kind: input, shape index: {}]
  %s14 = inlined_call_operand.vmem [shape: f32[1,128], index: 14, kind: input, shape index: {}]
  %s15 = inlined_call_operand.vmem [shape: f32[2,32], index: 15, kind: input, shape index: {}, may-alias: {15,16}]
  %s16 = inlined_call_operand.vmem [shape: f32[2,32], index: 16, kind: input, shape index: {}, may-alias: {15,16}]
  %s17 = inlined_call_operand.vmem [shape: f32[2,128], index: 17, kind: output, shape index: {0}]
  %s18 = inlined_call_operand.vmem [shape: f32[2,64], index: 18, kind: output, shape index: {1}]
  %19 = xla_tuple %s17, %s18
  %s20 = sld [smem:[#allocation0]]
  $region82: #{finetune_synth_forward.1} parent=0
    _
  %s22 = ssub.s32 1, %s20
  %s23 = scalar_select 0, %s22, %s20
  %s24 = sshll.u32 %s0, 4
  %s25 = int_to_ptr.vmem [resolvable:$true] %s24
  %27 = dma.vmem_to_smem %s25, 32, [#allocation3], [#allocation2]
  %28 = dma.done [#allocation2], 32
  %29 = sfence
  // Predicated region
  $region2: #{finetune_synth_forward.1} parent=0 // pred_check
    _
  $region3: #{finetune_synth_forward.1} parent=0 // pred_check_branch
    %31 = sbr.rel (0) target = $region5
  $region4: #{finetune_synth_forward.1} parent=0 // pred_region
    _
  $region5: #{finetune_synth_forward.1} parent=0 // pred_fallthru
    _
  // Predicated region
  $region6: #{finetune_synth_forward.1} parent=0 // pred_check
    _
  $region7: #{finetune_synth_forward.1} parent=0 // pred_check_branch
    %33 = sbr.rel (0) target = $region9
  $region8: #{finetune_synth_forward.1} parent=0 // pred_region
    _
  $region9: #{finetune_synth_forward.1} parent=0 // pred_fallthru
    _
  // Predicated region
  $region10: #{finetune_synth_forward.1} parent=0 // pred_check
    _
  $region11: #{finetune_synth_forward.1} parent=0 // pred_check_branch
    %35 = sbr.rel (0) target = $region13
  $region12: #{finetune_synth_forward.1} parent=0 // pred_region
    _
  $region13: #{finetune_synth_forward.1} parent=0 // pred_fallthru
    _
  // Predicated region
  $region14: #{finetune_synth_forward.1} parent=0 // pred_check
    _
  $region15: #{finetune_synth_forward.1} parent=0 // pred_check_branch
    %37 = sbr.rel (0) target = $region17
  $region16: #{finetune_synth_forward.1} parent=0 // pred_region
    _
  $region17: #{finetune_synth_forward.1} parent=0 // pred_fallthru
    _
  // Predicated region
  $region18: #{finetune_synth_forward.1} parent=0 // pred_check
    _
  $region19: #{finetune_synth_forward.1} parent=0 // pred_check_branch
    %39 = sbr.rel (0) target = $region21
  $region20: #{finetune_synth_forward.1} parent=0 // pred_region
    _
  $region21: #{finetune_synth_forward.1} parent=0 // pred_fallthru
    _
  // Predicated region
  $region22: #{finetune_synth_forward.1} parent=0 // pred_check
    _
  $region23: #{finetune_synth_forward.1} parent=0 // pred_check_branch
    %41 = sbr.rel (0) target = $region25
  $region24: #{finetune_synth_forward.1} parent=0 // pred_region
    _
  $region25: #{finetune_synth_forward.1} parent=0 // pred_fallthru
    _
  // Predicated region
  $region26: #{finetune_synth_forward.1} parent=0 // pred_check
    _
  $region27: #{finetune_synth_forward.1} parent=0 // pred_check_branch
    %43 = sbr.rel (0) target = $region29
  $region28: #{finetune_synth_forward.1} parent=0 // pred_region
    _
  $region29: #{finetune_synth_forward.1} parent=0 // pred_fallthru
    _
  // Predicated region
  $region30: #{finetune_synth_forward.1} parent=0 // pred_check
    _
  $region31: #{finetune_synth_forward.1} parent=0 // pred_check_branch
    %45 = sbr.rel (0) target = $region33
  $region32: #{finetune_synth_forward.1} parent=0 // pred_region
    _
  $region33: #{finetune_synth_forward.1} parent=0 // pred_fallthru
    _
  // Predicated region
  $region34: #{finetune_synth_forward.1} parent=0 // pred_check
    _
  $region35: #{finetune_synth_forward.1} parent=0 // pred_check_branch
    %47 = sbr.rel (0) target = $region37
  $region36: #{finetune_synth_forward.1} parent=0 // pred_region
    _
  $region37: #{finetune_synth_forward.1} parent=0 // pred_fallthru
    _
  // Predicated region
  $region38: #{finetune_synth_forward.1} parent=0 // pred_check
    _
  $region39: #{finetune_synth_forward.1} parent=0 // pred_check_branch
    %49 = sbr.rel (0) target = $region41
  $region40: #{finetune_synth_forward.1} parent=0 // pred_region
    _
  $region41: #{finetune_synth_forward.1} parent=0 // pred_fallthru
    _
  // Predicated region
  $region42: #{finetune_synth_forward.1} parent=0 // pred_check
    _
  $region43: #{finetune_synth_forward.1} parent=0 // pred_check_branch
    %51 = sbr.rel (0) target = $region45
  $region44: #{finetune_synth_forward.1} parent=0 // pred_region
    _
  $region45: #{finetune_synth_forward.1} parent=0 // pred_fallthru
    _
  // Predicated region
  $region46: #{finetune_synth_forward.1} parent=0 // pred_check
    _
  $region47: #{finetune_synth_forward.1} parent=0 // pred_check_branch
    %53 = sbr.rel (0) target = $region49
  $region48: #{finetune_synth_forward.1} parent=0 // pred_region
    _
  $region49: #{finetune_synth_forward.1} parent=0 // pred_fallthru
    _
  // Predicated region
  $region50: #{finetune_synth_forward.1} parent=0 // pred_check
    _
  $region51: #{finetune_synth_forward.1} parent=0 // pred_check_branch
    %55 = sbr.rel (0) target = $region53
  $region52: #{finetune_synth_forward.1} parent=0 // pred_region
    _
  $region53: #{finetune_synth_forward.1} parent=0 // pred_fallthru
    _
  // Predicated region
  $region54: #{finetune_synth_forward.1} parent=0 // pred_check
    _
  $region55: #{finetune_synth_forward.1} parent=0 // pred_check_branch
    %57 = sbr.rel (0) target = $region57
  $region56: #{finetune_synth_forward.1} parent=0 // pred_region
    _
  $region57: #{finetune_synth_forward.1} parent=0 // pred_fallthru
    _
  // Predicated region
  $region58: #{finetune_synth_forward.1} parent=0 // pred_check
    _
  $region59: #{finetune_synth_forward.1} parent=0 // pred_check_branch
    %59 = sbr.rel (0) target = $region61
  $region60: #{finetune_synth_forward.1} parent=0 // pred_region
    _
  $region61: #{finetune_synth_forward.1} parent=0 // pred_fallthru
    _
  // Predicated region
  $region62: #{finetune_synth_forward.1} parent=0 // pred_check
    _
  $region63: #{finetune_synth_forward.1} parent=0 // pred_check_branch
    %61 = sbr.rel (0) target = $region65
  $region64: #{finetune_synth_forward.1} parent=0 // pred_region
    _
  $region65: #{finetune_synth_forward.1} parent=0 // pred_fallthru
    _
  %v62 = vld [vmem:[%s1] sm:$0xff]
  %v63 = vld [vmem:[%s1 + $0x8] sm:$0xff]
  %v64 = vld [vmem:[%s1 + $0x10] sm:$0xff]
  %v65 = vld [vmem:[%s1 + $0x18] sm:$0xff]
  %v66 = vld [vmem:[%s1 + $0x20] sm:$0xff]
  %v67 = vld [vmem:[%s1 + $0x28] sm:$0xff]
  %v68 = vld [vmem:[%s1 + $0x30] sm:$0xff]
  %v69 = vld [vmem:[%s1 + $0x38] sm:$0xff]
  %v70 = vld [vmem:[%s1 + $0x40] sm:$0xf]
  %v71 = vld [vmem:[%s1 + $0x48] sm:$0xf]
  %v72 = vld [vmem:[%s2] sm:$0xff]
  %v73 = vld [vmem:[%s2 + $0x8] sm:$0xff]
  %v74 = vld [vmem:[%s2 + $0x10] sm:$0xff]
  %v75 = vld [vmem:[%s2 + $0x18] sm:$0xff]
  %v76 = vld [vmem:[%s2 + $0x20] sm:$0xff]
  %v77 = vld [vmem:[%s2 + $0x28] sm:$0xff]
  %v78 = vld [vmem:[%s2 + $0x30] sm:$0xff]
  %v79 = vld [vmem:[%s2 + $0x38] sm:$0xff]
  %v80 = vld [vmem:[%s2 + $0x40] sm:$0xff]
  %v81 = vld [vmem:[%s2 + $0x48] sm:$0xff]
  %v82 = vld [vmem:[%s2 + $0x50] sm:$0xff]
  %v83 = vld [vmem:[%s2 + $0x58] sm:$0xff]
  %v84 = vld [vmem:[%s2 + $0x60] sm:$0xff]
  %v85 = vld [vmem:[%s2 + $0x68] sm:$0xff]
  %v86 = vld [vmem:[%s2 + $0x70] sm:$0xff]
  %v87 = vld [vmem:[%s2 + $0x78] sm:$0xff]
  %v88 = vld [vmem:[%s2 + $0x80] sm:$0xff]
  %v89 = vld [vmem:[%s2 + $0x88] sm:$0xff]
  %s90 = scalar_lea.vmem %s2, 144
  %v91 = vld [vmem:[%s90] sm:$0xff]
  %v92 = vld [vmem:[%s90 + $0x8] sm:$0xff]
  %v93 = vld [vmem:[%s90 + $0x10] sm:$0xff]
  %v94 = vld [vmem:[%s90 + $0x18] sm:$0xff]
  %v95 = vld [vmem:[%s90 + $0x20] sm:$0xff]
  %v96 = vld [vmem:[%s90 + $0x28] sm:$0xff]
  %v97 = vld [vmem:[%s90 + $0x30] sm:$0xff]
  %v98 = vld [vmem:[%s90 + $0x38] sm:$0xff]
  %v99 = vld [vmem:[%s90 + $0x40] sm:$0xff]
  %v100 = vld [vmem:[%s90 + $0x48] sm:$0xff]
  %v101 = vld [vmem:[%s90 + $0x50] sm:$0xff]
  %v102 = vld [vmem:[%s90 + $0x58] sm:$0xff]
  %v103 = vld [vmem:[%s90 + $0x60] sm:$0xff]
  %v104 = vld [vmem:[%s90 + $0x68] sm:$0xff]
  %v105 = vld [vmem:[%s90 + $0x70] sm:$0xff]
  %v106 = vld [vmem:[%s90 + $0x78] sm:$0xff]
  %v107 = vld [vmem:[%s90 + $0x80] sm:$0xff]
  %v108 = vld [vmem:[%s90 + $0x88] sm:$0xff]
  %vm119 = vcmask 1045504
  %v120 = vrot.slane %v62, 2
  %v121 = vrot.slane %v64, 2
  %v122 = vsel %vm119, %v120, %v121
  %v123 = vrot.slane %v63, 2
  %v124 = vrot.slane %v65, 2
  %v125 = vsel %vm119, %v123, %v124
  %v126 = vrot.slane %v66, 2
  %v127 = vsel %vm119, %v121, %v126
  %v128 = vrot.slane %v67, 2
  %v129 = vsel %vm119, %v124, %v128
  %v130 = vrot.slane %v68, 2
  %v131 = vsel %vm119, %v126, %v130
  %v132 = vrot.slane %v69, 2
  %v133 = vsel %vm119, %v128, %v132
  %v134 = vrot.slane %v70, 2
  %v135 = vsel %vm119, %v130, %v134
  %v136 = vrot.slane %v71, 2
  %v137 = vsel %vm119, %v132, %v136
  %vm142 = vcmask 130048
  %v143 = vsel %vm142, %v125, 0
  %v145 = vsel %vm142, %v129, 0
  %v147 = vsel %vm142, %v133, 0
  %v149 = vsel %vm142, %v137, 0
  %151 = vmatprep.subr.mxu0 0.0
  %152 = vmatpush1.msra.mxu0 %v106
  %153 = vmatprep.subr.mxu0 0.0
  %154 = vmatpush1.msra.mxu0 %v105
  %155 = vmatprep.subr.mxu0 0.0
  %156 = vmatpush1.msra.mxu0 %v104
  %157 = vmatprep.subr.mxu0 0.0
  %158 = vmatpush1.msra.mxu0 %v103
  %159 = vmatprep.subr.mxu0 0.0
  %160 = vmatpush1.msra.mxu0 %v102
  %161 = vmatprep.subr.mxu0 0.0
  %162 = vmatpush1.msra.mxu0 %v101
  %163 = vmatprep.subr.mxu0 0.0
  %164 = vmatpush1.msra.mxu0 %v100
  %165 = vmatprep.subr.mxu0 0.0
  %166 = vmatpush1.msra.mxu0 %v99
  %167 = vmatprep.subr.mxu0 0.0
  %168 = vmatpush1.msra.mxu0 %v98
  %169 = vmatprep.subr.mxu0 0.0
  %170 = vmatpush1.msra.mxu0 %v97
  %171 = vmatprep.subr.mxu0 0.0
  %172 = vmatpush1.msra.mxu0 %v96
  %173 = vmatprep.subr.mxu0 0.0
  %174 = vmatpush1.msra.mxu0 %v95
  %175 = vmatprep.subr.mxu0 0.0
  %176 = vmatpush1.msra.mxu0 %v94
  %177 = vmatprep.subr.mxu0 0.0
  %178 = vmatpush1.msra.mxu0 %v93
  %179 = vmatprep.subr.mxu0 0.0
  %180 = vmatpush1.msra.mxu0 %v92
  %181 = vmatprep.subr.mxu0 0.0
  %182 = vmatpush1.msra.mxu0 %v91
  %183 = vmatprep.subr.mxu0 0.0
  %184 = vmatpush2.msra.mxu0 0.0
  %185 = vmatprep.subr.mxu0 0.0
  %186 = vmatpush2.msra.mxu0 0.0
  %187 = vmatprep.subr.mxu0 0.0
  %188 = vmatpush2.msra.mxu0 0.0
  %189 = vmatprep.subr.mxu0 0.0
  %190 = vmatpush2.msra.mxu0 0.0
  %191 = vmatprep.subr.mxu0 0.0
  %192 = vmatpush2.msra.mxu0 0.0
  %193 = vmatprep.subr.mxu0 0.0
  %194 = vmatpush2.msra.mxu0 0.0
  %195 = vmatprep.subr.mxu0 0.0
  %196 = vmatpush2.msra.mxu0 0.0
  %197 = vmatprep.subr.mxu0 0.0
  %198 = vmatpush2.msra.mxu0 0.0
  %199 = vmatprep.subr.mxu0 0.0
  %200 = vmatpush2.msra.mxu0 0.0
  %201 = vmatprep.subr.mxu0 0.0
  %202 = vmatpush2.msra.mxu0 0.0
  %203 = vmatprep.subr.mxu0 0.0
  %204 = vmatpush2.msra.mxu0 0.0
  %205 = vmatprep.subr.mxu0 0.0
  %206 = vmatpush2.msra.mxu0 0.0
  %207 = vmatprep.subr.mxu0 0.0
  %208 = vmatpush2.msra.mxu0 0.0
  %209 = vmatprep.subr.mxu0 0.0
  %210 = vmatpush2.msra.mxu0 0.0
  %211 = vmatprep.subr.mxu0 0.0
  %212 = vmatpush2.msra.mxu0 %v108
  %213 = vmatprep.subr.mxu0 0.0
  %214 = vmatpush2.msra.mxu0 %v107
  %215 = vmatprep.mubr.f32.mxu0 %v143
  %216 = vmatmul.mubr.f32.gmra.mxu0 %v122
  %v217 = vpop.f32.mrf.mxu0
  %v218 = vadd.f32 0.0, %v217
  %v219 = vpop.f32.mrf.mxu0
  %220 = vmatprep.mubr.f32.mxu0 %v145
  %221 = vmatmul.mubr.f32.gmra.mxu0 %v127
  %v222 = vpop.f32.mrf.mxu0
  %v223 = vadd.f32 0.0, %v222
  %v224 = vpop.f32.mrf.mxu0
  %225 = vmatprep.mubr.f32.mxu0 %v147
  %226 = vmatmul.mubr.f32.gmra.mxu0 %v131
  %v227 = vpop.f32.mrf.mxu0
  %v228 = vadd.f32 0.0, %v227
  %v229 = vpop.f32.mrf.mxu0
  %230 = vmatprep.mubr.f32.mxu0 %v149
  %231 = vmatmul.mubr.f32.gmra.mxu0 %v135
  %v232 = vpop.f32.mrf.mxu0
  %v233 = vadd.f32 0.0, %v232
  %v234 = vpop.f32.mrf.mxu0
  %235 = vdwg.mxu0
  %v236 = vsel %vm142, %v63, 0
  %v238 = vsel %vm142, %v65, 0
  %v240 = vsel %vm142, %v67, 0
  %v242 = vsel %vm142, %v69, 0
  %244 = vmatprep.subr.mxu0 0.0
  %245 = vmatpush1.msra.mxu0 %v87
  %246 = vmatprep.subr.mxu0 0.0
  %247 = vmatpush1.msra.mxu0 %v86
  %248 = vmatprep.subr.mxu0 0.0
  %249 = vmatpush1.msra.mxu0 %v85
  %250 = vmatprep.subr.mxu0 0.0
  %251 = vmatpush1.msra.mxu0 %v84
  %252 = vmatprep.subr.mxu0 0.0
  %253 = vmatpush1.msra.mxu0 %v83
  %254 = vmatprep.subr.mxu0 0.0
  %255 = vmatpush1.msra.mxu0 %v82
  %256 = vmatprep.subr.mxu0 0.0
  %257 = vmatpush1.msra.mxu0 %v81
  %258 = vmatprep.subr.mxu0 0.0
  %259 = vmatpush1.msra.mxu0 %v80
  %260 = vmatprep.subr.mxu0 0.0
  %261 = vmatpush1.msra.mxu0 %v79
  %262 = vmatprep.subr.mxu0 0.0
  %263 = vmatpush1.msra.mxu0 %v78
  %264 = vmatprep.subr.mxu0 0.0
  %265 = vmatpush1.msra.mxu0 %v77
  %266 = vmatprep.subr.mxu0 0.0
  %267 = vmatpush1.msra.mxu0 %v76
  %268 = vmatprep.subr.mxu0 0.0
  %269 = vmatpush1.msra.mxu0 %v75
  %270 = vmatprep.subr.mxu0 0.0
  %271 = vmatpush1.msra.mxu0 %v74
  %272 = vmatprep.subr.mxu0 0.0
  %273 = vmatpush1.msra.mxu0 %v73
  %274 = vmatprep.subr.mxu0 0.0
  %275 = vmatpush1.msra.mxu0 %v72
  %276 = vmatprep.subr.mxu0 0.0
  %277 = vmatpush2.msra.mxu0 0.0
  %278 = vmatprep.subr.mxu0 0.0
  %279 = vmatpush2.msra.mxu0 0.0
  %280 = vmatprep.subr.mxu0 0.0
  %281 = vmatpush2.msra.mxu0 0.0
  %282 = vmatprep.subr.mxu0 0.0
  %283 = vmatpush2.msra.mxu0 0.0
  %284 = vmatprep.subr.mxu0 0.0
  %285 = vmatpush2.msra.mxu0 0.0
  %286 = vmatprep.subr.mxu0 0.0
  %287 = vmatpush2.msra.mxu0 0.0
  %288 = vmatprep.subr.mxu0 0.0
  %289 = vmatpush2.msra.mxu0 0.0
  %290 = vmatprep.subr.mxu0 0.0
  %291 = vmatpush2.msra.mxu0 0.0
  %292 = vmatprep.subr.mxu0 0.0
  %293 = vmatpush2.msra.mxu0 0.0
  %294 = vmatprep.subr.mxu0 0.0
  %295 = vmatpush2.msra.mxu0 0.0
  %296 = vmatprep.subr.mxu0 0.0
  %297 = vmatpush2.msra.mxu0 0.0
  %298 = vmatprep.subr.mxu0 0.0
  %299 = vmatpush2.msra.mxu0 0.0
  %300 = vmatprep.subr.mxu0 0.0
  %301 = vmatpush2.msra.mxu0 0.0
  %302 = vmatprep.subr.mxu0 0.0
  %303 = vmatpush2.msra.mxu0 0.0
  %304 = vmatprep.subr.mxu0 0.0
  %305 = vmatpush2.msra.mxu0 %v89
  %306 = vmatprep.subr.mxu0 0.0
  %307 = vmatpush2.msra.mxu0 %v88
  %308 = vmatprep.mubr.f32.mxu0 %v236
  %309 = vmatmul.mubr.f32.gmra.mxu0 %v62
  %v310 = vpop.f32.mrf.mxu0
  %v311 = vadd.f32 %v218, %v310
  %v312 = vpop.f32.mrf.mxu0
  %313 = vmatprep.mubr.f32.mxu0 %v238
  %314 = vmatmul.mubr.f32.gmra.mxu0 %v64
  %v315 = vpop.f32.mrf.mxu0
  %v316 = vadd.f32 %v223, %v315
  %v317 = vpop.f32.mrf.mxu0
  %318 = vmatprep.mubr.f32.mxu0 %v240
  %319 = vmatmul.mubr.f32.gmra.mxu0 %v66
  %v320 = vpop.f32.mrf.mxu0
  %v321 = vadd.f32 %v228, %v320
  %v322 = vpop.f32.mrf.mxu0
  %323 = vmatprep.mubr.f32.mxu0 %v242
  %324 = vmatmul.mubr.f32.gmra.mxu0 %v68
  %v325 = vpop.f32.mrf.mxu0
  %v326 = vadd.f32 %v233, %v325
  %v327 = vpop.f32.mrf.mxu0
  %328 = vdwg.mxu0
  %s329 = scalar_lea.vmem %s2, 288
  %v330 = vld [vmem:[%s329] sm:$0xff]
  %v331 = vld [vmem:[%s329 + $0x8] sm:$0xff]
  %v332 = vld [vmem:[%s329 + $0x10] sm:$0xff]
  %v333 = vld [vmem:[%s329 + $0x18] sm:$0xff]
  %v334 = vld [vmem:[%s329 + $0x20] sm:$0xff]
  %v335 = vld [vmem:[%s329 + $0x28] sm:$0xff]
  %v336 = vld [vmem:[%s329 + $0x30] sm:$0xff]
  %v337 = vld [vmem:[%s329 + $0x38] sm:$0xff]
  %v338 = vld [vmem:[%s329 + $0x40] sm:$0xff]
  %v339 = vld [vmem:[%s329 + $0x48] sm:$0xff]
  %v340 = vld [vmem:[%s329 + $0x50] sm:$0xff]
  %v341 = vld [vmem:[%s329 + $0x58] sm:$0xff]
  %v342 = vld [vmem:[%s329 + $0x60] sm:$0xff]
  %v343 = vld [vmem:[%s329 + $0x68] sm:$0xff]
  %v344 = vld [vmem:[%s329 + $0x70] sm:$0xff]
  %v345 = vld [vmem:[%s329 + $0x78] sm:$0xff]
  %v346 = vld [vmem:[%s329 + $0x80] sm:$0xff]
  %v347 = vld [vmem:[%s329 + $0x88] sm:$0xff]
  %vm348 = vcmask 1043456
  %v349 = vrot.slane %v62, 4
  %v350 = vrot.slane %v64, 4
  %v351 = vsel %vm348, %v349, %v350
  %v352 = vrot.slane %v63, 4
  %v353 = vrot.slane %v65, 4
  %v354 = vsel %vm348, %v352, %v353
  %v355 = vrot.slane %v66, 4
  %v356 = vsel %vm348, %v350, %v355
  %v357 = vrot.slane %v67, 4
  %v358 = vsel %vm348, %v353, %v357
  %v359 = vrot.slane %v68, 4
  %v360 = vsel %vm348, %v355, %v359
  %v361 = vrot.slane %v69, 4
  %v362 = vsel %vm348, %v357, %v361
  %v363 = vrot.slane %v70, 4
  %v364 = vsel %vm348, %v359, %v363
  %v365 = vrot.slane %v71, 4
  %v366 = vsel %vm348, %v361, %v365
  %v371 = vsel %vm142, %v354, 0
  %v373 = vsel %vm142, %v358, 0
  %v375 = vsel %vm142, %v362, 0
  %v377 = vsel %vm142, %v366, 0
  %379 = vmatprep.subr.mxu0 0.0
  %380 = vmatpush1.msra.mxu0 %v345
  %381 = vmatprep.subr.mxu0 0.0
  %382 = vmatpush1.msra.mxu0 %v344
  %383 = vmatprep.subr.mxu0 0.0
  %384 = vmatpush1.msra.mxu0 %v343
  %385 = vmatprep.subr.mxu0 0.0
  %386 = vmatpush1.msra.mxu0 %v342
  %387 = vmatprep.subr.mxu0 0.0
  %388 = vmatpush1.msra.mxu0 %v341
  %389 = vmatprep.subr.mxu0 0.0
  %390 = vmatpush1.msra.mxu0 %v340
  %391 = vmatprep.subr.mxu0 0.0
  %392 = vmatpush1.msra.mxu0 %v339
  %393 = vmatprep.subr.mxu0 0.0
  %394 = vmatpush1.msra.mxu0 %v338
  %395 = vmatprep.subr.mxu0 0.0
  %396 = vmatpush1.msra.mxu0 %v337
  %397 = vmatprep.subr.mxu0 0.0
  %398 = vmatpush1.msra.mxu0 %v336
  %399 = vmatprep.subr.mxu0 0.0
  %400 = vmatpush1.msra.mxu0 %v335
  %401 = vmatprep.subr.mxu0 0.0
  %402 = vmatpush1.msra.mxu0 %v334
  %403 = vmatprep.subr.mxu0 0.0
  %404 = vmatpush1.msra.mxu0 %v333
  %405 = vmatprep.subr.mxu0 0.0
  %406 = vmatpush1.msra.mxu0 %v332
  %407 = vmatprep.subr.mxu0 0.0
  %408 = vmatpush1.msra.mxu0 %v331
  %409 = vmatprep.subr.mxu0 0.0
  %410 = vmatpush1.msra.mxu0 %v330
  %411 = vmatprep.subr.mxu0 0.0
  %412 = vmatpush2.msra.mxu0 0.0
  %413 = vmatprep.subr.mxu0 0.0
  %414 = vmatpush2.msra.mxu0 0.0
  %415 = vmatprep.subr.mxu0 0.0
  %416 = vmatpush2.msra.mxu0 0.0
  %417 = vmatprep.subr.mxu0 0.0
  %418 = vmatpush2.msra.mxu0 0.0
  %419 = vmatprep.subr.mxu0 0.0
  %420 = vmatpush2.msra.mxu0 0.0
  %421 = vmatprep.subr.mxu0 0.0
  %422 = vmatpush2.msra.mxu0 0.0
  %423 = vmatprep.subr.mxu0 0.0
  %424 = vmatpush2.msra.mxu0 0.0
  %425 = vmatprep.subr.mxu0 0.0
  %426 = vmatpush2.msra.mxu0 0.0
  %427 = vmatprep.subr.mxu0 0.0
  %428 = vmatpush2.msra.mxu0 0.0
  %429 = vmatprep.subr.mxu0 0.0
  %430 = vmatpush2.msra.mxu0 0.0
  %431 = vmatprep.subr.mxu0 0.0
  %432 = vmatpush2.msra.mxu0 0.0
  %433 = vmatprep.subr.mxu0 0.0
  %434 = vmatpush2.msra.mxu0 0.0
  %435 = vmatprep.subr.mxu0 0.0
  %436 = vmatpush2.msra.mxu0 0.0
  %437 = vmatprep.subr.mxu0 0.0
  %438 = vmatpush2.msra.mxu0 0.0
  %439 = vmatprep.subr.mxu0 0.0
  %440 = vmatpush2.msra.mxu0 %v347
  %441 = vmatprep.subr.mxu0 0.0
  %442 = vmatpush2.msra.mxu0 %v346
  %443 = vmatprep.mubr.f32.mxu0 %v371
  %444 = vmatmul.mubr.f32.gmra.mxu0 %v351
  %v445 = vpop.f32.mrf.mxu0
  %v446 = vadd.f32 0.0, %v445
  %v447 = vpop.f32.mrf.mxu0
  %448 = vmatprep.mubr.f32.mxu0 %v373
  %449 = vmatmul.mubr.f32.gmra.mxu0 %v356
  %v450 = vpop.f32.mrf.mxu0
  %v451 = vadd.f32 0.0, %v450
  %v452 = vpop.f32.mrf.mxu0
  %453 = vmatprep.mubr.f32.mxu0 %v375
  %454 = vmatmul.mubr.f32.gmra.mxu0 %v360
  %v455 = vpop.f32.mrf.mxu0
  %v456 = vadd.f32 0.0, %v455
  %v457 = vpop.f32.mrf.mxu0
  %458 = vmatprep.mubr.f32.mxu0 %v377
  %459 = vmatmul.mubr.f32.gmra.mxu0 %v364
  %v460 = vpop.f32.mrf.mxu0
  %v461 = vadd.f32 0.0, %v460
  %v462 = vpop.f32.mrf.mxu0
  %463 = vdwg.mxu0
  %v464 = vadd.f32 %v311, %v446
  %v465 = vadd.f32 %v316, %v451
  %v466 = vadd.f32 %v321, %v456
  %v467 = vadd.f32 %v326, %v461
  %v468 = vld [vmem:[%s3] sm:$0x1]
  %v470 = vlaneseq
  %v471 = vshrl.u32 %v470, 7
  %v472 = vsub.s32 0, %v471
  %v473 = vrot.slane %v468, %v472
  %v475 = vadd.f32 %v464, %v473
  %v476 = vadd.f32 %v465, %v473
  %v477 = vadd.f32 %v466, %v473
  %v478 = vadd.f32 %v467, %v473
  %v479 = vmax.f32 %v475, 0.0
  %v480 = vmax.f32 %v476, 0.0
  %v481 = vmax.f32 %v477, 0.0
  %v482 = vmax.f32 %v478, 0.0
  %487 = vrot.lane.b32.xlu0 %v479, 8
  %v488 = vpop.permute.xlu0 %487
  %489 = vrot.lane.b32.xlu0 %v480, 8
  %v490 = vpop.permute.xlu0 %489
  %491 = vrot.lane.b32.xlu0 %v481, 8
  %v492 = vpop.permute.xlu0 %491
  %493 = vrot.lane.b32.xlu0 %v482, 8
  %v494 = vpop.permute.xlu0 %493
  %vm499 = vcmask 64512
  %v500 = vsel %vm499, 0.0, %v488
  %v501 = vsel %vm499, 0.0, %v490
  %v502 = vsel %vm499, 0.0, %v492
  %v503 = vsel %vm499, 0.0, %v494
  %v504 = vsel %vm499, %v488, 0.0
  %v505 = vsel %vm499, %v490, 0.0
  %v506 = vsel %vm499, %v492, 0.0
  %v507 = vsel %vm499, %v494, 0.0
  %vm516 = vcmask 1041408
  %v517 = vrot.slane %v500, 6
  %v518 = vrot.slane %v504, 6
  %v519 = vrot.slane %v501, 6
  %v520 = vsel %vm516, %v517, %v519
  %v521 = vrot.slane %v505, 6
  %v522 = vsel %vm516, %v518, %v521
  %v523 = vrot.slane %v502, 6
  %v524 = vsel %vm516, %v519, %v523
  %v525 = vrot.slane %v506, 6
  %v526 = vsel %vm516, %v521, %v525
  %v527 = vrot.slane %v503, 6
  %v528 = vsel %vm516, %v523, %v527
  %v529 = vrot.slane %v507, 6
  %v530 = vsel %vm516, %v525, %v529
  %v538 = vsel %vm516, 0.0, %v517
  %v539 = vsel %vm516, 0.0, %v518
  %v540 = vsel %vm516, %v527, 0.0
  %v541 = vsel %vm516, %v529, 0.0
  %v542 = vld [vmem:[%s4] sm:$0xff]
  %v543 = vld [vmem:[%s4 + $0x8] sm:$0xff]
  %v544 = vld [vmem:[%s4 + $0x10] sm:$0xff]
  %v545 = vld [vmem:[%s4 + $0x18] sm:$0xff]
  %v546 = vld [vmem:[%s4 + $0x20] sm:$0xff]
  %v547 = vld [vmem:[%s4 + $0x28] sm:$0xff]
  %v548 = vld [vmem:[%s4 + $0x30] sm:$0xff]
  %v549 = vld [vmem:[%s4 + $0x38] sm:$0xff]
  %v550 = vld [vmem:[%s4 + $0x40] sm:$0xff]
  %v551 = vld [vmem:[%s4 + $0x48] sm:$0xff]
  %v552 = vld [vmem:[%s4 + $0x50] sm:$0xff]
  %v553 = vld [vmem:[%s4 + $0x58] sm:$0xff]
  %v554 = vld [vmem:[%s4 + $0x60] sm:$0xff]
  %v555 = vld [vmem:[%s4 + $0x68] sm:$0xff]
  %v556 = vld [vmem:[%s4 + $0x70] sm:$0xff]
  %v557 = vld [vmem:[%s4 + $0x78] sm:$0xff]
  %v558 = vld [vmem:[%s4 + $0x80] sm:$0xff]
  %v559 = vld [vmem:[%s4 + $0x88] sm:$0xff]
  %s560 = scalar_lea.vmem %s4, 144
  %v561 = vld [vmem:[%s560] sm:$0xff]
  %v562 = vld [vmem:[%s560 + $0x8] sm:$0xff]
  %v563 = vld [vmem:[%s560 + $0x10] sm:$0xff]
  %v564 = vld [vmem:[%s560 + $0x18] sm:$0xff]
  %v565 = vld [vmem:[%s560 + $0x20] sm:$0xff]
  %v566 = vld [vmem:[%s560 + $0x28] sm:$0xff]
  %v567 = vld [vmem:[%s560 + $0x30] sm:$0xff]
  %v568 = vld [vmem:[%s560 + $0x38] sm:$0xff]
  %v569 = vld [vmem:[%s560 + $0x40] sm:$0xff]
  %v570 = vld [vmem:[%s560 + $0x48] sm:$0xff]
  %v571 = vld [vmem:[%s560 + $0x50] sm:$0xff]
  %v572 = vld [vmem:[%s560 + $0x58] sm:$0xff]
  %v573 = vld [vmem:[%s560 + $0x60] sm:$0xff]
  %v574 = vld [vmem:[%s560 + $0x68] sm:$0xff]
  %v575 = vld [vmem:[%s560 + $0x70] sm:$0xff]
  %v576 = vld [vmem:[%s560 + $0x78] sm:$0xff]
  %v577 = vld [vmem:[%s560 + $0x80] sm:$0xff]
  %v578 = vld [vmem:[%s560 + $0x88] sm:$0xff]
  %v583 = vrot.slane %v538, 2
  %v584 = vrot.slane %v520, 2
  %v585 = vsel %vm119, %v583, %v584
  %v586 = vrot.slane %v539, 2
  %v587 = vrot.slane %v522, 2
  %v588 = vsel %vm119, %v586, %v587
  %v589 = vrot.slane %v524, 2
  %v590 = vsel %vm119, %v584, %v589
  %v591 = vrot.slane %v526, 2
  %v592 = vsel %vm119, %v587, %v591
  %v593 = vrot.slane %v528, 2
  %v594 = vsel %vm119, %v589, %v593
  %v595 = vrot.slane %v530, 2
  %v596 = vsel %vm119, %v591, %v595
  %v597 = vrot.slane %v540, 2
  %v598 = vsel %vm119, %v593, %v597
  %v599 = vrot.slane %v541, 2
  %v600 = vsel %vm119, %v595, %v599
  %v605 = vsel %vm142, %v588, 0
  %v607 = vsel %vm142, %v592, 0
  %v609 = vsel %vm142, %v596, 0
  %v611 = vsel %vm142, %v600, 0
  %613 = vmatprep.subr.mxu0 0.0
  %614 = vmatpush1.msra.mxu0 %v576
  %615 = vmatprep.subr.mxu0 0.0
  %616 = vmatpush1.msra.mxu0 %v575
  %617 = vmatprep.subr.mxu0 0.0
  %618 = vmatpush1.msra.mxu0 %v574
  %619 = vmatprep.subr.mxu0 0.0
  %620 = vmatpush1.msra.mxu0 %v573
  %621 = vmatprep.subr.mxu0 0.0
  %622 = vmatpush1.msra.mxu0 %v572
  %623 = vmatprep.subr.mxu0 0.0
  %624 = vmatpush1.msra.mxu0 %v571
  %625 = vmatprep.subr.mxu0 0.0
  %626 = vmatpush1.msra.mxu0 %v570
  %627 = vmatprep.subr.mxu0 0.0
  %628 = vmatpush1.msra.mxu0 %v569
  %629 = vmatprep.subr.mxu0 0.0
  %630 = vmatpush1.msra.mxu0 %v568
  %631 = vmatprep.subr.mxu0 0.0
  %632 = vmatpush1.msra.mxu0 %v567
  %633 = vmatprep.subr.mxu0 0.0
  %634 = vmatpush1.msra.mxu0 %v566
  %635 = vmatprep.subr.mxu0 0.0
  %636 = vmatpush1.msra.mxu0 %v565
  %637 = vmatprep.subr.mxu0 0.0
  %638 = vmatpush1.msra.mxu0 %v564
  %639 = vmatprep.subr.mxu0 0.0
  %640 = vmatpush1.msra.mxu0 %v563
  %641 = vmatprep.subr.mxu0 0.0
  %642 = vmatpush1.msra.mxu0 %v562
  %643 = vmatprep.subr.mxu0 0.0
  %644 = vmatpush1.msra.mxu0 %v561
  %645 = vmatprep.subr.mxu0 0.0
  %646 = vmatpush2.msra.mxu0 0.0
  %647 = vmatprep.subr.mxu0 0.0
  %648 = vmatpush2.msra.mxu0 0.0
  %649 = vmatprep.subr.mxu0 0.0
  %650 = vmatpush2.msra.mxu0 0.0
  %651 = vmatprep.subr.mxu0 0.0
  %652 = vmatpush2.msra.mxu0 0.0
  %653 = vmatprep.subr.mxu0 0.0
  %654 = vmatpush2.msra.mxu0 0.0
  %655 = vmatprep.subr.mxu0 0.0
  %656 = vmatpush2.msra.mxu0 0.0
  %657 = vmatprep.subr.mxu0 0.0
  %658 = vmatpush2.msra.mxu0 0.0
  %659 = vmatprep.subr.mxu0 0.0
  %660 = vmatpush2.msra.mxu0 0.0
  %661 = vmatprep.subr.mxu0 0.0
  %662 = vmatpush2.msra.mxu0 0.0
  %663 = vmatprep.subr.mxu0 0.0
  %664 = vmatpush2.msra.mxu0 0.0
  %665 = vmatprep.subr.mxu0 0.0
  %666 = vmatpush2.msra.mxu0 0.0
  %667 = vmatprep.subr.mxu0 0.0
  %668 = vmatpush2.msra.mxu0 0.0
  %669 = vmatprep.subr.mxu0 0.0
  %670 = vmatpush2.msra.mxu0 0.0
  %671 = vmatprep.subr.mxu0 0.0
  %672 = vmatpush2.msra.mxu0 0.0
  %673 = vmatprep.subr.mxu0 0.0
  %674 = vmatpush2.msra.mxu0 %v578
  %675 = vmatprep.subr.mxu0 0.0
  %676 = vmatpush2.msra.mxu0 %v577
  %677 = vmatprep.mubr.f32.mxu0 %v605
  %678 = vmatmul.mubr.f32.gmra.mxu0 %v585
  %v679 = vpop.f32.mrf.mxu0
  %v680 = vadd.f32 0.0, %v679
  %v681 = vpop.f32.mrf.mxu0
  %682 = vmatprep.mubr.f32.mxu0 %v607
  %683 = vmatmul.mubr.f32.gmra.mxu0 %v590
  %v684 = vpop.f32.mrf.mxu0
  %v685 = vadd.f32 0.0, %v684
  %v686 = vpop.f32.mrf.mxu0
  %687 = vmatprep.mubr.f32.mxu0 %v609
  %688 = vmatmul.mubr.f32.gmra.mxu0 %v594
  %v689 = vpop.f32.mrf.mxu0
  %v690 = vadd.f32 0.0, %v689
  %v691 = vpop.f32.mrf.mxu0
  %692 = vmatprep.mubr.f32.mxu0 %v611
  %693 = vmatmul.mubr.f32.gmra.mxu0 %v598
  %v694 = vpop.f32.mrf.mxu0
  %v695 = vadd.f32 0.0, %v694
  %v696 = vpop.f32.mrf.mxu0
  %697 = vdwg.mxu0
  %v698 = vsel %vm142, %v539, 0
  %v700 = vsel %vm142, %v522, 0
  %v702 = vsel %vm142, %v526, 0
  %v704 = vsel %vm142, %v530, 0
  %706 = vmatprep.subr.mxu0 0.0
  %707 = vmatpush1.msra.mxu0 %v557
  %708 = vmatprep.subr.mxu0 0.0
  %709 = vmatpush1.msra.mxu0 %v556
  %710 = vmatprep.subr.mxu0 0.0
  %711 = vmatpush1.msra.mxu0 %v555
  %712 = vmatprep.subr.mxu0 0.0
  %713 = vmatpush1.msra.mxu0 %v554
  %714 = vmatprep.subr.mxu0 0.0
  %715 = vmatpush1.msra.mxu0 %v553
  %716 = vmatprep.subr.mxu0 0.0
  %717 = vmatpush1.msra.mxu0 %v552
  %718 = vmatprep.subr.mxu0 0.0
  %719 = vmatpush1.msra.mxu0 %v551
  %720 = vmatprep.subr.mxu0 0.0
  %721 = vmatpush1.msra.mxu0 %v550
  %722 = vmatprep.subr.mxu0 0.0
  %723 = vmatpush1.msra.mxu0 %v549
  %724 = vmatprep.subr.mxu0 0.0
  %725 = vmatpush1.msra.mxu0 %v548
  %726 = vmatprep.subr.mxu0 0.0
  %727 = vmatpush1.msra.mxu0 %v547
  %728 = vmatprep.subr.mxu0 0.0
  %729 = vmatpush1.msra.mxu0 %v546
  %730 = vmatprep.subr.mxu0 0.0
  %731 = vmatpush1.msra.mxu0 %v545
  %732 = vmatprep.subr.mxu0 0.0
  %733 = vmatpush1.msra.mxu0 %v544
  %734 = vmatprep.subr.mxu0 0.0
  %735 = vmatpush1.msra.mxu0 %v543
  %736 = vmatprep.subr.mxu0 0.0
  %737 = vmatpush1.msra.mxu0 %v542
  %738 = vmatprep.subr.mxu0 0.0
  %739 = vmatpush2.msra.mxu0 0.0
  %740 = vmatprep.subr.mxu0 0.0
  %741 = vmatpush2.msra.mxu0 0.0
  %742 = vmatprep.subr.mxu0 0.0
  %743 = vmatpush2.msra.mxu0 0.0
  %744 = vmatprep.subr.mxu0 0.0
  %745 = vmatpush2.msra.mxu0 0.0
  %746 = vmatprep.subr.mxu0 0.0
  %747 = vmatpush2.msra.mxu0 0.0
  %748 = vmatprep.subr.mxu0 0.0
  %749 = vmatpush2.msra.mxu0 0.0
  %750 = vmatprep.subr.mxu0 0.0
  %751 = vmatpush2.msra.mxu0 0.0
  %752 = vmatprep.subr.mxu0 0.0
  %753 = vmatpush2.msra.mxu0 0.0
  %754 = vmatprep.subr.mxu0 0.0
  %755 = vmatpush2.msra.mxu0 0.0
  %756 = vmatprep.subr.mxu0 0.0
  %757 = vmatpush2.msra.mxu0 0.0
  %758 = vmatprep.subr.mxu0 0.0
  %759 = vmatpush2.msra.mxu0 0.0
  %760 = vmatprep.subr.mxu0 0.0
  %761 = vmatpush2.msra.mxu0 0.0
  %762 = vmatprep.subr.mxu0 0.0
  %763 = vmatpush2.msra.mxu0 0.0
  %764 = vmatprep.subr.mxu0 0.0
  %765 = vmatpush2.msra.mxu0 0.0
  %766 = vmatprep.subr.mxu0 0.0
  %767 = vmatpush2.msra.mxu0 %v559
  %768 = vmatprep.subr.mxu0 0.0
  %769 = vmatpush2.msra.mxu0 %v558
  %770 = vmatprep.mubr.f32.mxu0 %v698
  %771 = vmatmul.mubr.f32.gmra.mxu0 %v538
  %v772 = vpop.f32.mrf.mxu0
  %v773 = vadd.f32 %v680, %v772
  %v774 = vpop.f32.mrf.mxu0
  %775 = vmatprep.mubr.f32.mxu0 %v700
  %776 = vmatmul.mubr.f32.gmra.mxu0 %v520
  %v777 = vpop.f32.mrf.mxu0
  %v778 = vadd.f32 %v685, %v777
  %v779 = vpop.f32.mrf.mxu0
  %780 = vmatprep.mubr.f32.mxu0 %v702
  %781 = vmatmul.mubr.f32.gmra.mxu0 %v524
  %v782 = vpop.f32.mrf.mxu0
  %v783 = vadd.f32 %v690, %v782
  %v784 = vpop.f32.mrf.mxu0
  %785 = vmatprep.mubr.f32.mxu0 %v704
  %786 = vmatmul.mubr.f32.gmra.mxu0 %v528
  %v787 = vpop.f32.mrf.mxu0
  %v788 = vadd.f32 %v695, %v787
  %v789 = vpop.f32.mrf.mxu0
  %790 = vdwg.mxu0
  %s791 = scalar_lea.vmem %s4, 288
  %v792 = vld [vmem:[%s791] sm:$0xff]
  %v793 = vld [vmem:[%s791 + $0x8] sm:$0xff]
  %v794 = vld [vmem:[%s791 + $0x10] sm:$0xff]
  %v795 = vld [vmem:[%s791 + $0x18] sm:$0xff]
  %v796 = vld [vmem:[%s791 + $0x20] sm:$0xff]
  %v797 = vld [vmem:[%s791 + $0x28] sm:$0xff]
  %v798 = vld [vmem:[%s791 + $0x30] sm:$0xff]
  %v799 = vld [vmem:[%s791 + $0x38] sm:$0xff]
  %v800 = vld [vmem:[%s791 + $0x40] sm:$0xff]
  %v801 = vld [vmem:[%s791 + $0x48] sm:$0xff]
  %v802 = vld [vmem:[%s791 + $0x50] sm:$0xff]
  %v803 = vld [vmem:[%s791 + $0x58] sm:$0xff]
  %v804 = vld [vmem:[%s791 + $0x60] sm:$0xff]
  %v805 = vld [vmem:[%s791 + $0x68] sm:$0xff]
  %v806 = vld [vmem:[%s791 + $0x70] sm:$0xff]
  %v807 = vld [vmem:[%s791 + $0x78] sm:$0xff]
  %v808 = vld [vmem:[%s791 + $0x80] sm:$0xff]
  %v809 = vld [vmem:[%s791 + $0x88] sm:$0xff]
  %v810 = vrot.slane %v538, 4
  %v811 = vrot.slane %v520, 4
  %v812 = vsel %vm348, %v810, %v811
  %v813 = vrot.slane %v539, 4
  %v814 = vrot.slane %v522, 4
  %v815 = vsel %vm348, %v813, %v814
  %v816 = vrot.slane %v524, 4
  %v817 = vsel %vm348, %v811, %v816
  %v818 = vrot.slane %v526, 4
  %v819 = vsel %vm348, %v814, %v818
  %v820 = vrot.slane %v528, 4
  %v821 = vsel %vm348, %v816, %v820
  %v822 = vrot.slane %v530, 4
  %v823 = vsel %vm348, %v818, %v822
  %v824 = vrot.slane %v540, 4
  %v825 = vsel %vm348, %v820, %v824
  %v826 = vrot.slane %v541, 4
  %v827 = vsel %vm348, %v822, %v826
  %v832 = vsel %vm142, %v815, 0
  %v834 = vsel %vm142, %v819, 0
  %v836 = vsel %vm142, %v823, 0
  %v838 = vsel %vm142, %v827, 0
  %840 = vmatprep.subr.mxu0 0.0
  %841 = vmatpush1.msra.mxu0 %v807
  %842 = vmatprep.subr.mxu0 0.0
  %843 = vmatpush1.msra.mxu0 %v806
  %844 = vmatprep.subr.mxu0 0.0
  %845 = vmatpush1.msra.mxu0 %v805
  %846 = vmatprep.subr.mxu0 0.0
  %847 = vmatpush1.msra.mxu0 %v804
  %848 = vmatprep.subr.mxu0 0.0
  %849 = vmatpush1.msra.mxu0 %v803
  %850 = vmatprep.subr.mxu0 0.0
  %851 = vmatpush1.msra.mxu0 %v802
  %852 = vmatprep.subr.mxu0 0.0
  %853 = vmatpush1.msra.mxu0 %v801
  %854 = vmatprep.subr.mxu0 0.0
  %855 = vmatpush1.msra.mxu0 %v800
  %856 = vmatprep.subr.mxu0 0.0
  %857 = vmatpush1.msra.mxu0 %v799
  %858 = vmatprep.subr.mxu0 0.0
  %859 = vmatpush1.msra.mxu0 %v798
  %860 = vmatprep.subr.mxu0 0.0
  %861 = vmatpush1.msra.mxu0 %v797
  %862 = vmatprep.subr.mxu0 0.0
  %863 = vmatpush1.msra.mxu0 %v796
  %864 = vmatprep.subr.mxu0 0.0
  %865 = vmatpush1.msra.mxu0 %v795
  %866 = vmatprep.subr.mxu0 0.0
  %867 = vmatpush1.msra.mxu0 %v794
  %868 = vmatprep.subr.mxu0 0.0
  %869 = vmatpush1.msra.mxu0 %v793
  %870 = vmatprep.subr.mxu0 0.0
  %871 = vmatpush1.msra.mxu0 %v792
  %872 = vmatprep.subr.mxu0 0.0
  %873 = vmatpush2.msra.mxu0 0.0
  %874 = vmatprep.subr.mxu0 0.0
  %875 = vmatpush2.msra.mxu0 0.0
  %876 = vmatprep.subr.mxu0 0.0
  %877 = vmatpush2.msra.mxu0 0.0
  %878 = vmatprep.subr.mxu0 0.0
  %879 = vmatpush2.msra.mxu0 0.0
  %880 = vmatprep.subr.mxu0 0.0
  %881 = vmatpush2.msra.mxu0 0.0
  %882 = vmatprep.subr.mxu0 0.0
  %883 = vmatpush2.msra.mxu0 0.0
  %884 = vmatprep.subr.mxu0 0.0
  %885 = vmatpush2.msra.mxu0 0.0
  %886 = vmatprep.subr.mxu0 0.0
  %887 = vmatpush2.msra.mxu0 0.0
  %888 = vmatprep.subr.mxu0 0.0
  %889 = vmatpush2.msra.mxu0 0.0
  %890 = vmatprep.subr.mxu0 0.0
  %891 = vmatpush2.msra.mxu0 0.0
  %892 = vmatprep.subr.mxu0 0.0
  %893 = vmatpush2.msra.mxu0 0.0
  %894 = vmatprep.subr.mxu0 0.0
  %895 = vmatpush2.msra.mxu0 0.0
  %896 = vmatprep.subr.mxu0 0.0
  %897 = vmatpush2.msra.mxu0 0.0
  %898 = vmatprep.subr.mxu0 0.0
  %899 = vmatpush2.msra.mxu0 0.0
  %900 = vmatprep.subr.mxu0 0.0
  %901 = vmatpush2.msra.mxu0 %v809
  %902 = vmatprep.subr.mxu0 0.0
  %903 = vmatpush2.msra.mxu0 %v808
  %904 = vmatprep.mubr.f32.mxu0 %v832
  %905 = vmatmul.mubr.f32.gmra.mxu0 %v812
  %v906 = vpop.f32.mrf.mxu0
  %v907 = vadd.f32 0.0, %v906
  %v908 = vpop.f32.mrf.mxu0
  %909 = vmatprep.mubr.f32.mxu0 %v834
  %910 = vmatmul.mubr.f32.gmra.mxu0 %v817
  %v911 = vpop.f32.mrf.mxu0
  %v912 = vadd.f32 0.0, %v911
  %v913 = vpop.f32.mrf.mxu0
  %914 = vmatprep.mubr.f32.mxu0 %v836
  %915 = vmatmul.mubr.f32.gmra.mxu0 %v821
  %v916 = vpop.f32.mrf.mxu0
  %v917 = vadd.f32 0.0, %v916
  %v918 = vpop.f32.mrf.mxu0
  %919 = vmatprep.mubr.f32.mxu0 %v838
  %920 = vmatmul.mubr.f32.gmra.mxu0 %v825
  %v921 = vpop.f32.mrf.mxu0
  %v922 = vadd.f32 0.0, %v921
  %v923 = vpop.f32.mrf.mxu0
  %924 = vdwg.mxu0
  %v925 = vadd.f32 %v773, %v907
  %v926 = vadd.f32 %v778, %v912
  %v927 = vadd.f32 %v783, %v917
  %v928 = vadd.f32 %v788, %v922
  %v929 = vld [vmem:[%s5] sm:$0x1]
  %v931 = vlaneseq
  %v932 = vshrl.u32 %v931, 7
  %v933 = vsub.s32 0, %v932
  %v934 = vrot.slane %v929, %v933
  %v936 = vadd.f32 %v925, %v934
  %v937 = vadd.f32 %v926, %v934
  %v938 = vadd.f32 %v927, %v934
  %v939 = vadd.f32 %v928, %v934
  %v940 = vmax.f32 %v936, 0.0
  %v941 = vmax.f32 %v937, 0.0
  %v942 = vmax.f32 %v938, 0.0
  %v943 = vmax.f32 %v939, 0.0
  %v944 = vld [vmem:[%s6] sm:$0xff]
  %v945 = vld [vmem:[%s6 + $0x8] sm:$0xff]
  %v946 = vld [vmem:[%s6 + $0x10] sm:$0xff]
  %v947 = vld [vmem:[%s6 + $0x18] sm:$0xff]
  %v948 = vld [vmem:[%s6 + $0x20] sm:$0xff]
  %v949 = vld [vmem:[%s6 + $0x28] sm:$0xff]
  %v950 = vld [vmem:[%s6 + $0x30] sm:$0xff]
  %v951 = vld [vmem:[%s6 + $0x38] sm:$0xff]
  %v952 = vld [vmem:[%s6 + $0x40] sm:$0xff]
  %v953 = vld [vmem:[%s6 + $0x48] sm:$0xff]
  %v954 = vld [vmem:[%s6 + $0x50] sm:$0xff]
  %v955 = vld [vmem:[%s6 + $0x58] sm:$0xff]
  %v956 = vld [vmem:[%s6 + $0x60] sm:$0xff]
  %v957 = vld [vmem:[%s6 + $0x68] sm:$0xff]
  %v958 = vld [vmem:[%s6 + $0x70] sm:$0xff]
  %v959 = vld [vmem:[%s6 + $0x78] sm:$0xff]
  %v960 = vld [vmem:[%s6 + $0x80] sm:$0xff]
  %v961 = vld [vmem:[%s6 + $0x88] sm:$0xff]
  %v962 = vld [vmem:[%s6 + $0x90] sm:$0xff]
  %v963 = vld [vmem:[%s6 + $0x98] sm:$0xff]
  %v964 = vld [vmem:[%s6 + $0xa0] sm:$0xff]
  %v965 = vld [vmem:[%s6 + $0xa8] sm:$0xff]
  %v966 = vld [vmem:[%s6 + $0xb0] sm:$0xff]
  %v967 = vld [vmem:[%s6 + $0xb8] sm:$0xff]
  %v968 = vld [vmem:[%s6 + $0xc0] sm:$0xff]
  %v969 = vld [vmem:[%s6 + $0xc8] sm:$0xff]
  %v970 = vld [vmem:[%s6 + $0xd0] sm:$0xff]
  %v971 = vld [vmem:[%s6 + $0xd8] sm:$0xff]
  %v972 = vld [vmem:[%s6 + $0xe0] sm:$0xff]
  %v973 = vld [vmem:[%s6 + $0xe8] sm:$0xff]
  %v974 = vld [vmem:[%s6 + $0xf0] sm:$0xff]
  %v975 = vld [vmem:[%s6 + $0xf8] sm:$0xff]
  %v977 = vrot.slane %v940, 2
  %979 = vmatprep.subr.mxu0 0.0
  %980 = vmatpush1.msra.mxu0 %v975
  %981 = vmatprep.subr.mxu0 0.0
  %982 = vmatpush1.msra.mxu0 %v974
  %983 = vmatprep.subr.mxu0 0.0
  %984 = vmatpush1.msra.mxu0 %v973
  %985 = vmatprep.subr.mxu0 0.0
  %986 = vmatpush1.msra.mxu0 %v972
  %987 = vmatprep.subr.mxu0 0.0
  %988 = vmatpush1.msra.mxu0 %v971
  %989 = vmatprep.subr.mxu0 0.0
  %990 = vmatpush1.msra.mxu0 %v970
  %991 = vmatprep.subr.mxu0 0.0
  %992 = vmatpush1.msra.mxu0 %v969
  %993 = vmatprep.subr.mxu0 0.0
  %994 = vmatpush1.msra.mxu0 %v968
  %995 = vmatprep.subr.mxu0 0.0
  %996 = vmatpush1.msra.mxu0 %v967
  %997 = vmatprep.subr.mxu0 0.0
  %998 = vmatpush1.msra.mxu0 %v966
  %999 = vmatprep.subr.mxu0 0.0
  %1000 = vmatpush1.msra.mxu0 %v965
  %1001 = vmatprep.subr.mxu0 0.0
  %1002 = vmatpush1.msra.mxu0 %v964
  %1003 = vmatprep.subr.mxu0 0.0
  %1004 = vmatpush1.msra.mxu0 %v963
  %1005 = vmatprep.subr.mxu0 0.0
  %1006 = vmatpush1.msra.mxu0 %v962
  %1007 = vmatprep.subr.mxu0 0.0
  %1008 = vmatpush1.msra.mxu0 %v961
  %1009 = vmatprep.subr.mxu0 0.0
  %1010 = vmatpush1.msra.mxu0 %v960
  %1011 = vmatprep.subr.mxu0 0.0
  %1012 = vmatpush2.msra.mxu0 0.0
  %1013 = vmatprep.subr.mxu0 0.0
  %1014 = vmatpush2.msra.mxu0 0.0
  %1015 = vmatprep.subr.mxu0 0.0
  %1016 = vmatpush2.msra.mxu0 0.0
  %1017 = vmatprep.subr.mxu0 0.0
  %1018 = vmatpush2.msra.mxu0 0.0
  %1019 = vmatprep.subr.mxu0 0.0
  %1020 = vmatpush2.msra.mxu0 0.0
  %1021 = vmatprep.subr.mxu0 0.0
  %1022 = vmatpush2.msra.mxu0 0.0
  %1023 = vmatprep.subr.mxu0 0.0
  %1024 = vmatpush2.msra.mxu0 0.0
  %1025 = vmatprep.subr.mxu0 0.0
  %1026 = vmatpush2.msra.mxu0 0.0
  %1027 = vmatprep.subr.mxu0 0.0
  %1028 = vmatpush2.msra.mxu0 0.0
  %1029 = vmatprep.subr.mxu0 0.0
  %1030 = vmatpush2.msra.mxu0 0.0
  %1031 = vmatprep.subr.mxu0 0.0
  %1032 = vmatpush2.msra.mxu0 0.0
  %1033 = vmatprep.subr.mxu0 0.0
  %1034 = vmatpush2.msra.mxu0 0.0
  %1035 = vmatprep.subr.mxu0 0.0
  %1036 = vmatpush2.msra.mxu0 0.0
  %1037 = vmatprep.subr.mxu0 0.0
  %1038 = vmatpush2.msra.mxu0 0.0
  %1039 = vmatprep.subr.mxu0 0.0
  %1040 = vmatpush2.msra.mxu0 0.0
  %1041 = vmatprep.subr.mxu0 0.0
  %1042 = vmatpush2.msra.mxu0 0.0
  %1043 = vmatprep.mubr.f32.mxu0 0.0
  %1044 = vmatmul.mubr.f32.gmra.mxu0 %v977
  %v1045 = vpop.f32.mrf.mxu0
  %v1046 = vadd.f32 0.0, %v1045
  %v1047 = vpop.f32.mrf.mxu0
  %1048 = vdwg.mxu0
  %1049 = vmatprep.subr.mxu0 0.0
  %1050 = vmatpush1.msra.mxu0 %v959
  %1051 = vmatprep.subr.mxu0 0.0
  %1052 = vmatpush1.msra.mxu0 %v958
  %1053 = vmatprep.subr.mxu0 0.0
  %1054 = vmatpush1.msra.mxu0 %v957
  %1055 = vmatprep.subr.mxu0 0.0
  %1056 = vmatpush1.msra.mxu0 %v956
  %1057 = vmatprep.subr.mxu0 0.0
  %1058 = vmatpush1.msra.mxu0 %v955
  %1059 = vmatprep.subr.mxu0 0.0
  %1060 = vmatpush1.msra.mxu0 %v954
  %1061 = vmatprep.subr.mxu0 0.0
  %1062 = vmatpush1.msra.mxu0 %v953
  %1063 = vmatprep.subr.mxu0 0.0
  %1064 = vmatpush1.msra.mxu0 %v952
  %1065 = vmatprep.subr.mxu0 0.0
  %1066 = vmatpush1.msra.mxu0 %v951
  %1067 = vmatprep.subr.mxu0 0.0
  %1068 = vmatpush1.msra.mxu0 %v950
  %1069 = vmatprep.subr.mxu0 0.0
  %1070 = vmatpush1.msra.mxu0 %v949
  %1071 = vmatprep.subr.mxu0 0.0
  %1072 = vmatpush1.msra.mxu0 %v948
  %1073 = vmatprep.subr.mxu0 0.0
  %1074 = vmatpush1.msra.mxu0 %v947
  %1075 = vmatprep.subr.mxu0 0.0
  %1076 = vmatpush1.msra.mxu0 %v946
  %1077 = vmatprep.subr.mxu0 0.0
  %1078 = vmatpush1.msra.mxu0 %v945
  %1079 = vmatprep.subr.mxu0 0.0
  %1080 = vmatpush1.msra.mxu0 %v944
  %1081 = vmatprep.subr.mxu0 0.0
  %1082 = vmatpush2.msra.mxu0 0.0
  %1083 = vmatprep.subr.mxu0 0.0
  %1084 = vmatpush2.msra.mxu0 0.0
  %1085 = vmatprep.subr.mxu0 0.0
  %1086 = vmatpush2.msra.mxu0 0.0
  %1087 = vmatprep.subr.mxu0 0.0
  %1088 = vmatpush2.msra.mxu0 0.0
  %1089 = vmatprep.subr.mxu0 0.0
  %1090 = vmatpush2.msra.mxu0 0.0
  %1091 = vmatprep.subr.mxu0 0.0
  %1092 = vmatpush2.msra.mxu0 0.0
  %1093 = vmatprep.subr.mxu0 0.0
  %1094 = vmatpush2.msra.mxu0 0.0
  %1095 = vmatprep.subr.mxu0 0.0
  %1096 = vmatpush2.msra.mxu0 0.0
  %1097 = vmatprep.subr.mxu0 0.0
  %1098 = vmatpush2.msra.mxu0 0.0
  %1099 = vmatprep.subr.mxu0 0.0
  %1100 = vmatpush2.msra.mxu0 0.0
  %1101 = vmatprep.subr.mxu0 0.0
  %1102 = vmatpush2.msra.mxu0 0.0
  %1103 = vmatprep.subr.mxu0 0.0
  %1104 = vmatpush2.msra.mxu0 0.0
  %1105 = vmatprep.subr.mxu0 0.0
  %1106 = vmatpush2.msra.mxu0 0.0
  %1107 = vmatprep.subr.mxu0 0.0
  %1108 = vmatpush2.msra.mxu0 0.0
  %1109 = vmatprep.subr.mxu0 0.0
  %1110 = vmatpush2.msra.mxu0 0.0
  %1111 = vmatprep.subr.mxu0 0.0
  %1112 = vmatpush2.msra.mxu0 0.0
  %1113 = vmatprep.mubr.f32.mxu0 0.0
  %1114 = vmatmul.mubr.f32.gmra.mxu0 %v940
  %v1115 = vpop.f32.mrf.mxu0
  %v1116 = vadd.f32 %v1046, %v1115
  %v1117 = vpop.f32.mrf.mxu0
  %1118 = vdwg.mxu0
  %v1119 = vld [vmem:[%s6 + $0x100] sm:$0xff]
  %v1120 = vld [vmem:[%s6 + $0x108] sm:$0xff]
  %v1121 = vld [vmem:[%s6 + $0x110] sm:$0xff]
  %v1122 = vld [vmem:[%s6 + $0x118] sm:$0xff]
  %v1123 = vld [vmem:[%s6 + $0x120] sm:$0xff]
  %v1124 = vld [vmem:[%s6 + $0x128] sm:$0xff]
  %v1125 = vld [vmem:[%s6 + $0x130] sm:$0xff]
  %v1126 = vld [vmem:[%s6 + $0x138] sm:$0xff]
  %v1127 = vld [vmem:[%s6 + $0x140] sm:$0xff]
  %v1128 = vld [vmem:[%s6 + $0x148] sm:$0xff]
  %v1129 = vld [vmem:[%s6 + $0x150] sm:$0xff]
  %v1130 = vld [vmem:[%s6 + $0x158] sm:$0xff]
  %v1131 = vld [vmem:[%s6 + $0x160] sm:$0xff]
  %v1132 = vld [vmem:[%s6 + $0x168] sm:$0xff]
  %v1133 = vld [vmem:[%s6 + $0x170] sm:$0xff]
  %v1134 = vld [vmem:[%s6 + $0x178] sm:$0xff]
  %v1135 = vrot.slane %v940, 4
  %1137 = vmatprep.subr.mxu0 0.0
  %1138 = vmatpush1.msra.mxu0 %v1134
  %1139 = vmatprep.subr.mxu0 0.0
  %1140 = vmatpush1.msra.mxu0 %v1133
  %1141 = vmatprep.subr.mxu0 0.0
  %1142 = vmatpush1.msra.mxu0 %v1132
  %1143 = vmatprep.subr.mxu0 0.0
  %1144 = vmatpush1.msra.mxu0 %v1131
  %1145 = vmatprep.subr.mxu0 0.0
  %1146 = vmatpush1.msra.mxu0 %v1130
  %1147 = vmatprep.subr.mxu0 0.0
  %1148 = vmatpush1.msra.mxu0 %v1129
  %1149 = vmatprep.subr.mxu0 0.0
  %1150 = vmatpush1.msra.mxu0 %v1128
  %1151 = vmatprep.subr.mxu0 0.0
  %1152 = vmatpush1.msra.mxu0 %v1127
  %1153 = vmatprep.subr.mxu0 0.0
  %1154 = vmatpush1.msra.mxu0 %v1126
  %1155 = vmatprep.subr.mxu0 0.0
  %1156 = vmatpush1.msra.mxu0 %v1125
  %1157 = vmatprep.subr.mxu0 0.0
  %1158 = vmatpush1.msra.mxu0 %v1124
  %1159 = vmatprep.subr.mxu0 0.0
  %1160 = vmatpush1.msra.mxu0 %v1123
  %1161 = vmatprep.subr.mxu0 0.0
  %1162 = vmatpush1.msra.mxu0 %v1122
  %1163 = vmatprep.subr.mxu0 0.0
  %1164 = vmatpush1.msra.mxu0 %v1121
  %1165 = vmatprep.subr.mxu0 0.0
  %1166 = vmatpush1.msra.mxu0 %v1120
  %1167 = vmatprep.subr.mxu0 0.0
  %1168 = vmatpush1.msra.mxu0 %v1119
  %1169 = vmatprep.subr.mxu0 0.0
  %1170 = vmatpush2.msra.mxu0 0.0
  %1171 = vmatprep.subr.mxu0 0.0
  %1172 = vmatpush2.msra.mxu0 0.0
  %1173 = vmatprep.subr.mxu0 0.0
  %1174 = vmatpush2.msra.mxu0 0.0
  %1175 = vmatprep.subr.mxu0 0.0
  %1176 = vmatpush2.msra.mxu0 0.0
  %1177 = vmatprep.subr.mxu0 0.0
  %1178 = vmatpush2.msra.mxu0 0.0
  %1179 = vmatprep.subr.mxu0 0.0
  %1180 = vmatpush2.msra.mxu0 0.0
  %1181 = vmatprep.subr.mxu0 0.0
  %1182 = vmatpush2.msra.mxu0 0.0
  %1183 = vmatprep.subr.mxu0 0.0
  %1184 = vmatpush2.msra.mxu0 0.0
  %1185 = vmatprep.subr.mxu0 0.0
  %1186 = vmatpush2.msra.mxu0 0.0
  %1187 = vmatprep.subr.mxu0 0.0
  %1188 = vmatpush2.msra.mxu0 0.0
  %1189 = vmatprep.subr.mxu0 0.0
  %1190 = vmatpush2.msra.mxu0 0.0
  %1191 = vmatprep.subr.mxu0 0.0
  %1192 = vmatpush2.msra.mxu0 0.0
  %1193 = vmatprep.subr.mxu0 0.0
  %1194 = vmatpush2.msra.mxu0 0.0
  %1195 = vmatprep.subr.mxu0 0.0
  %1196 = vmatpush2.msra.mxu0 0.0
  %1197 = vmatprep.subr.mxu0 0.0
  %1198 = vmatpush2.msra.mxu0 0.0
  %1199 = vmatprep.subr.mxu0 0.0
  %1200 = vmatpush2.msra.mxu0 0.0
  %1201 = vmatprep.mubr.f32.mxu0 0.0
  %1202 = vmatmul.mubr.f32.gmra.mxu0 %v1135
  %v1203 = vpop.f32.mrf.mxu0
  %v1204 = vadd.f32 0.0, %v1203
  %v1205 = vpop.f32.mrf.mxu0
  %1206 = vdwg.mxu0
  %v1207 = vadd.f32 %v1116, %v1204
  %v1208 = vld [vmem:[%s6 + $0x180] sm:$0xff]
  %v1209 = vld [vmem:[%s6 + $0x188] sm:$0xff]
  %v1210 = vld [vmem:[%s6 + $0x190] sm:$0xff]
  %v1211 = vld [vmem:[%s6 + $0x198] sm:$0xff]
  %v1212 = vld [vmem:[%s6 + $0x1a0] sm:$0xff]
  %v1213 = vld [vmem:[%s6 + $0x1a8] sm:$0xff]
  %v1214 = vld [vmem:[%s6 + $0x1b0] sm:$0xff]
  %v1215 = vld [vmem:[%s6 + $0x1b8] sm:$0xff]
  %v1216 = vld [vmem:[%s6 + $0x1c0] sm:$0xff]
  %v1217 = vld [vmem:[%s6 + $0x1c8] sm:$0xff]
  %v1218 = vld [vmem:[%s6 + $0x1d0] sm:$0xff]
  %v1219 = vld [vmem:[%s6 + $0x1d8] sm:$0xff]
  %v1220 = vld [vmem:[%s6 + $0x1e0] sm:$0xff]
  %v1221 = vld [vmem:[%s6 + $0x1e8] sm:$0xff]
  %v1222 = vld [vmem:[%s6 + $0x1f0] sm:$0xff]
  %v1223 = vld [vmem:[%s6 + $0x1f8] sm:$0xff]
  %v1224 = vrot.slane %v940, 6
  %1226 = vmatprep.subr.mxu0 0.0
  %1227 = vmatpush1.msra.mxu0 %v1223
  %1228 = vmatprep.subr.mxu0 0.0
  %1229 = vmatpush1.msra.mxu0 %v1222
  %1230 = vmatprep.subr.mxu0 0.0
  %1231 = vmatpush1.msra.mxu0 %v1221
  %1232 = vmatprep.subr.mxu0 0.0
  %1233 = vmatpush1.msra.mxu0 %v1220
  %1234 = vmatprep.subr.mxu0 0.0
  %1235 = vmatpush1.msra.mxu0 %v1219
  %1236 = vmatprep.subr.mxu0 0.0
  %1237 = vmatpush1.msra.mxu0 %v1218
  %1238 = vmatprep.subr.mxu0 0.0
  %1239 = vmatpush1.msra.mxu0 %v1217
  %1240 = vmatprep.subr.mxu0 0.0
  %1241 = vmatpush1.msra.mxu0 %v1216
  %1242 = vmatprep.subr.mxu0 0.0
  %1243 = vmatpush1.msra.mxu0 %v1215
  %1244 = vmatprep.subr.mxu0 0.0
  %1245 = vmatpush1.msra.mxu0 %v1214
  %1246 = vmatprep.subr.mxu0 0.0
  %1247 = vmatpush1.msra.mxu0 %v1213
  %1248 = vmatprep.subr.mxu0 0.0
  %1249 = vmatpush1.msra.mxu0 %v1212
  %1250 = vmatprep.subr.mxu0 0.0
  %1251 = vmatpush1.msra.mxu0 %v1211
  %1252 = vmatprep.subr.mxu0 0.0
  %1253 = vmatpush1.msra.mxu0 %v1210
  %1254 = vmatprep.subr.mxu0 0.0
  %1255 = vmatpush1.msra.mxu0 %v1209
  %1256 = vmatprep.subr.mxu0 0.0
  %1257 = vmatpush1.msra.mxu0 %v1208
  %1258 = vmatprep.subr.mxu0 0.0
  %1259 = vmatpush2.msra.mxu0 0.0
  %1260 = vmatprep.subr.mxu0 0.0
  %1261 = vmatpush2.msra.mxu0 0.0
  %1262 = vmatprep.subr.mxu0 0.0
  %1263 = vmatpush2.msra.mxu0 0.0
  %1264 = vmatprep.subr.mxu0 0.0
  %1265 = vmatpush2.msra.mxu0 0.0
  %1266 = vmatprep.subr.mxu0 0.0
  %1267 = vmatpush2.msra.mxu0 0.0
  %1268 = vmatprep.subr.mxu0 0.0
  %1269 = vmatpush2.msra.mxu0 0.0
  %1270 = vmatprep.subr.mxu0 0.0
  %1271 = vmatpush2.msra.mxu0 0.0
  %1272 = vmatprep.subr.mxu0 0.0
  %1273 = vmatpush2.msra.mxu0 0.0
  %1274 = vmatprep.subr.mxu0 0.0
  %1275 = vmatpush2.msra.mxu0 0.0
  %1276 = vmatprep.subr.mxu0 0.0
  %1277 = vmatpush2.msra.mxu0 0.0
  %1278 = vmatprep.subr.mxu0 0.0
  %1279 = vmatpush2.msra.mxu0 0.0
  %1280 = vmatprep.subr.mxu0 0.0
  %1281 = vmatpush2.msra.mxu0 0.0
  %1282 = vmatprep.subr.mxu0 0.0
  %1283 = vmatpush2.msra.mxu0 0.0
  %1284 = vmatprep.subr.mxu0 0.0
  %1285 = vmatpush2.msra.mxu0 0.0
  %1286 = vmatprep.subr.mxu0 0.0
  %1287 = vmatpush2.msra.mxu0 0.0
  %1288 = vmatprep.subr.mxu0 0.0
  %1289 = vmatpush2.msra.mxu0 0.0
  %1290 = vmatprep.mubr.f32.mxu0 0.0
  %1291 = vmatmul.mubr.f32.gmra.mxu0 %v1224
  %v1292 = vpop.f32.mrf.mxu0
  %v1293 = vadd.f32 0.0, %v1292
  %v1294 = vpop.f32.mrf.mxu0
  %1295 = vdwg.mxu0
  %v1296 = vadd.f32 %v1207, %v1293
  %v1297 = vld [vmem:[%s6 + $0x200] sm:$0xff]
  %v1298 = vld [vmem:[%s6 + $0x208] sm:$0xff]
  %v1299 = vld [vmem:[%s6 + $0x210] sm:$0xff]
  %v1300 = vld [vmem:[%s6 + $0x218] sm:$0xff]
  %v1301 = vld [vmem:[%s6 + $0x220] sm:$0xff]
  %v1302 = vld [vmem:[%s6 + $0x228] sm:$0xff]
  %v1303 = vld [vmem:[%s6 + $0x230] sm:$0xff]
  %v1304 = vld [vmem:[%s6 + $0x238] sm:$0xff]
  %v1305 = vld [vmem:[%s6 + $0x240] sm:$0xff]
  %v1306 = vld [vmem:[%s6 + $0x248] sm:$0xff]
  %v1307 = vld [vmem:[%s6 + $0x250] sm:$0xff]
  %v1308 = vld [vmem:[%s6 + $0x258] sm:$0xff]
  %v1309 = vld [vmem:[%s6 + $0x260] sm:$0xff]
  %v1310 = vld [vmem:[%s6 + $0x268] sm:$0xff]
  %v1311 = vld [vmem:[%s6 + $0x270] sm:$0xff]
  %v1312 = vld [vmem:[%s6 + $0x278] sm:$0xff]
  %1313 = vmatprep.subr.mxu0 0.0
  %1314 = vmatpush1.msra.mxu0 %v1312
  %1315 = vmatprep.subr.mxu0 0.0
  %1316 = vmatpush1.msra.mxu0 %v1311
  %1317 = vmatprep.subr.mxu0 0.0
  %1318 = vmatpush1.msra.mxu0 %v1310
  %1319 = vmatprep.subr.mxu0 0.0
  %1320 = vmatpush1.msra.mxu0 %v1309
  %1321 = vmatprep.subr.mxu0 0.0
  %1322 = vmatpush1.msra.mxu0 %v1308
  %1323 = vmatprep.subr.mxu0 0.0
  %1324 = vmatpush1.msra.mxu0 %v1307
  %1325 = vmatprep.subr.mxu0 0.0
  %1326 = vmatpush1.msra.mxu0 %v1306
  %1327 = vmatprep.subr.mxu0 0.0
  %1328 = vmatpush1.msra.mxu0 %v1305
  %1329 = vmatprep.subr.mxu0 0.0
  %1330 = vmatpush1.msra.mxu0 %v1304
  %1331 = vmatprep.subr.mxu0 0.0
  %1332 = vmatpush1.msra.mxu0 %v1303
  %1333 = vmatprep.subr.mxu0 0.0
  %1334 = vmatpush1.msra.mxu0 %v1302
  %1335 = vmatprep.subr.mxu0 0.0
  %1336 = vmatpush1.msra.mxu0 %v1301
  %1337 = vmatprep.subr.mxu0 0.0
  %1338 = vmatpush1.msra.mxu0 %v1300
  %1339 = vmatprep.subr.mxu0 0.0
  %1340 = vmatpush1.msra.mxu0 %v1299
  %1341 = vmatprep.subr.mxu0 0.0
  %1342 = vmatpush1.msra.mxu0 %v1298
  %1343 = vmatprep.subr.mxu0 0.0
  %1344 = vmatpush1.msra.mxu0 %v1297
  %1345 = vmatprep.subr.mxu0 0.0
  %1346 = vmatpush2.msra.mxu0 0.0
  %1347 = vmatprep.subr.mxu0 0.0
  %1348 = vmatpush2.msra.mxu0 0.0
  %1349 = vmatprep.subr.mxu0 0.0
  %1350 = vmatpush2.msra.mxu0 0.0
  %1351 = vmatprep.subr.mxu0 0.0
  %1352 = vmatpush2.msra.mxu0 0.0
  %1353 = vmatprep.subr.mxu0 0.0
  %1354 = vmatpush2.msra.mxu0 0.0
  %1355 = vmatprep.subr.mxu0 0.0
  %1356 = vmatpush2.msra.mxu0 0.0
  %1357 = vmatprep.subr.mxu0 0.0
  %1358 = vmatpush2.msra.mxu0 0.0
  %1359 = vmatprep.subr.mxu0 0.0
  %1360 = vmatpush2.msra.mxu0 0.0
  %1361 = vmatprep.subr.mxu0 0.0
  %1362 = vmatpush2.msra.mxu0 0.0
  %1363 = vmatprep.subr.mxu0 0.0
  %1364 = vmatpush2.msra.mxu0 0.0
  %1365 = vmatprep.subr.mxu0 0.0
  %1366 = vmatpush2.msra.mxu0 0.0
  %1367 = vmatprep.subr.mxu0 0.0
  %1368 = vmatpush2.msra.mxu0 0.0
  %1369 = vmatprep.subr.mxu0 0.0
  %1370 = vmatpush2.msra.mxu0 0.0
  %1371 = vmatprep.subr.mxu0 0.0
  %1372 = vmatpush2.msra.mxu0 0.0
  %1373 = vmatprep.subr.mxu0 0.0
  %1374 = vmatpush2.msra.mxu0 0.0
  %1375 = vmatprep.subr.mxu0 0.0
  %1376 = vmatpush2.msra.mxu0 0.0
  %1377 = vmatprep.mubr.f32.mxu0 0.0
  %1378 = vmatmul.mubr.f32.gmra.mxu0 %v941
  %v1379 = vpop.f32.mrf.mxu0
  %v1380 = vadd.f32 0.0, %v1379
  %v1381 = vpop.f32.mrf.mxu0
  %1382 = vdwg.mxu0
  %v1383 = vadd.f32 %v1296, %v1380
  %v1384 = vld [vmem:[%s6 + $0x280] sm:$0xff]
  %v1385 = vld [vmem:[%s6 + $0x288] sm:$0xff]
  %v1386 = vld [vmem:[%s6 + $0x290] sm:$0xff]
  %v1387 = vld [vmem:[%s6 + $0x298] sm:$0xff]
  %v1388 = vld [vmem:[%s6 + $0x2a0] sm:$0xff]
  %v1389 = vld [vmem:[%s6 + $0x2a8] sm:$0xff]
  %v1390 = vld [vmem:[%s6 + $0x2b0] sm:$0xff]
  %v1391 = vld [vmem:[%s6 + $0x2b8] sm:$0xff]
  %v1392 = vld [vmem:[%s6 + $0x2c0] sm:$0xff]
  %v1393 = vld [vmem:[%s6 + $0x2c8] sm:$0xff]
  %v1394 = vld [vmem:[%s6 + $0x2d0] sm:$0xff]
  %v1395 = vld [vmem:[%s6 + $0x2d8] sm:$0xff]
  %v1396 = vld [vmem:[%s6 + $0x2e0] sm:$0xff]
  %v1397 = vld [vmem:[%s6 + $0x2e8] sm:$0xff]
  %v1398 = vld [vmem:[%s6 + $0x2f0] sm:$0xff]
  %v1399 = vld [vmem:[%s6 + $0x2f8] sm:$0xff]
  %v1401 = vrot.slane %v941, 2
  %1403 = vmatprep.subr.mxu0 0.0
  %1404 = vmatpush1.msra.mxu0 %v1399
  %1405 = vmatprep.subr.mxu0 0.0
  %1406 = vmatpush1.msra.mxu0 %v1398
  %1407 = vmatprep.subr.mxu0 0.0
  %1408 = vmatpush1.msra.mxu0 %v1397
  %1409 = vmatprep.subr.mxu0 0.0
  %1410 = vmatpush1.msra.mxu0 %v1396
  %1411 = vmatprep.subr.mxu0 0.0
  %1412 = vmatpush1.msra.mxu0 %v1395
  %1413 = vmatprep.subr.mxu0 0.0
  %1414 = vmatpush1.msra.mxu0 %v1394
  %1415 = vmatprep.subr.mxu0 0.0
  %1416 = vmatpush1.msra.mxu0 %v1393
  %1417 = vmatprep.subr.mxu0 0.0
  %1418 = vmatpush1.msra.mxu0 %v1392
  %1419 = vmatprep.subr.mxu0 0.0
  %1420 = vmatpush1.msra.mxu0 %v1391
  %1421 = vmatprep.subr.mxu0 0.0
  %1422 = vmatpush1.msra.mxu0 %v1390
  %1423 = vmatprep.subr.mxu0 0.0
  %1424 = vmatpush1.msra.mxu0 %v1389
  %1425 = vmatprep.subr.mxu0 0.0
  %1426 = vmatpush1.msra.mxu0 %v1388
  %1427 = vmatprep.subr.mxu0 0.0
  %1428 = vmatpush1.msra.mxu0 %v1387
  %1429 = vmatprep.subr.mxu0 0.0
  %1430 = vmatpush1.msra.mxu0 %v1386
  %1431 = vmatprep.subr.mxu0 0.0
  %1432 = vmatpush1.msra.mxu0 %v1385
  %1433 = vmatprep.subr.mxu0 0.0
  %1434 = vmatpush1.msra.mxu0 %v1384
  %1435 = vmatprep.subr.mxu0 0.0
  %1436 = vmatpush2.msra.mxu0 0.0
  %1437 = vmatprep.subr.mxu0 0.0
  %1438 = vmatpush2.msra.mxu0 0.0
  %1439 = vmatprep.subr.mxu0 0.0
  %1440 = vmatpush2.msra.mxu0 0.0
  %1441 = vmatprep.subr.mxu0 0.0
  %1442 = vmatpush2.msra.mxu0 0.0
  %1443 = vmatprep.subr.mxu0 0.0
  %1444 = vmatpush2.msra.mxu0 0.0
  %1445 = vmatprep.subr.mxu0 0.0
  %1446 = vmatpush2.msra.mxu0 0.0
  %1447 = vmatprep.subr.mxu0 0.0
  %1448 = vmatpush2.msra.mxu0 0.0
  %1449 = vmatprep.subr.mxu0 0.0
  %1450 = vmatpush2.msra.mxu0 0.0
  %1451 = vmatprep.subr.mxu0 0.0
  %1452 = vmatpush2.msra.mxu0 0.0
  %1453 = vmatprep.subr.mxu0 0.0
  %1454 = vmatpush2.msra.mxu0 0.0
  %1455 = vmatprep.subr.mxu0 0.0
  %1456 = vmatpush2.msra.mxu0 0.0
  %1457 = vmatprep.subr.mxu0 0.0
  %1458 = vmatpush2.msra.mxu0 0.0
  %1459 = vmatprep.subr.mxu0 0.0
  %1460 = vmatpush2.msra.mxu0 0.0
  %1461 = vmatprep.subr.mxu0 0.0
  %1462 = vmatpush2.msra.mxu0 0.0
  %1463 = vmatprep.subr.mxu0 0.0
  %1464 = vmatpush2.msra.mxu0 0.0
  %1465 = vmatprep.subr.mxu0 0.0
  %1466 = vmatpush2.msra.mxu0 0.0
  %1467 = vmatprep.mubr.f32.mxu0 0.0
  %1468 = vmatmul.mubr.f32.gmra.mxu0 %v1401
  %v1469 = vpop.f32.mrf.mxu0
  %v1470 = vadd.f32 0.0, %v1469
  %v1471 = vpop.f32.mrf.mxu0
  %1472 = vdwg.mxu0
  %v1473 = vadd.f32 %v1383, %v1470
  %v1474 = vld [vmem:[%s6 + $0x300] sm:$0xff]
  %v1475 = vld [vmem:[%s6 + $0x308] sm:$0xff]
  %v1476 = vld [vmem:[%s6 + $0x310] sm:$0xff]
  %v1477 = vld [vmem:[%s6 + $0x318] sm:$0xff]
  %v1478 = vld [vmem:[%s6 + $0x320] sm:$0xff]
  %v1479 = vld [vmem:[%s6 + $0x328] sm:$0xff]
  %v1480 = vld [vmem:[%s6 + $0x330] sm:$0xff]
  %v1481 = vld [vmem:[%s6 + $0x338] sm:$0xff]
  %v1482 = vld [vmem:[%s6 + $0x340] sm:$0xff]
  %v1483 = vld [vmem:[%s6 + $0x348] sm:$0xff]
  %v1484 = vld [vmem:[%s6 + $0x350] sm:$0xff]
  %v1485 = vld [vmem:[%s6 + $0x358] sm:$0xff]
  %v1486 = vld [vmem:[%s6 + $0x360] sm:$0xff]
  %v1487 = vld [vmem:[%s6 + $0x368] sm:$0xff]
  %v1488 = vld [vmem:[%s6 + $0x370] sm:$0xff]
  %v1489 = vld [vmem:[%s6 + $0x378] sm:$0xff]
  %v1490 = vrot.slane %v941, 4
  %1492 = vmatprep.subr.mxu0 0.0
  %1493 = vmatpush1.msra.mxu0 %v1489
  %1494 = vmatprep.subr.mxu0 0.0
  %1495 = vmatpush1.msra.mxu0 %v1488
  %1496 = vmatprep.subr.mxu0 0.0
  %1497 = vmatpush1.msra.mxu0 %v1487
  %1498 = vmatprep.subr.mxu0 0.0
  %1499 = vmatpush1.msra.mxu0 %v1486
  %1500 = vmatprep.subr.mxu0 0.0
  %1501 = vmatpush1.msra.mxu0 %v1485
  %1502 = vmatprep.subr.mxu0 0.0
  %1503 = vmatpush1.msra.mxu0 %v1484
  %1504 = vmatprep.subr.mxu0 0.0
  %1505 = vmatpush1.msra.mxu0 %v1483
  %1506 = vmatprep.subr.mxu0 0.0
  %1507 = vmatpush1.msra.mxu0 %v1482
  %1508 = vmatprep.subr.mxu0 0.0
  %1509 = vmatpush1.msra.mxu0 %v1481
  %1510 = vmatprep.subr.mxu0 0.0
  %1511 = vmatpush1.msra.mxu0 %v1480
  %1512 = vmatprep.subr.mxu0 0.0
  %1513 = vmatpush1.msra.mxu0 %v1479
  %1514 = vmatprep.subr.mxu0 0.0
  %1515 = vmatpush1.msra.mxu0 %v1478
  %1516 = vmatprep.subr.mxu0 0.0
  %1517 = vmatpush1.msra.mxu0 %v1477
  %1518 = vmatprep.subr.mxu0 0.0
  %1519 = vmatpush1.msra.mxu0 %v1476
  %1520 = vmatprep.subr.mxu0 0.0
  %1521 = vmatpush1.msra.mxu0 %v1475
  %1522 = vmatprep.subr.mxu0 0.0
  %1523 = vmatpush1.msra.mxu0 %v1474
  %1524 = vmatprep.subr.mxu0 0.0
  %1525 = vmatpush2.msra.mxu0 0.0
  %1526 = vmatprep.subr.mxu0 0.0
  %1527 = vmatpush2.msra.mxu0 0.0
  %1528 = vmatprep.subr.mxu0 0.0
  %1529 = vmatpush2.msra.mxu0 0.0
  %1530 = vmatprep.subr.mxu0 0.0
  %1531 = vmatpush2.msra.mxu0 0.0
  %1532 = vmatprep.subr.mxu0 0.0
  %1533 = vmatpush2.msra.mxu0 0.0
  %1534 = vmatprep.subr.mxu0 0.0
  %1535 = vmatpush2.msra.mxu0 0.0
  %1536 = vmatprep.subr.mxu0 0.0
  %1537 = vmatpush2.msra.mxu0 0.0
  %1538 = vmatprep.subr.mxu0 0.0
  %1539 = vmatpush2.msra.mxu0 0.0
  %1540 = vmatprep.subr.mxu0 0.0
  %1541 = vmatpush2.msra.mxu0 0.0
  %1542 = vmatprep.subr.mxu0 0.0
  %1543 = vmatpush2.msra.mxu0 0.0
  %1544 = vmatprep.subr.mxu0 0.0
  %1545 = vmatpush2.msra.mxu0 0.0
  %1546 = vmatprep.subr.mxu0 0.0
  %1547 = vmatpush2.msra.mxu0 0.0
  %1548 = vmatprep.subr.mxu0 0.0
  %1549 = vmatpush2.msra.mxu0 0.0
  %1550 = vmatprep.subr.mxu0 0.0
  %1551 = vmatpush2.msra.mxu0 0.0
  %1552 = vmatprep.subr.mxu0 0.0
  %1553 = vmatpush2.msra.mxu0 0.0
  %1554 = vmatprep.subr.mxu0 0.0
  %1555 = vmatpush2.msra.mxu0 0.0
  %1556 = vmatprep.mubr.f32.mxu0 0.0
  %1557 = vmatmul.mubr.f32.gmra.mxu0 %v1490
  %v1558 = vpop.f32.mrf.mxu0
  %v1559 = vadd.f32 0.0, %v1558
  %v1560 = vpop.f32.mrf.mxu0
  %1561 = vdwg.mxu0
  %v1562 = vadd.f32 %v1473, %v1559
  %v1563 = vld [vmem:[%s6 + $0x380] sm:$0xff]
  %v1564 = vld [vmem:[%s6 + $0x388] sm:$0xff]
  %v1565 = vld [vmem:[%s6 + $0x390] sm:$0xff]
  %v1566 = vld [vmem:[%s6 + $0x398] sm:$0xff]
  %v1567 = vld [vmem:[%s6 + $0x3a0] sm:$0xff]
  %v1568 = vld [vmem:[%s6 + $0x3a8] sm:$0xff]
  %v1569 = vld [vmem:[%s6 + $0x3b0] sm:$0xff]
  %v1570 = vld [vmem:[%s6 + $0x3b8] sm:$0xff]
  %v1571 = vld [vmem:[%s6 + $0x3c0] sm:$0xff]
  %v1572 = vld [vmem:[%s6 + $0x3c8] sm:$0xff]
  %v1573 = vld [vmem:[%s6 + $0x3d0] sm:$0xff]
  %v1574 = vld [vmem:[%s6 + $0x3d8] sm:$0xff]
  %v1575 = vld [vmem:[%s6 + $0x3e0] sm:$0xff]
  %v1576 = vld [vmem:[%s6 + $0x3e8] sm:$0xff]
  %v1577 = vld [vmem:[%s6 + $0x3f0] sm:$0xff]
  %v1578 = vld [vmem:[%s6 + $0x3f8] sm:$0xff]
  %v1579 = vrot.slane %v941, 6
  %1581 = vmatprep.subr.mxu0 0.0
  %1582 = vmatpush1.msra.mxu0 %v1578
  %1583 = vmatprep.subr.mxu0 0.0
  %1584 = vmatpush1.msra.mxu0 %v1577
  %1585 = vmatprep.subr.mxu0 0.0
  %1586 = vmatpush1.msra.mxu0 %v1576
  %1587 = vmatprep.subr.mxu0 0.0
  %1588 = vmatpush1.msra.mxu0 %v1575
  %1589 = vmatprep.subr.mxu0 0.0
  %1590 = vmatpush1.msra.mxu0 %v1574
  %1591 = vmatprep.subr.mxu0 0.0
  %1592 = vmatpush1.msra.mxu0 %v1573
  %1593 = vmatprep.subr.mxu0 0.0
  %1594 = vmatpush1.msra.mxu0 %v1572
  %1595 = vmatprep.subr.mxu0 0.0
  %1596 = vmatpush1.msra.mxu0 %v1571
  %1597 = vmatprep.subr.mxu0 0.0
  %1598 = vmatpush1.msra.mxu0 %v1570
  %1599 = vmatprep.subr.mxu0 0.0
  %1600 = vmatpush1.msra.mxu0 %v1569
  %1601 = vmatprep.subr.mxu0 0.0
  %1602 = vmatpush1.msra.mxu0 %v1568
  %1603 = vmatprep.subr.mxu0 0.0
  %1604 = vmatpush1.msra.mxu0 %v1567
  %1605 = vmatprep.subr.mxu0 0.0
  %1606 = vmatpush1.msra.mxu0 %v1566
  %1607 = vmatprep.subr.mxu0 0.0
  %1608 = vmatpush1.msra.mxu0 %v1565
  %1609 = vmatprep.subr.mxu0 0.0
  %1610 = vmatpush1.msra.mxu0 %v1564
  %1611 = vmatprep.subr.mxu0 0.0
  %1612 = vmatpush1.msra.mxu0 %v1563
  %1613 = vmatprep.subr.mxu0 0.0
  %1614 = vmatpush2.msra.mxu0 0.0
  %1615 = vmatprep.subr.mxu0 0.0
  %1616 = vmatpush2.msra.mxu0 0.0
  %1617 = vmatprep.subr.mxu0 0.0
  %1618 = vmatpush2.msra.mxu0 0.0
  %1619 = vmatprep.subr.mxu0 0.0
  %1620 = vmatpush2.msra.mxu0 0.0
  %1621 = vmatprep.subr.mxu0 0.0
  %1622 = vmatpush2.msra.mxu0 0.0
  %1623 = vmatprep.subr.mxu0 0.0
  %1624 = vmatpush2.msra.mxu0 0.0
  %1625 = vmatprep.subr.mxu0 0.0
  %1626 = vmatpush2.msra.mxu0 0.0
  %1627 = vmatprep.subr.mxu0 0.0
  %1628 = vmatpush2.msra.mxu0 0.0
  %1629 = vmatprep.subr.mxu0 0.0
  %1630 = vmatpush2.msra.mxu0 0.0
  %1631 = vmatprep.subr.mxu0 0.0
  %1632 = vmatpush2.msra.mxu0 0.0
  %1633 = vmatprep.subr.mxu0 0.0
  %1634 = vmatpush2.msra.mxu0 0.0
  %1635 = vmatprep.subr.mxu0 0.0
  %1636 = vmatpush2.msra.mxu0 0.0
  %1637 = vmatprep.subr.mxu0 0.0
  %1638 = vmatpush2.msra.mxu0 0.0
  %1639 = vmatprep.subr.mxu0 0.0
  %1640 = vmatpush2.msra.mxu0 0.0
  %1641 = vmatprep.subr.mxu0 0.0
  %1642 = vmatpush2.msra.mxu0 0.0
  %1643 = vmatprep.subr.mxu0 0.0
  %1644 = vmatpush2.msra.mxu0 0.0
  %1645 = vmatprep.mubr.f32.mxu0 0.0
  %1646 = vmatmul.mubr.f32.gmra.mxu0 %v1579
  %v1647 = vpop.f32.mrf.mxu0
  %v1648 = vadd.f32 0.0, %v1647
  %v1649 = vpop.f32.mrf.mxu0
  %1650 = vdwg.mxu0
  %v1651 = vadd.f32 %v1562, %v1648
  %v1652 = vld [vmem:[%s6 + $0x400] sm:$0xff]
  %v1653 = vld [vmem:[%s6 + $0x408] sm:$0xff]
  %v1654 = vld [vmem:[%s6 + $0x410] sm:$0xff]
  %v1655 = vld [vmem:[%s6 + $0x418] sm:$0xff]
  %v1656 = vld [vmem:[%s6 + $0x420] sm:$0xff]
  %v1657 = vld [vmem:[%s6 + $0x428] sm:$0xff]
  %v1658 = vld [vmem:[%s6 + $0x430] sm:$0xff]
  %v1659 = vld [vmem:[%s6 + $0x438] sm:$0xff]
  %v1660 = vld [vmem:[%s6 + $0x440] sm:$0xff]
  %v1661 = vld [vmem:[%s6 + $0x448] sm:$0xff]
  %v1662 = vld [vmem:[%s6 + $0x450] sm:$0xff]
  %v1663 = vld [vmem:[%s6 + $0x458] sm:$0xff]
  %v1664 = vld [vmem:[%s6 + $0x460] sm:$0xff]
  %v1665 = vld [vmem:[%s6 + $0x468] sm:$0xff]
  %v1666 = vld [vmem:[%s6 + $0x470] sm:$0xff]
  %v1667 = vld [vmem:[%s6 + $0x478] sm:$0xff]
  %1668 = vmatprep.subr.mxu0 0.0
  %1669 = vmatpush1.msra.mxu0 %v1667
  %1670 = vmatprep.subr.mxu0 0.0
  %1671 = vmatpush1.msra.mxu0 %v1666
  %1672 = vmatprep.subr.mxu0 0.0
  %1673 = vmatpush1.msra.mxu0 %v1665
  %1674 = vmatprep.subr.mxu0 0.0
  %1675 = vmatpush1.msra.mxu0 %v1664
  %1676 = vmatprep.subr.mxu0 0.0
  %1677 = vmatpush1.msra.mxu0 %v1663
  %1678 = vmatprep.subr.mxu0 0.0
  %1679 = vmatpush1.msra.mxu0 %v1662
  %1680 = vmatprep.subr.mxu0 0.0
  %1681 = vmatpush1.msra.mxu0 %v1661
  %1682 = vmatprep.subr.mxu0 0.0
  %1683 = vmatpush1.msra.mxu0 %v1660
  %1684 = vmatprep.subr.mxu0 0.0
  %1685 = vmatpush1.msra.mxu0 %v1659
  %1686 = vmatprep.subr.mxu0 0.0
  %1687 = vmatpush1.msra.mxu0 %v1658
  %1688 = vmatprep.subr.mxu0 0.0
  %1689 = vmatpush1.msra.mxu0 %v1657
  %1690 = vmatprep.subr.mxu0 0.0
  %1691 = vmatpush1.msra.mxu0 %v1656
  %1692 = vmatprep.subr.mxu0 0.0
  %1693 = vmatpush1.msra.mxu0 %v1655
  %1694 = vmatprep.subr.mxu0 0.0
  %1695 = vmatpush1.msra.mxu0 %v1654
  %1696 = vmatprep.subr.mxu0 0.0
  %1697 = vmatpush1.msra.mxu0 %v1653
  %1698 = vmatprep.subr.mxu0 0.0
  %1699 = vmatpush1.msra.mxu0 %v1652
  %1700 = vmatprep.subr.mxu0 0.0
  %1701 = vmatpush2.msra.mxu0 0.0
  %1702 = vmatprep.subr.mxu0 0.0
  %1703 = vmatpush2.msra.mxu0 0.0
  %1704 = vmatprep.subr.mxu0 0.0
  %1705 = vmatpush2.msra.mxu0 0.0
  %1706 = vmatprep.subr.mxu0 0.0
  %1707 = vmatpush2.msra.mxu0 0.0
  %1708 = vmatprep.subr.mxu0 0.0
  %1709 = vmatpush2.msra.mxu0 0.0
  %1710 = vmatprep.subr.mxu0 0.0
  %1711 = vmatpush2.msra.mxu0 0.0
  %1712 = vmatprep.subr.mxu0 0.0
  %1713 = vmatpush2.msra.mxu0 0.0
  %1714 = vmatprep.subr.mxu0 0.0
  %1715 = vmatpush2.msra.mxu0 0.0
  %1716 = vmatprep.subr.mxu0 0.0
  %1717 = vmatpush2.msra.mxu0 0.0
  %1718 = vmatprep.subr.mxu0 0.0
  %1719 = vmatpush2.msra.mxu0 0.0
  %1720 = vmatprep.subr.mxu0 0.0
  %1721 = vmatpush2.msra.mxu0 0.0
  %1722 = vmatprep.subr.mxu0 0.0
  %1723 = vmatpush2.msra.mxu0 0.0
  %1724 = vmatprep.subr.mxu0 0.0
  %1725 = vmatpush2.msra.mxu0 0.0
  %1726 = vmatprep.subr.mxu0 0.0
  %1727 = vmatpush2.msra.mxu0 0.0
  %1728 = vmatprep.subr.mxu0 0.0
  %1729 = vmatpush2.msra.mxu0 0.0
  %1730 = vmatprep.subr.mxu0 0.0
  %1731 = vmatpush2.msra.mxu0 0.0
  %1732 = vmatprep.mubr.f32.mxu0 0.0
  %1733 = vmatmul.mubr.f32.gmra.mxu0 %v942
  %v1734 = vpop.f32.mrf.mxu0
  %v1735 = vadd.f32 0.0, %v1734
  %v1736 = vpop.f32.mrf.mxu0
  %1737 = vdwg.mxu0
  %v1738 = vadd.f32 %v1651, %v1735
  %v1739 = vld [vmem:[%s6 + $0x480] sm:$0xff]
  %v1740 = vld [vmem:[%s6 + $0x488] sm:$0xff]
  %v1741 = vld [vmem:[%s6 + $0x490] sm:$0xff]
  %v1742 = vld [vmem:[%s6 + $0x498] sm:$0xff]
  %v1743 = vld [vmem:[%s6 + $0x4a0] sm:$0xff]
  %v1744 = vld [vmem:[%s6 + $0x4a8] sm:$0xff]
  %v1745 = vld [vmem:[%s6 + $0x4b0] sm:$0xff]
  %v1746 = vld [vmem:[%s6 + $0x4b8] sm:$0xff]
  %v1747 = vld [vmem:[%s6 + $0x4c0] sm:$0xff]
  %v1748 = vld [vmem:[%s6 + $0x4c8] sm:$0xff]
  %v1749 = vld [vmem:[%s6 + $0x4d0] sm:$0xff]
  %v1750 = vld [vmem:[%s6 + $0x4d8] sm:$0xff]
  %v1751 = vld [vmem:[%s6 + $0x4e0] sm:$0xff]
  %v1752 = vld [vmem:[%s6 + $0x4e8] sm:$0xff]
  %v1753 = vld [vmem:[%s6 + $0x4f0] sm:$0xff]
  %v1754 = vld [vmem:[%s6 + $0x4f8] sm:$0xff]
  %v1756 = vrot.slane %v942, 2
  %1758 = vmatprep.subr.mxu0 0.0
  %1759 = vmatpush1.msra.mxu0 %v1754
  %1760 = vmatprep.subr.mxu0 0.0
  %1761 = vmatpush1.msra.mxu0 %v1753
  %1762 = vmatprep.subr.mxu0 0.0
  %1763 = vmatpush1.msra.mxu0 %v1752
  %1764 = vmatprep.subr.mxu0 0.0
  %1765 = vmatpush1.msra.mxu0 %v1751
  %1766 = vmatprep.subr.mxu0 0.0
  %1767 = vmatpush1.msra.mxu0 %v1750
  %1768 = vmatprep.subr.mxu0 0.0
  %1769 = vmatpush1.msra.mxu0 %v1749
  %1770 = vmatprep.subr.mxu0 0.0
  %1771 = vmatpush1.msra.mxu0 %v1748
  %1772 = vmatprep.subr.mxu0 0.0
  %1773 = vmatpush1.msra.mxu0 %v1747
  %1774 = vmatprep.subr.mxu0 0.0
  %1775 = vmatpush1.msra.mxu0 %v1746
  %1776 = vmatprep.subr.mxu0 0.0
  %1777 = vmatpush1.msra.mxu0 %v1745
  %1778 = vmatprep.subr.mxu0 0.0
  %1779 = vmatpush1.msra.mxu0 %v1744
  %1780 = vmatprep.subr.mxu0 0.0
  %1781 = vmatpush1.msra.mxu0 %v1743
  %1782 = vmatprep.subr.mxu0 0.0
  %1783 = vmatpush1.msra.mxu0 %v1742
  %1784 = vmatprep.subr.mxu0 0.0
  %1785 = vmatpush1.msra.mxu0 %v1741
  %1786 = vmatprep.subr.mxu0 0.0
  %1787 = vmatpush1.msra.mxu0 %v1740
  %1788 = vmatprep.subr.mxu0 0.0
  %1789 = vmatpush1.msra.mxu0 %v1739
  %1790 = vmatprep.subr.mxu0 0.0
  %1791 = vmatpush2.msra.mxu0 0.0
  %1792 = vmatprep.subr.mxu0 0.0
  %1793 = vmatpush2.msra.mxu0 0.0
  %1794 = vmatprep.subr.mxu0 0.0
  %1795 = vmatpush2.msra.mxu0 0.0
  %1796 = vmatprep.subr.mxu0 0.0
  %1797 = vmatpush2.msra.mxu0 0.0
  %1798 = vmatprep.subr.mxu0 0.0
  %1799 = vmatpush2.msra.mxu0 0.0
  %1800 = vmatprep.subr.mxu0 0.0
  %1801 = vmatpush2.msra.mxu0 0.0
  %1802 = vmatprep.subr.mxu0 0.0
  %1803 = vmatpush2.msra.mxu0 0.0
  %1804 = vmatprep.subr.mxu0 0.0
  %1805 = vmatpush2.msra.mxu0 0.0
  %1806 = vmatprep.subr.mxu0 0.0
  %1807 = vmatpush2.msra.mxu0 0.0
  %1808 = vmatprep.subr.mxu0 0.0
  %1809 = vmatpush2.msra.mxu0 0.0
  %1810 = vmatprep.subr.mxu0 0.0
  %1811 = vmatpush2.msra.mxu0 0.0
  %1812 = vmatprep.subr.mxu0 0.0
  %1813 = vmatpush2.msra.mxu0 0.0
  %1814 = vmatprep.subr.mxu0 0.0
  %1815 = vmatpush2.msra.mxu0 0.0
  %1816 = vmatprep.subr.mxu0 0.0
  %1817 = vmatpush2.msra.mxu0 0.0
  %1818 = vmatprep.subr.mxu0 0.0
  %1819 = vmatpush2.msra.mxu0 0.0
  %1820 = vmatprep.subr.mxu0 0.0
  %1821 = vmatpush2.msra.mxu0 0.0
  %1822 = vmatprep.mubr.f32.mxu0 0.0
  %1823 = vmatmul.mubr.f32.gmra.mxu0 %v1756
  %v1824 = vpop.f32.mrf.mxu0
  %v1825 = vadd.f32 0.0, %v1824
  %v1826 = vpop.f32.mrf.mxu0
  %1827 = vdwg.mxu0
  %v1828 = vadd.f32 %v1738, %v1825
  %v1829 = vld [vmem:[%s6 + $0x500] sm:$0xff]
  %v1830 = vld [vmem:[%s6 + $0x508] sm:$0xff]
  %v1831 = vld [vmem:[%s6 + $0x510] sm:$0xff]
  %v1832 = vld [vmem:[%s6 + $0x518] sm:$0xff]
  %v1833 = vld [vmem:[%s6 + $0x520] sm:$0xff]
  %v1834 = vld [vmem:[%s6 + $0x528] sm:$0xff]
  %v1835 = vld [vmem:[%s6 + $0x530] sm:$0xff]
  %v1836 = vld [vmem:[%s6 + $0x538] sm:$0xff]
  %v1837 = vld [vmem:[%s6 + $0x540] sm:$0xff]
  %v1838 = vld [vmem:[%s6 + $0x548] sm:$0xff]
  %v1839 = vld [vmem:[%s6 + $0x550] sm:$0xff]
  %v1840 = vld [vmem:[%s6 + $0x558] sm:$0xff]
  %v1841 = vld [vmem:[%s6 + $0x560] sm:$0xff]
  %v1842 = vld [vmem:[%s6 + $0x568] sm:$0xff]
  %v1843 = vld [vmem:[%s6 + $0x570] sm:$0xff]
  %v1844 = vld [vmem:[%s6 + $0x578] sm:$0xff]
  %v1845 = vrot.slane %v942, 4
  %1847 = vmatprep.subr.mxu0 0.0
  %1848 = vmatpush1.msra.mxu0 %v1844
  %1849 = vmatprep.subr.mxu0 0.0
  %1850 = vmatpush1.msra.mxu0 %v1843
  %1851 = vmatprep.subr.mxu0 0.0
  %1852 = vmatpush1.msra.mxu0 %v1842
  %1853 = vmatprep.subr.mxu0 0.0
  %1854 = vmatpush1.msra.mxu0 %v1841
  %1855 = vmatprep.subr.mxu0 0.0
  %1856 = vmatpush1.msra.mxu0 %v1840
  %1857 = vmatprep.subr.mxu0 0.0
  %1858 = vmatpush1.msra.mxu0 %v1839
  %1859 = vmatprep.subr.mxu0 0.0
  %1860 = vmatpush1.msra.mxu0 %v1838
  %1861 = vmatprep.subr.mxu0 0.0
  %1862 = vmatpush1.msra.mxu0 %v1837
  %1863 = vmatprep.subr.mxu0 0.0
  %1864 = vmatpush1.msra.mxu0 %v1836
  %1865 = vmatprep.subr.mxu0 0.0
  %1866 = vmatpush1.msra.mxu0 %v1835
  %1867 = vmatprep.subr.mxu0 0.0
  %1868 = vmatpush1.msra.mxu0 %v1834
  %1869 = vmatprep.subr.mxu0 0.0
  %1870 = vmatpush1.msra.mxu0 %v1833
  %1871 = vmatprep.subr.mxu0 0.0
  %1872 = vmatpush1.msra.mxu0 %v1832
  %1873 = vmatprep.subr.mxu0 0.0
  %1874 = vmatpush1.msra.mxu0 %v1831
  %1875 = vmatprep.subr.mxu0 0.0
  %1876 = vmatpush1.msra.mxu0 %v1830
  %1877 = vmatprep.subr.mxu0 0.0
  %1878 = vmatpush1.msra.mxu0 %v1829
  %1879 = vmatprep.subr.mxu0 0.0
  %1880 = vmatpush2.msra.mxu0 0.0
  %1881 = vmatprep.subr.mxu0 0.0
  %1882 = vmatpush2.msra.mxu0 0.0
  %1883 = vmatprep.subr.mxu0 0.0
  %1884 = vmatpush2.msra.mxu0 0.0
  %1885 = vmatprep.subr.mxu0 0.0
  %1886 = vmatpush2.msra.mxu0 0.0
  %1887 = vmatprep.subr.mxu0 0.0
  %1888 = vmatpush2.msra.mxu0 0.0
  %1889 = vmatprep.subr.mxu0 0.0
  %1890 = vmatpush2.msra.mxu0 0.0
  %1891 = vmatprep.subr.mxu0 0.0
  %1892 = vmatpush2.msra.mxu0 0.0
  %1893 = vmatprep.subr.mxu0 0.0
  %1894 = vmatpush2.msra.mxu0 0.0
  %1895 = vmatprep.subr.mxu0 0.0
  %1896 = vmatpush2.msra.mxu0 0.0
  %1897 = vmatprep.subr.mxu0 0.0
  %1898 = vmatpush2.msra.mxu0 0.0
  %1899 = vmatprep.subr.mxu0 0.0
  %1900 = vmatpush2.msra.mxu0 0.0
  %1901 = vmatprep.subr.mxu0 0.0
  %1902 = vmatpush2.msra.mxu0 0.0
  %1903 = vmatprep.subr.mxu0 0.0
  %1904 = vmatpush2.msra.mxu0 0.0
  %1905 = vmatprep.subr.mxu0 0.0
  %1906 = vmatpush2.msra.mxu0 0.0
  %1907 = vmatprep.subr.mxu0 0.0
  %1908 = vmatpush2.msra.mxu0 0.0
  %1909 = vmatprep.subr.mxu0 0.0
  %1910 = vmatpush2.msra.mxu0 0.0
  %1911 = vmatprep.mubr.f32.mxu0 0.0
  %1912 = vmatmul.mubr.f32.gmra.mxu0 %v1845
  %v1913 = vpop.f32.mrf.mxu0
  %v1914 = vadd.f32 0.0, %v1913
  %v1915 = vpop.f32.mrf.mxu0
  %1916 = vdwg.mxu0
  %v1917 = vadd.f32 %v1828, %v1914
  %v1918 = vld [vmem:[%s6 + $0x580] sm:$0xff]
  %v1919 = vld [vmem:[%s6 + $0x588] sm:$0xff]
  %v1920 = vld [vmem:[%s6 + $0x590] sm:$0xff]
  %v1921 = vld [vmem:[%s6 + $0x598] sm:$0xff]
  %v1922 = vld [vmem:[%s6 + $0x5a0] sm:$0xff]
  %v1923 = vld [vmem:[%s6 + $0x5a8] sm:$0xff]
  %v1924 = vld [vmem:[%s6 + $0x5b0] sm:$0xff]
  %v1925 = vld [vmem:[%s6 + $0x5b8] sm:$0xff]
  %v1926 = vld [vmem:[%s6 + $0x5c0] sm:$0xff]
  %v1927 = vld [vmem:[%s6 + $0x5c8] sm:$0xff]
  %v1928 = vld [vmem:[%s6 + $0x5d0] sm:$0xff]
  %v1929 = vld [vmem:[%s6 + $0x5d8] sm:$0xff]
  %v1930 = vld [vmem:[%s6 + $0x5e0] sm:$0xff]
  %v1931 = vld [vmem:[%s6 + $0x5e8] sm:$0xff]
  %v1932 = vld [vmem:[%s6 + $0x5f0] sm:$0xff]
  %v1933 = vld [vmem:[%s6 + $0x5f8] sm:$0xff]
  %v1934 = vrot.slane %v942, 6
  %1936 = vmatprep.subr.mxu0 0.0
  %1937 = vmatpush1.msra.mxu0 %v1933
  %1938 = vmatprep.subr.mxu0 0.0
  %1939 = vmatpush1.msra.mxu0 %v1932
  %1940 = vmatprep.subr.mxu0 0.0
  %1941 = vmatpush1.msra.mxu0 %v1931
  %1942 = vmatprep.subr.mxu0 0.0
  %1943 = vmatpush1.msra.mxu0 %v1930
  %1944 = vmatprep.subr.mxu0 0.0
  %1945 = vmatpush1.msra.mxu0 %v1929
  %1946 = vmatprep.subr.mxu0 0.0
  %1947 = vmatpush1.msra.mxu0 %v1928
  %1948 = vmatprep.subr.mxu0 0.0
  %1949 = vmatpush1.msra.mxu0 %v1927
  %1950 = vmatprep.subr.mxu0 0.0
  %1951 = vmatpush1.msra.mxu0 %v1926
  %1952 = vmatprep.subr.mxu0 0.0
  %1953 = vmatpush1.msra.mxu0 %v1925
  %1954 = vmatprep.subr.mxu0 0.0
  %1955 = vmatpush1.msra.mxu0 %v1924
  %1956 = vmatprep.subr.mxu0 0.0
  %1957 = vmatpush1.msra.mxu0 %v1923
  %1958 = vmatprep.subr.mxu0 0.0
  %1959 = vmatpush1.msra.mxu0 %v1922
  %1960 = vmatprep.subr.mxu0 0.0
  %1961 = vmatpush1.msra.mxu0 %v1921
  %1962 = vmatprep.subr.mxu0 0.0
  %1963 = vmatpush1.msra.mxu0 %v1920
  %1964 = vmatprep.subr.mxu0 0.0
  %1965 = vmatpush1.msra.mxu0 %v1919
  %1966 = vmatprep.subr.mxu0 0.0
  %1967 = vmatpush1.msra.mxu0 %v1918
  %1968 = vmatprep.subr.mxu0 0.0
  %1969 = vmatpush2.msra.mxu0 0.0
  %1970 = vmatprep.subr.mxu0 0.0
  %1971 = vmatpush2.msra.mxu0 0.0
  %1972 = vmatprep.subr.mxu0 0.0
  %1973 = vmatpush2.msra.mxu0 0.0
  %1974 = vmatprep.subr.mxu0 0.0
  %1975 = vmatpush2.msra.mxu0 0.0
  %1976 = vmatprep.subr.mxu0 0.0
  %1977 = vmatpush2.msra.mxu0 0.0
  %1978 = vmatprep.subr.mxu0 0.0
  %1979 = vmatpush2.msra.mxu0 0.0
  %1980 = vmatprep.subr.mxu0 0.0
  %1981 = vmatpush2.msra.mxu0 0.0
  %1982 = vmatprep.subr.mxu0 0.0
  %1983 = vmatpush2.msra.mxu0 0.0
  %1984 = vmatprep.subr.mxu0 0.0
  %1985 = vmatpush2.msra.mxu0 0.0
  %1986 = vmatprep.subr.mxu0 0.0
  %1987 = vmatpush2.msra.mxu0 0.0
  %1988 = vmatprep.subr.mxu0 0.0
  %1989 = vmatpush2.msra.mxu0 0.0
  %1990 = vmatprep.subr.mxu0 0.0
  %1991 = vmatpush2.msra.mxu0 0.0
  %1992 = vmatprep.subr.mxu0 0.0
  %1993 = vmatpush2.msra.mxu0 0.0
  %1994 = vmatprep.subr.mxu0 0.0
  %1995 = vmatpush2.msra.mxu0 0.0
  %1996 = vmatprep.subr.mxu0 0.0
  %1997 = vmatpush2.msra.mxu0 0.0
  %1998 = vmatprep.subr.mxu0 0.0
  %1999 = vmatpush2.msra.mxu0 0.0
  %2000 = vmatprep.mubr.f32.mxu0 0.0
  %2001 = vmatmul.mubr.f32.gmra.mxu0 %v1934
  %v2002 = vpop.f32.mrf.mxu0
  %v2003 = vadd.f32 0.0, %v2002
  %v2004 = vpop.f32.mrf.mxu0
  %2005 = vdwg.mxu0
  %v2006 = vadd.f32 %v1917, %v2003
  %v2007 = vld [vmem:[%s6 + $0x600] sm:$0xff]
  %v2008 = vld [vmem:[%s6 + $0x608] sm:$0xff]
  %v2009 = vld [vmem:[%s6 + $0x610] sm:$0xff]
  %v2010 = vld [vmem:[%s6 + $0x618] sm:$0xff]
  %v2011 = vld [vmem:[%s6 + $0x620] sm:$0xff]
  %v2012 = vld [vmem:[%s6 + $0x628] sm:$0xff]
  %v2013 = vld [vmem:[%s6 + $0x630] sm:$0xff]
  %v2014 = vld [vmem:[%s6 + $0x638] sm:$0xff]
  %v2015 = vld [vmem:[%s6 + $0x640] sm:$0xff]
  %v2016 = vld [vmem:[%s6 + $0x648] sm:$0xff]
  %v2017 = vld [vmem:[%s6 + $0x650] sm:$0xff]
  %v2018 = vld [vmem:[%s6 + $0x658] sm:$0xff]
  %v2019 = vld [vmem:[%s6 + $0x660] sm:$0xff]
  %v2020 = vld [vmem:[%s6 + $0x668] sm:$0xff]
  %v2021 = vld [vmem:[%s6 + $0x670] sm:$0xff]
  %v2022 = vld [vmem:[%s6 + $0x678] sm:$0xff]
  %2023 = vmatprep.subr.mxu0 0.0
  %2024 = vmatpush1.msra.mxu0 %v2022
  %2025 = vmatprep.subr.mxu0 0.0
  %2026 = vmatpush1.msra.mxu0 %v2021
  %2027 = vmatprep.subr.mxu0 0.0
  %2028 = vmatpush1.msra.mxu0 %v2020
  %2029 = vmatprep.subr.mxu0 0.0
  %2030 = vmatpush1.msra.mxu0 %v2019
  %2031 = vmatprep.subr.mxu0 0.0
  %2032 = vmatpush1.msra.mxu0 %v2018
  %2033 = vmatprep.subr.mxu0 0.0
  %2034 = vmatpush1.msra.mxu0 %v2017
  %2035 = vmatprep.subr.mxu0 0.0
  %2036 = vmatpush1.msra.mxu0 %v2016
  %2037 = vmatprep.subr.mxu0 0.0
  %2038 = vmatpush1.msra.mxu0 %v2015
  %2039 = vmatprep.subr.mxu0 0.0
  %2040 = vmatpush1.msra.mxu0 %v2014
  %2041 = vmatprep.subr.mxu0 0.0
  %2042 = vmatpush1.msra.mxu0 %v2013
  %2043 = vmatprep.subr.mxu0 0.0
  %2044 = vmatpush1.msra.mxu0 %v2012
  %2045 = vmatprep.subr.mxu0 0.0
  %2046 = vmatpush1.msra.mxu0 %v2011
  %2047 = vmatprep.subr.mxu0 0.0
  %2048 = vmatpush1.msra.mxu0 %v2010
  %2049 = vmatprep.subr.mxu0 0.0
  %2050 = vmatpush1.msra.mxu0 %v2009
  %2051 = vmatprep.subr.mxu0 0.0
  %2052 = vmatpush1.msra.mxu0 %v2008
  %2053 = vmatprep.subr.mxu0 0.0
  %2054 = vmatpush1.msra.mxu0 %v2007
  %2055 = vmatprep.subr.mxu0 0.0
  %2056 = vmatpush2.msra.mxu0 0.0
  %2057 = vmatprep.subr.mxu0 0.0
  %2058 = vmatpush2.msra.mxu0 0.0
  %2059 = vmatprep.subr.mxu0 0.0
  %2060 = vmatpush2.msra.mxu0 0.0
  %2061 = vmatprep.subr.mxu0 0.0
  %2062 = vmatpush2.msra.mxu0 0.0
  %2063 = vmatprep.subr.mxu0 0.0
  %2064 = vmatpush2.msra.mxu0 0.0
  %2065 = vmatprep.subr.mxu0 0.0
  %2066 = vmatpush2.msra.mxu0 0.0
  %2067 = vmatprep.subr.mxu0 0.0
  %2068 = vmatpush2.msra.mxu0 0.0
  %2069 = vmatprep.subr.mxu0 0.0
  %2070 = vmatpush2.msra.mxu0 0.0
  %2071 = vmatprep.subr.mxu0 0.0
  %2072 = vmatpush2.msra.mxu0 0.0
  %2073 = vmatprep.subr.mxu0 0.0
  %2074 = vmatpush2.msra.mxu0 0.0
  %2075 = vmatprep.subr.mxu0 0.0
  %2076 = vmatpush2.msra.mxu0 0.0
  %2077 = vmatprep.subr.mxu0 0.0
  %2078 = vmatpush2.msra.mxu0 0.0
  %2079 = vmatprep.subr.mxu0 0.0
  %2080 = vmatpush2.msra.mxu0 0.0
  %2081 = vmatprep.subr.mxu0 0.0
  %2082 = vmatpush2.msra.mxu0 0.0
  %2083 = vmatprep.subr.mxu0 0.0
  %2084 = vmatpush2.msra.mxu0 0.0
  %2085 = vmatprep.subr.mxu0 0.0
  %2086 = vmatpush2.msra.mxu0 0.0
  %2087 = vmatprep.mubr.f32.mxu0 0.0
  %2088 = vmatmul.mubr.f32.gmra.mxu0 %v943
  %v2089 = vpop.f32.mrf.mxu0
  %v2090 = vadd.f32 0.0, %v2089
  %v2091 = vpop.f32.mrf.mxu0
  %2092 = vdwg.mxu0
  %v2093 = vadd.f32 %v2006, %v2090
  %v2094 = vld [vmem:[%s6 + $0x680] sm:$0xff]
  %v2095 = vld [vmem:[%s6 + $0x688] sm:$0xff]
  %v2096 = vld [vmem:[%s6 + $0x690] sm:$0xff]
  %v2097 = vld [vmem:[%s6 + $0x698] sm:$0xff]
  %v2098 = vld [vmem:[%s6 + $0x6a0] sm:$0xff]
  %v2099 = vld [vmem:[%s6 + $0x6a8] sm:$0xff]
  %v2100 = vld [vmem:[%s6 + $0x6b0] sm:$0xff]
  %v2101 = vld [vmem:[%s6 + $0x6b8] sm:$0xff]
  %v2102 = vld [vmem:[%s6 + $0x6c0] sm:$0xff]
  %v2103 = vld [vmem:[%s6 + $0x6c8] sm:$0xff]
  %v2104 = vld [vmem:[%s6 + $0x6d0] sm:$0xff]
  %v2105 = vld [vmem:[%s6 + $0x6d8] sm:$0xff]
  %v2106 = vld [vmem:[%s6 + $0x6e0] sm:$0xff]
  %v2107 = vld [vmem:[%s6 + $0x6e8] sm:$0xff]
  %v2108 = vld [vmem:[%s6 + $0x6f0] sm:$0xff]
  %v2109 = vld [vmem:[%s6 + $0x6f8] sm:$0xff]
  %v2111 = vrot.slane %v943, 2
  %2113 = vmatprep.subr.mxu0 0.0
  %2114 = vmatpush1.msra.mxu0 %v2109
  %2115 = vmatprep.subr.mxu0 0.0
  %2116 = vmatpush1.msra.mxu0 %v2108
  %2117 = vmatprep.subr.mxu0 0.0
  %2118 = vmatpush1.msra.mxu0 %v2107
  %2119 = vmatprep.subr.mxu0 0.0
  %2120 = vmatpush1.msra.mxu0 %v2106
  %2121 = vmatprep.subr.mxu0 0.0
  %2122 = vmatpush1.msra.mxu0 %v2105
  %2123 = vmatprep.subr.mxu0 0.0
  %2124 = vmatpush1.msra.mxu0 %v2104
  %2125 = vmatprep.subr.mxu0 0.0
  %2126 = vmatpush1.msra.mxu0 %v2103
  %2127 = vmatprep.subr.mxu0 0.0
  %2128 = vmatpush1.msra.mxu0 %v2102
  %2129 = vmatprep.subr.mxu0 0.0
  %2130 = vmatpush1.msra.mxu0 %v2101
  %2131 = vmatprep.subr.mxu0 0.0
  %2132 = vmatpush1.msra.mxu0 %v2100
  %2133 = vmatprep.subr.mxu0 0.0
  %2134 = vmatpush1.msra.mxu0 %v2099
  %2135 = vmatprep.subr.mxu0 0.0
  %2136 = vmatpush1.msra.mxu0 %v2098
  %2137 = vmatprep.subr.mxu0 0.0
  %2138 = vmatpush1.msra.mxu0 %v2097
  %2139 = vmatprep.subr.mxu0 0.0
  %2140 = vmatpush1.msra.mxu0 %v2096
  %2141 = vmatprep.subr.mxu0 0.0
  %2142 = vmatpush1.msra.mxu0 %v2095
  %2143 = vmatprep.subr.mxu0 0.0
  %2144 = vmatpush1.msra.mxu0 %v2094
  %2145 = vmatprep.subr.mxu0 0.0
  %2146 = vmatpush2.msra.mxu0 0.0
  %2147 = vmatprep.subr.mxu0 0.0
  %2148 = vmatpush2.msra.mxu0 0.0
  %2149 = vmatprep.subr.mxu0 0.0
  %2150 = vmatpush2.msra.mxu0 0.0
  %2151 = vmatprep.subr.mxu0 0.0
  %2152 = vmatpush2.msra.mxu0 0.0
  %2153 = vmatprep.subr.mxu0 0.0
  %2154 = vmatpush2.msra.mxu0 0.0
  %2155 = vmatprep.subr.mxu0 0.0
  %2156 = vmatpush2.msra.mxu0 0.0
  %2157 = vmatprep.subr.mxu0 0.0
  %2158 = vmatpush2.msra.mxu0 0.0
  %2159 = vmatprep.subr.mxu0 0.0
  %2160 = vmatpush2.msra.mxu0 0.0
  %2161 = vmatprep.subr.mxu0 0.0
  %2162 = vmatpush2.msra.mxu0 0.0
  %2163 = vmatprep.subr.mxu0 0.0
  %2164 = vmatpush2.msra.mxu0 0.0
  %2165 = vmatprep.subr.mxu0 0.0
  %2166 = vmatpush2.msra.mxu0 0.0
  %2167 = vmatprep.subr.mxu0 0.0
  %2168 = vmatpush2.msra.mxu0 0.0
  %2169 = vmatprep.subr.mxu0 0.0
  %2170 = vmatpush2.msra.mxu0 0.0
  %2171 = vmatprep.subr.mxu0 0.0
  %2172 = vmatpush2.msra.mxu0 0.0
  %2173 = vmatprep.subr.mxu0 0.0
  %2174 = vmatpush2.msra.mxu0 0.0
  %2175 = vmatprep.subr.mxu0 0.0
  %2176 = vmatpush2.msra.mxu0 0.0
  %2177 = vmatprep.mubr.f32.mxu0 0.0
  %2178 = vmatmul.mubr.f32.gmra.mxu0 %v2111
  %v2179 = vpop.f32.mrf.mxu0
  %v2180 = vadd.f32 0.0, %v2179
  %v2181 = vpop.f32.mrf.mxu0
  %2182 = vdwg.mxu0
  %v2183 = vadd.f32 %v2093, %v2180
  %v2184 = vld [vmem:[%s6 + $0x700] sm:$0xff]
  %v2185 = vld [vmem:[%s6 + $0x708] sm:$0xff]
  %v2186 = vld [vmem:[%s6 + $0x710] sm:$0xff]
  %v2187 = vld [vmem:[%s6 + $0x718] sm:$0xff]
  %v2188 = vld [vmem:[%s6 + $0x720] sm:$0xff]
  %v2189 = vld [vmem:[%s6 + $0x728] sm:$0xff]
  %v2190 = vld [vmem:[%s6 + $0x730] sm:$0xff]
  %v2191 = vld [vmem:[%s6 + $0x738] sm:$0xff]
  %v2192 = vld [vmem:[%s6 + $0x740] sm:$0xff]
  %v2193 = vld [vmem:[%s6 + $0x748] sm:$0xff]
  %v2194 = vld [vmem:[%s6 + $0x750] sm:$0xff]
  %v2195 = vld [vmem:[%s6 + $0x758] sm:$0xff]
  %v2196 = vld [vmem:[%s6 + $0x760] sm:$0xff]
  %v2197 = vld [vmem:[%s6 + $0x768] sm:$0xff]
  %v2198 = vld [vmem:[%s6 + $0x770] sm:$0xff]
  %v2199 = vld [vmem:[%s6 + $0x778] sm:$0xff]
  %v2200 = vrot.slane %v943, 4
  %2202 = vmatprep.subr.mxu0 0.0
  %2203 = vmatpush1.msra.mxu0 %v2199
  %2204 = vmatprep.subr.mxu0 0.0
  %2205 = vmatpush1.msra.mxu0 %v2198
  %2206 = vmatprep.subr.mxu0 0.0
  %2207 = vmatpush1.msra.mxu0 %v2197
  %2208 = vmatprep.subr.mxu0 0.0
  %2209 = vmatpush1.msra.mxu0 %v2196
  %2210 = vmatprep.subr.mxu0 0.0
  %2211 = vmatpush1.msra.mxu0 %v2195
  %2212 = vmatprep.subr.mxu0 0.0
  %2213 = vmatpush1.msra.mxu0 %v2194
  %2214 = vmatprep.subr.mxu0 0.0
  %2215 = vmatpush1.msra.mxu0 %v2193
  %2216 = vmatprep.subr.mxu0 0.0
  %2217 = vmatpush1.msra.mxu0 %v2192
  %2218 = vmatprep.subr.mxu0 0.0
  %2219 = vmatpush1.msra.mxu0 %v2191
  %2220 = vmatprep.subr.mxu0 0.0
  %2221 = vmatpush1.msra.mxu0 %v2190
  %2222 = vmatprep.subr.mxu0 0.0
  %2223 = vmatpush1.msra.mxu0 %v2189
  %2224 = vmatprep.subr.mxu0 0.0
  %2225 = vmatpush1.msra.mxu0 %v2188
  %2226 = vmatprep.subr.mxu0 0.0
  %2227 = vmatpush1.msra.mxu0 %v2187
  %2228 = vmatprep.subr.mxu0 0.0
  %2229 = vmatpush1.msra.mxu0 %v2186
  %2230 = vmatprep.subr.mxu0 0.0
  %2231 = vmatpush1.msra.mxu0 %v2185
  %2232 = vmatprep.subr.mxu0 0.0
  %2233 = vmatpush1.msra.mxu0 %v2184
  %2234 = vmatprep.subr.mxu0 0.0
  %2235 = vmatpush2.msra.mxu0 0.0
  %2236 = vmatprep.subr.mxu0 0.0
  %2237 = vmatpush2.msra.mxu0 0.0
  %2238 = vmatprep.subr.mxu0 0.0
  %2239 = vmatpush2.msra.mxu0 0.0
  %2240 = vmatprep.subr.mxu0 0.0
  %2241 = vmatpush2.msra.mxu0 0.0
  %2242 = vmatprep.subr.mxu0 0.0
  %2243 = vmatpush2.msra.mxu0 0.0
  %2244 = vmatprep.subr.mxu0 0.0
  %2245 = vmatpush2.msra.mxu0 0.0
  %2246 = vmatprep.subr.mxu0 0.0
  %2247 = vmatpush2.msra.mxu0 0.0
  %2248 = vmatprep.subr.mxu0 0.0
  %2249 = vmatpush2.msra.mxu0 0.0
  %2250 = vmatprep.subr.mxu0 0.0
  %2251 = vmatpush2.msra.mxu0 0.0
  %2252 = vmatprep.subr.mxu0 0.0
  %2253 = vmatpush2.msra.mxu0 0.0
  %2254 = vmatprep.subr.mxu0 0.0
  %2255 = vmatpush2.msra.mxu0 0.0
  %2256 = vmatprep.subr.mxu0 0.0
  %2257 = vmatpush2.msra.mxu0 0.0
  %2258 = vmatprep.subr.mxu0 0.0
  %2259 = vmatpush2.msra.mxu0 0.0
  %2260 = vmatprep.subr.mxu0 0.0
  %2261 = vmatpush2.msra.mxu0 0.0
  %2262 = vmatprep.subr.mxu0 0.0
  %2263 = vmatpush2.msra.mxu0 0.0
  %2264 = vmatprep.subr.mxu0 0.0
  %2265 = vmatpush2.msra.mxu0 0.0
  %2266 = vmatprep.mubr.f32.mxu0 0.0
  %2267 = vmatmul.mubr.f32.gmra.mxu0 %v2200
  %v2268 = vpop.f32.mrf.mxu0
  %v2269 = vadd.f32 0.0, %v2268
  %v2270 = vpop.f32.mrf.mxu0
  %2271 = vdwg.mxu0
  %v2272 = vadd.f32 %v2183, %v2269
  %v2273 = vld [vmem:[%s6 + $0x780] sm:$0xff]
  %v2274 = vld [vmem:[%s6 + $0x788] sm:$0xff]
  %v2275 = vld [vmem:[%s6 + $0x790] sm:$0xff]
  %v2276 = vld [vmem:[%s6 + $0x798] sm:$0xff]
  %v2277 = vld [vmem:[%s6 + $0x7a0] sm:$0xff]
  %v2278 = vld [vmem:[%s6 + $0x7a8] sm:$0xff]
  %v2279 = vld [vmem:[%s6 + $0x7b0] sm:$0xff]
  %v2280 = vld [vmem:[%s6 + $0x7b8] sm:$0xff]
  %v2281 = vld [vmem:[%s6 + $0x7c0] sm:$0xff]
  %v2282 = vld [vmem:[%s6 + $0x7c8] sm:$0xff]
  %v2283 = vld [vmem:[%s6 + $0x7d0] sm:$0xff]
  %v2284 = vld [vmem:[%s6 + $0x7d8] sm:$0xff]
  %v2285 = vld [vmem:[%s6 + $0x7e0] sm:$0xff]
  %v2286 = vld [vmem:[%s6 + $0x7e8] sm:$0xff]
  %v2287 = vld [vmem:[%s6 + $0x7f0] sm:$0xff]
  %v2288 = vld [vmem:[%s6 + $0x7f8] sm:$0xff]
  %v2289 = vrot.slane %v943, 6
  %2291 = vmatprep.subr.mxu0 0.0
  %2292 = vmatpush1.msra.mxu0 %v2288
  %2293 = vmatprep.subr.mxu0 0.0
  %2294 = vmatpush1.msra.mxu0 %v2287
  %2295 = vmatprep.subr.mxu0 0.0
  %2296 = vmatpush1.msra.mxu0 %v2286
  %2297 = vmatprep.subr.mxu0 0.0
  %2298 = vmatpush1.msra.mxu0 %v2285
  %2299 = vmatprep.subr.mxu0 0.0
  %2300 = vmatpush1.msra.mxu0 %v2284
  %2301 = vmatprep.subr.mxu0 0.0
  %2302 = vmatpush1.msra.mxu0 %v2283
  %2303 = vmatprep.subr.mxu0 0.0
  %2304 = vmatpush1.msra.mxu0 %v2282
  %2305 = vmatprep.subr.mxu0 0.0
  %2306 = vmatpush1.msra.mxu0 %v2281
  %2307 = vmatprep.subr.mxu0 0.0
  %2308 = vmatpush1.msra.mxu0 %v2280
  %2309 = vmatprep.subr.mxu0 0.0
  %2310 = vmatpush1.msra.mxu0 %v2279
  %2311 = vmatprep.subr.mxu0 0.0
  %2312 = vmatpush1.msra.mxu0 %v2278
  %2313 = vmatprep.subr.mxu0 0.0
  %2314 = vmatpush1.msra.mxu0 %v2277
  %2315 = vmatprep.subr.mxu0 0.0
  %2316 = vmatpush1.msra.mxu0 %v2276
  %2317 = vmatprep.subr.mxu0 0.0
  %2318 = vmatpush1.msra.mxu0 %v2275
  %2319 = vmatprep.subr.mxu0 0.0
  %2320 = vmatpush1.msra.mxu0 %v2274
  %2321 = vmatprep.subr.mxu0 0.0
  %2322 = vmatpush1.msra.mxu0 %v2273
  %2323 = vmatprep.subr.mxu0 0.0
  %2324 = vmatpush2.msra.mxu0 0.0
  %2325 = vmatprep.subr.mxu0 0.0
  %2326 = vmatpush2.msra.mxu0 0.0
  %2327 = vmatprep.subr.mxu0 0.0
  %2328 = vmatpush2.msra.mxu0 0.0
  %2329 = vmatprep.subr.mxu0 0.0
  %2330 = vmatpush2.msra.mxu0 0.0
  %2331 = vmatprep.subr.mxu0 0.0
  %2332 = vmatpush2.msra.mxu0 0.0
  %2333 = vmatprep.subr.mxu0 0.0
  %2334 = vmatpush2.msra.mxu0 0.0
  %2335 = vmatprep.subr.mxu0 0.0
  %2336 = vmatpush2.msra.mxu0 0.0
  %2337 = vmatprep.subr.mxu0 0.0
  %2338 = vmatpush2.msra.mxu0 0.0
  %2339 = vmatprep.subr.mxu0 0.0
  %2340 = vmatpush2.msra.mxu0 0.0
  %2341 = vmatprep.subr.mxu0 0.0
  %2342 = vmatpush2.msra.mxu0 0.0
  %2343 = vmatprep.subr.mxu0 0.0
  %2344 = vmatpush2.msra.mxu0 0.0
  %2345 = vmatprep.subr.mxu0 0.0
  %2346 = vmatpush2.msra.mxu0 0.0
  %2347 = vmatprep.subr.mxu0 0.0
  %2348 = vmatpush2.msra.mxu0 0.0
  %2349 = vmatprep.subr.mxu0 0.0
  %2350 = vmatpush2.msra.mxu0 0.0
  %2351 = vmatprep.subr.mxu0 0.0
  %2352 = vmatpush2.msra.mxu0 0.0
  %2353 = vmatprep.subr.mxu0 0.0
  %2354 = vmatpush2.msra.mxu0 0.0
  %2355 = vmatprep.mubr.f32.mxu0 0.0
  %2356 = vmatmul.mubr.f32.gmra.mxu0 %v2289
  %v2357 = vpop.f32.mrf.mxu0
  %v2358 = vadd.f32 0.0, %v2357
  %v2359 = vpop.f32.mrf.mxu0
  %2360 = vdwg.mxu0
  %v2361 = vadd.f32 %v2272, %v2358
  %v2362 = vld [vmem:[%s7] sm:$0x1]
  %v2364 = vlaneseq
  %v2365 = vshrl.u32 %v2364, 7
  %v2366 = vsub.s32 0, %v2365
  %v2367 = vrot.slane %v2362, %v2366
  %v2369 = vadd.f32 %v2361, %v2367
  %v2370 = vmax.f32 %v2369, 0.0
  %s2371 = sld [smem:[#allocation3]]
  %s2372 = scalar_lea.vmem %s8, %s2371
  %v2373 = vld [vmem:[%s2372] sm:$0x1]
  %s2374 = sld [smem:[#allocation3 + $0x80]]
  %s2375 = scalar_lea.vmem %s8, %s2374
  %v2376 = vld [vmem:[%s2375] sm:$0x1]
  %s2377 = sld [smem:[#allocation3 + $0x1]]
  %s2378 = scalar_lea.vmem %s8, %s2377
  %v2379 = vld [vmem:[%s2378] sm:$0x1]
  %s2380 = sld [smem:[#allocation3 + $0x81]]
  %s2381 = scalar_lea.vmem %s8, %s2380
  %v2382 = vld [vmem:[%s2381] sm:$0x1]
  %s2383 = sld [smem:[#allocation3 + $0x2]]
  %s2384 = scalar_lea.vmem %s8, %s2383
  %v2385 = vld [vmem:[%s2384] sm:$0x1]
  %s2386 = sld [smem:[#allocation3 + $0x82]]
  %s2387 = scalar_lea.vmem %s8, %s2386
  %v2388 = vld [vmem:[%s2387] sm:$0x1]
  %s2389 = sld [smem:[#allocation3 + $0x3]]
  %s2390 = scalar_lea.vmem %s8, %s2389
  %v2391 = vld [vmem:[%s2390] sm:$0x1]
  %s2392 = sld [smem:[#allocation3 + $0x83]]
  %s2393 = scalar_lea.vmem %s8, %s2392
  %v2394 = vld [vmem:[%s2393] sm:$0x1]
  %s2395 = sld [smem:[#allocation3 + $0x4]]
  %s2396 = scalar_lea.vmem %s8, %s2395
  %v2397 = vld [vmem:[%s2396] sm:$0x1]
  %s2398 = sld [smem:[#allocation3 + $0x84]]
  %s2399 = scalar_lea.vmem %s8, %s2398
  %v2400 = vld [vmem:[%s2399] sm:$0x1]
  %s2401 = sld [smem:[#allocation3 + $0x5]]
  %s2402 = scalar_lea.vmem %s8, %s2401
  %v2403 = vld [vmem:[%s2402] sm:$0x1]
  %s2404 = sld [smem:[#allocation3 + $0x85]]
  %s2405 = scalar_lea.vmem %s8, %s2404
  %v2406 = vld [vmem:[%s2405] sm:$0x1]
  %s2407 = sld [smem:[#allocation3 + $0x6]]
  %s2408 = scalar_lea.vmem %s8, %s2407
  %v2409 = vld [vmem:[%s2408] sm:$0x1]
  %s2410 = sld [smem:[#allocation3 + $0x86]]
  %s2411 = scalar_lea.vmem %s8, %s2410
  %v2412 = vld [vmem:[%s2411] sm:$0x1]
  %s2413 = sld [smem:[#allocation3 + $0x7]]
  %s2414 = scalar_lea.vmem %s8, %s2413
  %v2415 = vld [vmem:[%s2414] sm:$0x1]
  %s2416 = sld [smem:[#allocation3 + $0x87]]
  %s2417 = scalar_lea.vmem %s8, %s2416
  %v2418 = vld [vmem:[%s2417] sm:$0x1]
  %v2420 = vrot.slane %v2376, 7
  %v2423 = vrot.slane %v2379, 6
  %v2426 = vrot.slane %v2382, 5
  %v2429 = vrot.slane %v2385, 4
  %v2432 = vrot.slane %v2388, 3
  %v2435 = vrot.slane %v2391, 2
  %v2438 = vrot.slane %v2394, 1
  %v2441 = vrot.slane %v2400, 7
  %v2444 = vrot.slane %v2403, 6
  %v2447 = vrot.slane %v2406, 5
  %v2450 = vrot.slane %v2409, 4
  %v2453 = vrot.slane %v2412, 3
  %v2456 = vrot.slane %v2415, 2
  %v2459 = vrot.slane %v2418, 1
  %vm2461 = vcmask 1040384
  %v2462 = vsel %vm2461, %v2373, %v2420
  %v2463 = vsel %vm516, %v2462, %v2423
  %vm2464 = vcmask 1042432
  %v2465 = vsel %vm2464, %v2463, %v2426
  %v2466 = vsel %vm348, %v2465, %v2429
  %vm2467 = vcmask 1044480
  %v2468 = vsel %vm2467, %v2466, %v2432
  %v2469 = vsel %vm119, %v2468, %v2435
  %vm2470 = vcmask 1046528
  %v2471 = vsel %vm2470, %v2469, %v2438
  %v2472 = vsel %vm2461, %v2397, %v2441
  %v2473 = vsel %vm516, %v2472, %v2444
  %v2474 = vsel %vm2464, %v2473, %v2447
  %v2475 = vsel %vm348, %v2474, %v2450
  %v2476 = vsel %vm2467, %v2475, %v2453
  %v2477 = vsel %vm119, %v2476, %v2456
  %v2478 = vsel %vm2470, %v2477, %v2459
  %v2479 = vld [vmem:[%s9] sm:$0xff]
  %v2480 = vld [vmem:[%s9 + $0x8] sm:$0xff]
  %v2481 = vld [vmem:[%s9 + $0x10] sm:$0xff]
  %v2482 = vld [vmem:[%s9 + $0x18] sm:$0xff]
  %v2483 = vld [vmem:[%s9 + $0x20] sm:$0xff]
  %v2484 = vld [vmem:[%s9 + $0x28] sm:$0xff]
  %v2485 = vld [vmem:[%s9 + $0x30] sm:$0xff]
  %v2486 = vld [vmem:[%s9 + $0x38] sm:$0xff]
  %v2488 = vsel %vm142, %v2471, 0
  %v2491 = vsel %vm142, %v2478, 0
  %2493 = vmatprep.subr.mxu0 0.0
  %2494 = vmatpush1.msra.mxu0 0.0
  %2495 = vmatprep.subr.mxu0 0.0
  %2496 = vmatpush1.msra.mxu0 0.0
  %2497 = vmatprep.subr.mxu0 0.0
  %2498 = vmatpush1.msra.mxu0 0.0
  %2499 = vmatprep.subr.mxu0 0.0
  %2500 = vmatpush1.msra.mxu0 0.0
  %2501 = vmatprep.subr.mxu0 0.0
  %2502 = vmatpush1.msra.mxu0 0.0
  %2503 = vmatprep.subr.mxu0 0.0
  %2504 = vmatpush1.msra.mxu0 0.0
  %2505 = vmatprep.subr.mxu0 0.0
  %2506 = vmatpush1.msra.mxu0 0.0
  %2507 = vmatprep.subr.mxu0 0.0
  %2508 = vmatpush1.msra.mxu0 0.0
  %2509 = vmatprep.subr.mxu0 0.0
  %2510 = vmatpush1.msra.mxu0 0.0
  %2511 = vmatprep.subr.mxu0 0.0
  %2512 = vmatpush1.msra.mxu0 0.0
  %2513 = vmatprep.subr.mxu0 0.0
  %2514 = vmatpush1.msra.mxu0 0.0
  %2515 = vmatprep.subr.mxu0 0.0
  %2516 = vmatpush1.msra.mxu0 0.0
  %2517 = vmatprep.subr.mxu0 0.0
  %2518 = vmatpush1.msra.mxu0 0.0
  %2519 = vmatprep.subr.mxu0 0.0
  %2520 = vmatpush1.msra.mxu0 0.0
  %2521 = vmatprep.subr.mxu0 %v2484
  %2522 = vmatpush1.msra.mxu0 %v2483
  %2523 = vmatprep.subr.mxu0 %v2480
  %2524 = vmatpush1.msra.mxu0 %v2479
  %2525 = vmatprep.subr.mxu0 0.0
  %2526 = vmatpush2.msra.mxu0 0.0
  %2527 = vmatprep.subr.mxu0 0.0
  %2528 = vmatpush2.msra.mxu0 0.0
  %2529 = vmatprep.subr.mxu0 0.0
  %2530 = vmatpush2.msra.mxu0 0.0
  %2531 = vmatprep.subr.mxu0 0.0
  %2532 = vmatpush2.msra.mxu0 0.0
  %2533 = vmatprep.subr.mxu0 0.0
  %2534 = vmatpush2.msra.mxu0 0.0
  %2535 = vmatprep.subr.mxu0 0.0
  %2536 = vmatpush2.msra.mxu0 0.0
  %2537 = vmatprep.subr.mxu0 0.0
  %2538 = vmatpush2.msra.mxu0 0.0
  %2539 = vmatprep.subr.mxu0 0.0
  %2540 = vmatpush2.msra.mxu0 0.0
  %2541 = vmatprep.subr.mxu0 0.0
  %2542 = vmatpush2.msra.mxu0 0.0
  %2543 = vmatprep.subr.mxu0 0.0
  %2544 = vmatpush2.msra.mxu0 0.0
  %2545 = vmatprep.subr.mxu0 0.0
  %2546 = vmatpush2.msra.mxu0 0.0
  %2547 = vmatprep.subr.mxu0 0.0
  %2548 = vmatpush2.msra.mxu0 0.0
  %2549 = vmatprep.subr.mxu0 0.0
  %2550 = vmatpush2.msra.mxu0 0.0
  %2551 = vmatprep.subr.mxu0 0.0
  %2552 = vmatpush2.msra.mxu0 0.0
  %2553 = vmatprep.subr.mxu0 0.0
  %2554 = vmatpush2.msra.mxu0 0.0
  %2555 = vmatprep.subr.mxu0 0.0
  %2556 = vmatpush2.msra.mxu0 0.0
  %2557 = vmatprep.mubr.f32.mxu0 0.0
  %2558 = vmatmul.mubr.f32.gmra.mxu0 %v2488
  %v2559 = vpop.f32.mrf.mxu0
  %v2560 = vadd.f32 0.0, %v2559
  %v2561 = vpop.f32.mrf.mxu0
  %v2562 = vadd.f32 0.0, %v2561
  %2563 = vmatprep.mubr.f32.mxu0 0.0
  %2564 = vmatmul.mubr.f32.gmra.mxu0 %v2491
  %v2565 = vpop.f32.mrf.mxu0
  %v2566 = vadd.f32 0.0, %v2565
  %v2567 = vpop.f32.mrf.mxu0
  %v2568 = vadd.f32 0.0, %v2567
  %2569 = vdwg.mxu0
  %2570 = vmatprep.subr.mxu0 0.0
  %2571 = vmatpush1.msra.mxu0 0.0
  %2572 = vmatprep.subr.mxu0 0.0
  %2573 = vmatpush1.msra.mxu0 0.0
  %2574 = vmatprep.subr.mxu0 0.0
  %2575 = vmatpush1.msra.mxu0 0.0
  %2576 = vmatprep.subr.mxu0 0.0
  %2577 = vmatpush1.msra.mxu0 0.0
  %2578 = vmatprep.subr.mxu0 0.0
  %2579 = vmatpush1.msra.mxu0 0.0
  %2580 = vmatprep.subr.mxu0 0.0
  %2581 = vmatpush1.msra.mxu0 0.0
  %2582 = vmatprep.subr.mxu0 0.0
  %2583 = vmatpush1.msra.mxu0 0.0
  %2584 = vmatprep.subr.mxu0 0.0
  %2585 = vmatpush1.msra.mxu0 0.0
  %2586 = vmatprep.subr.mxu0 0.0
  %2587 = vmatpush1.msra.mxu0 0.0
  %2588 = vmatprep.subr.mxu0 0.0
  %2589 = vmatpush1.msra.mxu0 0.0
  %2590 = vmatprep.subr.mxu0 0.0
  %2591 = vmatpush1.msra.mxu0 0.0
  %2592 = vmatprep.subr.mxu0 0.0
  %2593 = vmatpush1.msra.mxu0 0.0
  %2594 = vmatprep.subr.mxu0 0.0
  %2595 = vmatpush1.msra.mxu0 0.0
  %2596 = vmatprep.subr.mxu0 0.0
  %2597 = vmatpush1.msra.mxu0 0.0
  %2598 = vmatprep.subr.mxu0 %v2486
  %2599 = vmatpush1.msra.mxu0 %v2485
  %2600 = vmatprep.subr.mxu0 %v2482
  %2601 = vmatpush1.msra.mxu0 %v2481
  %2602 = vmatprep.subr.mxu0 0.0
  %2603 = vmatpush2.msra.mxu0 0.0
  %2604 = vmatprep.subr.mxu0 0.0
  %2605 = vmatpush2.msra.mxu0 0.0
  %2606 = vmatprep.subr.mxu0 0.0
  %2607 = vmatpush2.msra.mxu0 0.0
  %2608 = vmatprep.subr.mxu0 0.0
  %2609 = vmatpush2.msra.mxu0 0.0
  %2610 = vmatprep.subr.mxu0 0.0
  %2611 = vmatpush2.msra.mxu0 0.0
  %2612 = vmatprep.subr.mxu0 0.0
  %2613 = vmatpush2.msra.mxu0 0.0
  %2614 = vmatprep.subr.mxu0 0.0
  %2615 = vmatpush2.msra.mxu0 0.0
  %2616 = vmatprep.subr.mxu0 0.0
  %2617 = vmatpush2.msra.mxu0 0.0
  %2618 = vmatprep.subr.mxu0 0.0
  %2619 = vmatpush2.msra.mxu0 0.0
  %2620 = vmatprep.subr.mxu0 0.0
  %2621 = vmatpush2.msra.mxu0 0.0
  %2622 = vmatprep.subr.mxu0 0.0
  %2623 = vmatpush2.msra.mxu0 0.0
  %2624 = vmatprep.subr.mxu0 0.0
  %2625 = vmatpush2.msra.mxu0 0.0
  %2626 = vmatprep.subr.mxu0 0.0
  %2627 = vmatpush2.msra.mxu0 0.0
  %2628 = vmatprep.subr.mxu0 0.0
  %2629 = vmatpush2.msra.mxu0 0.0
  %2630 = vmatprep.subr.mxu0 0.0
  %2631 = vmatpush2.msra.mxu0 0.0
  %2632 = vmatprep.subr.mxu0 0.0
  %2633 = vmatpush2.msra.mxu0 0.0
  %2634 = vmatprep.mubr.f32.mxu0 0.0
  %2635 = vmatmul.mubr.f32.gmra.mxu0 %v2488
  %v2636 = vpop.f32.mrf.mxu0
  %v2637 = vadd.f32 0.0, %v2636
  %v2638 = vpop.f32.mrf.mxu0
  %v2639 = vadd.f32 0.0, %v2638
  %2640 = vmatprep.mubr.f32.mxu0 0.0
  %2641 = vmatmul.mubr.f32.gmra.mxu0 %v2491
  %v2642 = vpop.f32.mrf.mxu0
  %v2643 = vadd.f32 0.0, %v2642
  %v2644 = vpop.f32.mrf.mxu0
  %v2645 = vadd.f32 0.0, %v2644
  %2646 = vdwg.mxu0
  %v2647 = vld [vmem:[%s10] sm:$0xff]
  %v2648 = vld [vmem:[%s10 + $0x8] sm:$0xff]
  %v2649 = vld [vmem:[%s10 + $0x10] sm:$0xff]
  %v2650 = vld [vmem:[%s10 + $0x18] sm:$0xff]
  %v2651 = vld [vmem:[%s10 + $0x20] sm:$0xff]
  %v2652 = vld [vmem:[%s10 + $0x28] sm:$0xff]
  %v2653 = vld [vmem:[%s10 + $0x30] sm:$0xff]
  %v2654 = vld [vmem:[%s10 + $0x38] sm:$0xff]
  %v2655 = vld [vmem:[%s10 + $0x40] sm:$0xff]
  %v2656 = vld [vmem:[%s10 + $0x48] sm:$0xff]
  %v2657 = vld [vmem:[%s10 + $0x50] sm:$0xff]
  %v2658 = vld [vmem:[%s10 + $0x58] sm:$0xff]
  %v2659 = vld [vmem:[%s10 + $0x60] sm:$0xff]
  %v2660 = vld [vmem:[%s10 + $0x68] sm:$0xff]
  %v2661 = vld [vmem:[%s10 + $0x70] sm:$0xff]
  %v2662 = vld [vmem:[%s10 + $0x78] sm:$0xff]
  %v2663 = vld [vmem:[%s12] sm:$0xf]
  %v2665 = vlaneseq
  %v2666 = vshrl.u32 %v2665, 7
  %v2667 = vsub.s32 0, %v2666
  %v2668 = vrot.slane %v2663, %v2667
  %v2669 = vlaneseq
  %v2670 = vshrl.u32 %v2669, 7
  %v2671 = vsub.s32 1, %v2670
  %v2672 = vrot.slane %v2663, %v2671
  %v2673 = vlaneseq
  %v2674 = vshrl.u32 %v2673, 7
  %v2675 = vsub.s32 2, %v2674
  %v2676 = vrot.slane %v2663, %v2675
  %v2677 = vlaneseq
  %v2678 = vshrl.u32 %v2677, 7
  %v2679 = vsub.s32 3, %v2678
  %v2680 = vrot.slane %v2663, %v2679
  %vm2685 = vcmask 261120
  %v2687 = vsel %vm2685, %v2370, 0
  %2689 = vmatprep.subr.mxu0 0.0
  %2690 = vmatpush1.msra.mxu0 0.0
  %2691 = vmatprep.subr.mxu0 0.0
  %2692 = vmatpush1.msra.mxu0 0.0
  %2693 = vmatprep.subr.mxu0 0.0
  %2694 = vmatpush1.msra.mxu0 0.0
  %2695 = vmatprep.subr.mxu0 0.0
  %2696 = vmatpush1.msra.mxu0 0.0
  %2697 = vmatprep.subr.mxu0 0.0
  %2698 = vmatpush1.msra.mxu0 0.0
  %2699 = vmatprep.subr.mxu0 0.0
  %2700 = vmatpush1.msra.mxu0 0.0
  %2701 = vmatprep.subr.mxu0 0.0
  %2702 = vmatpush1.msra.mxu0 0.0
  %2703 = vmatprep.subr.mxu0 0.0
  %2704 = vmatpush1.msra.mxu0 0.0
  %2705 = vmatprep.subr.mxu0 0.0
  %2706 = vmatpush1.msra.mxu0 0.0
  %2707 = vmatprep.subr.mxu0 0.0
  %2708 = vmatpush1.msra.mxu0 0.0
  %2709 = vmatprep.subr.mxu0 0.0
  %2710 = vmatpush1.msra.mxu0 0.0
  %2711 = vmatprep.subr.mxu0 0.0
  %2712 = vmatpush1.msra.mxu0 0.0
  %2713 = vmatprep.subr.mxu0 %v2660
  %2714 = vmatpush1.msra.mxu0 %v2659
  %2715 = vmatprep.subr.mxu0 %v2656
  %2716 = vmatpush1.msra.mxu0 %v2655
  %2717 = vmatprep.subr.mxu0 %v2652
  %2718 = vmatpush1.msra.mxu0 %v2651
  %2719 = vmatprep.subr.mxu0 %v2648
  %2720 = vmatpush1.msra.mxu0 %v2647
  %2721 = vmatprep.subr.mxu0 0.0
  %2722 = vmatpush2.msra.mxu0 0.0
  %2723 = vmatprep.subr.mxu0 0.0
  %2724 = vmatpush2.msra.mxu0 0.0
  %2725 = vmatprep.subr.mxu0 0.0
  %2726 = vmatpush2.msra.mxu0 0.0
  %2727 = vmatprep.subr.mxu0 0.0
  %2728 = vmatpush2.msra.mxu0 0.0
  %2729 = vmatprep.subr.mxu0 0.0
  %2730 = vmatpush2.msra.mxu0 0.0
  %2731 = vmatprep.subr.mxu0 0.0
  %2732 = vmatpush2.msra.mxu0 0.0
  %2733 = vmatprep.subr.mxu0 0.0
  %2734 = vmatpush2.msra.mxu0 0.0
  %2735 = vmatprep.subr.mxu0 0.0
  %2736 = vmatpush2.msra.mxu0 0.0
  %2737 = vmatprep.subr.mxu0 0.0
  %2738 = vmatpush2.msra.mxu0 0.0
  %2739 = vmatprep.subr.mxu0 0.0
  %2740 = vmatpush2.msra.mxu0 0.0
  %2741 = vmatprep.subr.mxu0 0.0
  %2742 = vmatpush2.msra.mxu0 0.0
  %2743 = vmatprep.subr.mxu0 0.0
  %2744 = vmatpush2.msra.mxu0 0.0
  %2745 = vmatprep.subr.mxu0 0.0
  %2746 = vmatpush2.msra.mxu0 0.0
  %2747 = vmatprep.subr.mxu0 0.0
  %2748 = vmatpush2.msra.mxu0 0.0
  %2749 = vmatprep.subr.mxu0 0.0
  %2750 = vmatpush2.msra.mxu0 0.0
  %2751 = vmatprep.subr.mxu0 0.0
  %2752 = vmatpush2.msra.mxu0 0.0
  %2753 = vmatprep.mubr.f32.mxu0 0.0
  %2754 = vmatmul.mubr.f32.gmra.mxu0 %v2687
  %v2755 = vpop.f32.mrf.mxu0
  %v2756 = vadd.f32 %v2668, %v2755
  %v2757 = vpop.f32.mrf.mxu0
  %v2758 = vadd.f32 %v2672, %v2757
  %2759 = vdwg.mxu0
  %2760 = vmatprep.subr.mxu0 0.0
  %2761 = vmatpush1.msra.mxu0 0.0
  %2762 = vmatprep.subr.mxu0 0.0
  %2763 = vmatpush1.msra.mxu0 0.0
  %2764 = vmatprep.subr.mxu0 0.0
  %2765 = vmatpush1.msra.mxu0 0.0
  %2766 = vmatprep.subr.mxu0 0.0
  %2767 = vmatpush1.msra.mxu0 0.0
  %2768 = vmatprep.subr.mxu0 0.0
  %2769 = vmatpush1.msra.mxu0 0.0
  %2770 = vmatprep.subr.mxu0 0.0
  %2771 = vmatpush1.msra.mxu0 0.0
  %2772 = vmatprep.subr.mxu0 0.0
  %2773 = vmatpush1.msra.mxu0 0.0
  %2774 = vmatprep.subr.mxu0 0.0
  %2775 = vmatpush1.msra.mxu0 0.0
  %2776 = vmatprep.subr.mxu0 0.0
  %2777 = vmatpush1.msra.mxu0 0.0
  %2778 = vmatprep.subr.mxu0 0.0
  %2779 = vmatpush1.msra.mxu0 0.0
  %2780 = vmatprep.subr.mxu0 0.0
  %2781 = vmatpush1.msra.mxu0 0.0
  %2782 = vmatprep.subr.mxu0 0.0
  %2783 = vmatpush1.msra.mxu0 0.0
  %2784 = vmatprep.subr.mxu0 %v2662
  %2785 = vmatpush1.msra.mxu0 %v2661
  %2786 = vmatprep.subr.mxu0 %v2658
  %2787 = vmatpush1.msra.mxu0 %v2657
  %2788 = vmatprep.subr.mxu0 %v2654
  %2789 = vmatpush1.msra.mxu0 %v2653
  %2790 = vmatprep.subr.mxu0 %v2650
  %2791 = vmatpush1.msra.mxu0 %v2649
  %2792 = vmatprep.subr.mxu0 0.0
  %2793 = vmatpush2.msra.mxu0 0.0
  %2794 = vmatprep.subr.mxu0 0.0
  %2795 = vmatpush2.msra.mxu0 0.0
  %2796 = vmatprep.subr.mxu0 0.0
  %2797 = vmatpush2.msra.mxu0 0.0
  %2798 = vmatprep.subr.mxu0 0.0
  %2799 = vmatpush2.msra.mxu0 0.0
  %2800 = vmatprep.subr.mxu0 0.0
  %2801 = vmatpush2.msra.mxu0 0.0
  %2802 = vmatprep.subr.mxu0 0.0
  %2803 = vmatpush2.msra.mxu0 0.0
  %2804 = vmatprep.subr.mxu0 0.0
  %2805 = vmatpush2.msra.mxu0 0.0
  %2806 = vmatprep.subr.mxu0 0.0
  %2807 = vmatpush2.msra.mxu0 0.0
  %2808 = vmatprep.subr.mxu0 0.0
  %2809 = vmatpush2.msra.mxu0 0.0
  %2810 = vmatprep.subr.mxu0 0.0
  %2811 = vmatpush2.msra.mxu0 0.0
  %2812 = vmatprep.subr.mxu0 0.0
  %2813 = vmatpush2.msra.mxu0 0.0
  %2814 = vmatprep.subr.mxu0 0.0
  %2815 = vmatpush2.msra.mxu0 0.0
  %2816 = vmatprep.subr.mxu0 0.0
  %2817 = vmatpush2.msra.mxu0 0.0
  %2818 = vmatprep.subr.mxu0 0.0
  %2819 = vmatpush2.msra.mxu0 0.0
  %2820 = vmatprep.subr.mxu0 0.0
  %2821 = vmatpush2.msra.mxu0 0.0
  %2822 = vmatprep.subr.mxu0 0.0
  %2823 = vmatpush2.msra.mxu0 0.0
  %2824 = vmatprep.mubr.f32.mxu0 0.0
  %2825 = vmatmul.mubr.f32.gmra.mxu0 %v2687
  %v2826 = vpop.f32.mrf.mxu0
  %v2827 = vadd.f32 %v2676, %v2826
  %v2828 = vpop.f32.mrf.mxu0
  %v2829 = vadd.f32 %v2680, %v2828
  %2830 = vdwg.mxu0
  %v2831 = vld [vmem:[%s15] sm:$0x3]
  %v2832 = vld [vmem:[%s16] sm:$0x3]
  %v2833 = vadd.f32 %v2560, %v2756
  %v2834 = vadd.f32 %v2562, %v2758
  %v2835 = vadd.f32 %v2637, %v2827
  %v2836 = vadd.f32 %v2639, %v2829
  %v2837 = vld [vmem:[%s11] sm:$0xff]
  %v2838 = vld [vmem:[%s11 + $0x8] sm:$0xff]
  %v2839 = vld [vmem:[%s11 + $0x10] sm:$0xff]
  %v2840 = vld [vmem:[%s11 + $0x18] sm:$0xff]
  %v2841 = vld [vmem:[%s11 + $0x20] sm:$0xff]
  %v2842 = vld [vmem:[%s11 + $0x28] sm:$0xff]
  %v2843 = vld [vmem:[%s11 + $0x30] sm:$0xff]
  %v2844 = vld [vmem:[%s11 + $0x38] sm:$0xff]
  %v2845 = vld [vmem:[%s11 + $0x40] sm:$0xff]
  %v2846 = vld [vmem:[%s11 + $0x48] sm:$0xff]
  %v2847 = vld [vmem:[%s11 + $0x50] sm:$0xff]
  %v2848 = vld [vmem:[%s11 + $0x58] sm:$0xff]
  %v2849 = vld [vmem:[%s11 + $0x60] sm:$0xff]
  %v2850 = vld [vmem:[%s11 + $0x68] sm:$0xff]
  %v2851 = vld [vmem:[%s11 + $0x70] sm:$0xff]
  %v2852 = vld [vmem:[%s11 + $0x78] sm:$0xff]
  %v2854 = vsel %vm2685, %v2831, 0
  %2856 = vmatprep.subr.mxu0 0.0
  %2857 = vmatpush1.msra.mxu0 0.0
  %2858 = vmatprep.subr.mxu0 0.0
  %2859 = vmatpush1.msra.mxu0 0.0
  %2860 = vmatprep.subr.mxu0 0.0
  %2861 = vmatpush1.msra.mxu0 0.0
  %2862 = vmatprep.subr.mxu0 0.0
  %2863 = vmatpush1.msra.mxu0 0.0
  %2864 = vmatprep.subr.mxu0 0.0
  %2865 = vmatpush1.msra.mxu0 0.0
  %2866 = vmatprep.subr.mxu0 0.0
  %2867 = vmatpush1.msra.mxu0 0.0
  %2868 = vmatprep.subr.mxu0 0.0
  %2869 = vmatpush1.msra.mxu0 0.0
  %2870 = vmatprep.subr.mxu0 0.0
  %2871 = vmatpush1.msra.mxu0 0.0
  %2872 = vmatprep.subr.mxu0 0.0
  %2873 = vmatpush1.msra.mxu0 0.0
  %2874 = vmatprep.subr.mxu0 0.0
  %2875 = vmatpush1.msra.mxu0 0.0
  %2876 = vmatprep.subr.mxu0 0.0
  %2877 = vmatpush1.msra.mxu0 0.0
  %2878 = vmatprep.subr.mxu0 0.0
  %2879 = vmatpush1.msra.mxu0 0.0
  %2880 = vmatprep.subr.mxu0 %v2850
  %2881 = vmatpush1.msra.mxu0 %v2849
  %2882 = vmatprep.subr.mxu0 %v2846
  %2883 = vmatpush1.msra.mxu0 %v2845
  %2884 = vmatprep.subr.mxu0 %v2842
  %2885 = vmatpush1.msra.mxu0 %v2841
  %2886 = vmatprep.subr.mxu0 %v2838
  %2887 = vmatpush1.msra.mxu0 %v2837
  %2888 = vmatprep.subr.mxu0 0.0
  %2889 = vmatpush2.msra.mxu0 0.0
  %2890 = vmatprep.subr.mxu0 0.0
  %2891 = vmatpush2.msra.mxu0 0.0
  %2892 = vmatprep.subr.mxu0 0.0
  %2893 = vmatpush2.msra.mxu0 0.0
  %2894 = vmatprep.subr.mxu0 0.0
  %2895 = vmatpush2.msra.mxu0 0.0
  %2896 = vmatprep.subr.mxu0 0.0
  %2897 = vmatpush2.msra.mxu0 0.0
  %2898 = vmatprep.subr.mxu0 0.0
  %2899 = vmatpush2.msra.mxu0 0.0
  %2900 = vmatprep.subr.mxu0 0.0
  %2901 = vmatpush2.msra.mxu0 0.0
  %2902 = vmatprep.subr.mxu0 0.0
  %2903 = vmatpush2.msra.mxu0 0.0
  %2904 = vmatprep.subr.mxu0 0.0
  %2905 = vmatpush2.msra.mxu0 0.0
  %2906 = vmatprep.subr.mxu0 0.0
  %2907 = vmatpush2.msra.mxu0 0.0
  %2908 = vmatprep.subr.mxu0 0.0
  %2909 = vmatpush2.msra.mxu0 0.0
  %2910 = vmatprep.subr.mxu0 0.0
  %2911 = vmatpush2.msra.mxu0 0.0
  %2912 = vmatprep.subr.mxu0 0.0
  %2913 = vmatpush2.msra.mxu0 0.0
  %2914 = vmatprep.subr.mxu0 0.0
  %2915 = vmatpush2.msra.mxu0 0.0
  %2916 = vmatprep.subr.mxu0 0.0
  %2917 = vmatpush2.msra.mxu0 0.0
  %2918 = vmatprep.subr.mxu0 0.0
  %2919 = vmatpush2.msra.mxu0 0.0
  %2920 = vmatprep.mubr.f32.mxu0 0.0
  %2921 = vmatmul.mubr.f32.gmra.mxu0 %v2854
  %v2922 = vpop.f32.mrf.mxu0
  %v2923 = vadd.f32 0.0, %v2922
  %v2924 = vpop.f32.mrf.mxu0
  %v2925 = vadd.f32 0.0, %v2924
  %2926 = vdwg.mxu0
  %2927 = vmatprep.subr.mxu0 0.0
  %2928 = vmatpush1.msra.mxu0 0.0
  %2929 = vmatprep.subr.mxu0 0.0
  %2930 = vmatpush1.msra.mxu0 0.0
  %2931 = vmatprep.subr.mxu0 0.0
  %2932 = vmatpush1.msra.mxu0 0.0
  %2933 = vmatprep.subr.mxu0 0.0
  %2934 = vmatpush1.msra.mxu0 0.0
  %2935 = vmatprep.subr.mxu0 0.0
  %2936 = vmatpush1.msra.mxu0 0.0
  %2937 = vmatprep.subr.mxu0 0.0
  %2938 = vmatpush1.msra.mxu0 0.0
  %2939 = vmatprep.subr.mxu0 0.0
  %2940 = vmatpush1.msra.mxu0 0.0
  %2941 = vmatprep.subr.mxu0 0.0
  %2942 = vmatpush1.msra.mxu0 0.0
  %2943 = vmatprep.subr.mxu0 0.0
  %2944 = vmatpush1.msra.mxu0 0.0
  %2945 = vmatprep.subr.mxu0 0.0
  %2946 = vmatpush1.msra.mxu0 0.0
  %2947 = vmatprep.subr.mxu0 0.0
  %2948 = vmatpush1.msra.mxu0 0.0
  %2949 = vmatprep.subr.mxu0 0.0
  %2950 = vmatpush1.msra.mxu0 0.0
  %2951 = vmatprep.subr.mxu0 %v2852
  %2952 = vmatpush1.msra.mxu0 %v2851
  %2953 = vmatprep.subr.mxu0 %v2848
  %2954 = vmatpush1.msra.mxu0 %v2847
  %2955 = vmatprep.subr.mxu0 %v2844
  %2956 = vmatpush1.msra.mxu0 %v2843
  %2957 = vmatprep.subr.mxu0 %v2840
  %2958 = vmatpush1.msra.mxu0 %v2839
  %2959 = vmatprep.subr.mxu0 0.0
  %2960 = vmatpush2.msra.mxu0 0.0
  %2961 = vmatprep.subr.mxu0 0.0
  %2962 = vmatpush2.msra.mxu0 0.0
  %2963 = vmatprep.subr.mxu0 0.0
  %2964 = vmatpush2.msra.mxu0 0.0
  %2965 = vmatprep.subr.mxu0 0.0
  %2966 = vmatpush2.msra.mxu0 0.0
  %2967 = vmatprep.subr.mxu0 0.0
  %2968 = vmatpush2.msra.mxu0 0.0
  %2969 = vmatprep.subr.mxu0 0.0
  %2970 = vmatpush2.msra.mxu0 0.0
  %2971 = vmatprep.subr.mxu0 0.0
  %2972 = vmatpush2.msra.mxu0 0.0
  %2973 = vmatprep.subr.mxu0 0.0
  %2974 = vmatpush2.msra.mxu0 0.0
  %2975 = vmatprep.subr.mxu0 0.0
  %2976 = vmatpush2.msra.mxu0 0.0
  %2977 = vmatprep.subr.mxu0 0.0
  %2978 = vmatpush2.msra.mxu0 0.0
  %2979 = vmatprep.subr.mxu0 0.0
  %2980 = vmatpush2.msra.mxu0 0.0
  %2981 = vmatprep.subr.mxu0 0.0
  %2982 = vmatpush2.msra.mxu0 0.0
  %2983 = vmatprep.subr.mxu0 0.0
  %2984 = vmatpush2.msra.mxu0 0.0
  %2985 = vmatprep.subr.mxu0 0.0
  %2986 = vmatpush2.msra.mxu0 0.0
  %2987 = vmatprep.subr.mxu0 0.0
  %2988 = vmatpush2.msra.mxu0 0.0
  %2989 = vmatprep.subr.mxu0 0.0
  %2990 = vmatpush2.msra.mxu0 0.0
  %2991 = vmatprep.mubr.f32.mxu0 0.0
  %2992 = vmatmul.mubr.f32.gmra.mxu0 %v2854
  %v2993 = vpop.f32.mrf.mxu0
  %v2994 = vadd.f32 0.0, %v2993
  %v2995 = vpop.f32.mrf.mxu0
  %v2996 = vadd.f32 0.0, %v2995
  %2997 = vdwg.mxu0
  %v2998 = vadd.f32 %v2833, %v2923
  %v2999 = vadd.f32 %v2834, %v2925
  %v3000 = vadd.f32 %v2835, %v2994
  %v3001 = vadd.f32 %v2836, %v2996
  %v3002 = vxor.u32 %v2998, 2147483648
  %v3003 = vmul.f32 %v3002, 1.442695
  %v3004 = vpow.pop %v3003
  %v3005 = vadd.f32 %v3004, 1.0
  %v3006 = vrcp.pop %v3005
  %v3007 = vmul.f32 1.0, %v3006
  %v3008 = vxor.u32 %v2999, 2147483648
  %v3009 = vmul.f32 %v3008, 1.442695
  %v3010 = vpow.pop %v3009
  %v3011 = vadd.f32 %v3010, 1.0
  %v3012 = vrcp.pop %v3011
  %v3013 = vmul.f32 1.0, %v3012
  %v3014 = vtanh.pop %v3000
  %v3015 = vxor.u32 %v3001, 2147483648
  %v3016 = vmul.f32 %v3015, 1.442695
  %v3017 = vpow.pop %v3016
  %v3018 = vadd.f32 %v3017, 1.0
  %v3019 = vrcp.pop %v3018
  %v3020 = vmul.f32 1.0, %v3019
  %v3021 = vmul.f32 %v3013, %v2832
  %v3022 = vmul.f32 %v3007, %v3014
  %v3023 = vadd.f32 %v3021, %v3022
  %v3024 = vtanh.pop %v3023
  %v3025 = vmul.f32 %v3020, %v3024
  %v3030 = vrot.slane %v2756, 6
  %v3031 = vrot.slane %v2758, 6
  %v3032 = vrot.slane %v2827, 6
  %v3033 = vrot.slane %v2829, 6
  %v3038 = vadd.f32 %v2560, %v3030
  %v3039 = vadd.f32 %v2562, %v3031
  %v3040 = vadd.f32 %v2637, %v3032
  %v3041 = vadd.f32 %v2639, %v3033
  %v3043 = vsel %vm2685, %v3025, 0
  %3045 = vmatprep.subr.mxu0 0.0
  %3046 = vmatpush1.msra.mxu0 0.0
  %3047 = vmatprep.subr.mxu0 0.0
  %3048 = vmatpush1.msra.mxu0 0.0
  %3049 = vmatprep.subr.mxu0 0.0
  %3050 = vmatpush1.msra.mxu0 0.0
  %3051 = vmatprep.subr.mxu0 0.0
  %3052 = vmatpush1.msra.mxu0 0.0
  %3053 = vmatprep.subr.mxu0 0.0
  %3054 = vmatpush1.msra.mxu0 0.0
  %3055 = vmatprep.subr.mxu0 0.0
  %3056 = vmatpush1.msra.mxu0 0.0
  %3057 = vmatprep.subr.mxu0 0.0
  %3058 = vmatpush1.msra.mxu0 0.0
  %3059 = vmatprep.subr.mxu0 0.0
  %3060 = vmatpush1.msra.mxu0 0.0
  %3061 = vmatprep.subr.mxu0 0.0
  %3062 = vmatpush1.msra.mxu0 0.0
  %3063 = vmatprep.subr.mxu0 0.0
  %3064 = vmatpush1.msra.mxu0 0.0
  %3065 = vmatprep.subr.mxu0 0.0
  %3066 = vmatpush1.msra.mxu0 0.0
  %3067 = vmatprep.subr.mxu0 0.0
  %3068 = vmatpush1.msra.mxu0 0.0
  %3069 = vmatprep.subr.mxu0 %v2850
  %3070 = vmatpush1.msra.mxu0 %v2849
  %3071 = vmatprep.subr.mxu0 %v2846
  %3072 = vmatpush1.msra.mxu0 %v2845
  %3073 = vmatprep.subr.mxu0 %v2842
  %3074 = vmatpush1.msra.mxu0 %v2841
  %3075 = vmatprep.subr.mxu0 %v2838
  %3076 = vmatpush1.msra.mxu0 %v2837
  %3077 = vmatprep.subr.mxu0 0.0
  %3078 = vmatpush2.msra.mxu0 0.0
  %3079 = vmatprep.subr.mxu0 0.0
  %3080 = vmatpush2.msra.mxu0 0.0
  %3081 = vmatprep.subr.mxu0 0.0
  %3082 = vmatpush2.msra.mxu0 0.0
  %3083 = vmatprep.subr.mxu0 0.0
  %3084 = vmatpush2.msra.mxu0 0.0
  %3085 = vmatprep.subr.mxu0 0.0
  %3086 = vmatpush2.msra.mxu0 0.0
  %3087 = vmatprep.subr.mxu0 0.0
  %3088 = vmatpush2.msra.mxu0 0.0
  %3089 = vmatprep.subr.mxu0 0.0
  %3090 = vmatpush2.msra.mxu0 0.0
  %3091 = vmatprep.subr.mxu0 0.0
  %3092 = vmatpush2.msra.mxu0 0.0
  %3093 = vmatprep.subr.mxu0 0.0
  %3094 = vmatpush2.msra.mxu0 0.0
  %3095 = vmatprep.subr.mxu0 0.0
  %3096 = vmatpush2.msra.mxu0 0.0
  %3097 = vmatprep.subr.mxu0 0.0
  %3098 = vmatpush2.msra.mxu0 0.0
  %3099 = vmatprep.subr.mxu0 0.0
  %3100 = vmatpush2.msra.mxu0 0.0
  %3101 = vmatprep.subr.mxu0 0.0
  %3102 = vmatpush2.msra.mxu0 0.0
  %3103 = vmatprep.subr.mxu0 0.0
  %3104 = vmatpush2.msra.mxu0 0.0
  %3105 = vmatprep.subr.mxu0 0.0
  %3106 = vmatpush2.msra.mxu0 0.0
  %3107 = vmatprep.subr.mxu0 0.0
  %3108 = vmatpush2.msra.mxu0 0.0
  %3109 = vmatprep.mubr.f32.mxu0 0.0
  %3110 = vmatmul.mubr.f32.gmra.mxu0 %v3043
  %v3111 = vpop.f32.mrf.mxu0
  %v3112 = vadd.f32 0.0, %v3111
  %v3113 = vpop.f32.mrf.mxu0
  %v3114 = vadd.f32 0.0, %v3113
  %3115 = vdwg.mxu0
  %3116 = vmatprep.subr.mxu0 0.0
  %3117 = vmatpush1.msra.mxu0 0.0
  %3118 = vmatprep.subr.mxu0 0.0
  %3119 = vmatpush1.msra.mxu0 0.0
  %3120 = vmatprep.subr.mxu0 0.0
  %3121 = vmatpush1.msra.mxu0 0.0
  %3122 = vmatprep.subr.mxu0 0.0
  %3123 = vmatpush1.msra.mxu0 0.0
  %3124 = vmatprep.subr.mxu0 0.0
  %3125 = vmatpush1.msra.mxu0 0.0
  %3126 = vmatprep.subr.mxu0 0.0
  %3127 = vmatpush1.msra.mxu0 0.0
  %3128 = vmatprep.subr.mxu0 0.0
  %3129 = vmatpush1.msra.mxu0 0.0
  %3130 = vmatprep.subr.mxu0 0.0
  %3131 = vmatpush1.msra.mxu0 0.0
  %3132 = vmatprep.subr.mxu0 0.0
  %3133 = vmatpush1.msra.mxu0 0.0
  %3134 = vmatprep.subr.mxu0 0.0
  %3135 = vmatpush1.msra.mxu0 0.0
  %3136 = vmatprep.subr.mxu0 0.0
  %3137 = vmatpush1.msra.mxu0 0.0
  %3138 = vmatprep.subr.mxu0 0.0
  %3139 = vmatpush1.msra.mxu0 0.0
  %3140 = vmatprep.subr.mxu0 %v2852
  %3141 = vmatpush1.msra.mxu0 %v2851
  %3142 = vmatprep.subr.mxu0 %v2848
  %3143 = vmatpush1.msra.mxu0 %v2847
  %3144 = vmatprep.subr.mxu0 %v2844
  %3145 = vmatpush1.msra.mxu0 %v2843
  %3146 = vmatprep.subr.mxu0 %v2840
  %3147 = vmatpush1.msra.mxu0 %v2839
  %3148 = vmatprep.subr.mxu0 0.0
  %3149 = vmatpush2.msra.mxu0 0.0
  %3150 = vmatprep.subr.mxu0 0.0
  %3151 = vmatpush2.msra.mxu0 0.0
  %3152 = vmatprep.subr.mxu0 0.0
  %3153 = vmatpush2.msra.mxu0 0.0
  %3154 = vmatprep.subr.mxu0 0.0
  %3155 = vmatpush2.msra.mxu0 0.0
  %3156 = vmatprep.subr.mxu0 0.0
  %3157 = vmatpush2.msra.mxu0 0.0
  %3158 = vmatprep.subr.mxu0 0.0
  %3159 = vmatpush2.msra.mxu0 0.0
  %3160 = vmatprep.subr.mxu0 0.0
  %3161 = vmatpush2.msra.mxu0 0.0
  %3162 = vmatprep.subr.mxu0 0.0
  %3163 = vmatpush2.msra.mxu0 0.0
  %3164 = vmatprep.subr.mxu0 0.0
  %3165 = vmatpush2.msra.mxu0 0.0
  %3166 = vmatprep.subr.mxu0 0.0
  %3167 = vmatpush2.msra.mxu0 0.0
  %3168 = vmatprep.subr.mxu0 0.0
  %3169 = vmatpush2.msra.mxu0 0.0
  %3170 = vmatprep.subr.mxu0 0.0
  %3171 = vmatpush2.msra.mxu0 0.0
  %3172 = vmatprep.subr.mxu0 0.0
  %3173 = vmatpush2.msra.mxu0 0.0
  %3174 = vmatprep.subr.mxu0 0.0
  %3175 = vmatpush2.msra.mxu0 0.0
  %3176 = vmatprep.subr.mxu0 0.0
  %3177 = vmatpush2.msra.mxu0 0.0
  %3178 = vmatprep.subr.mxu0 0.0
  %3179 = vmatpush2.msra.mxu0 0.0
  %3180 = vmatprep.mubr.f32.mxu0 0.0
  %3181 = vmatmul.mubr.f32.gmra.mxu0 %v3043
  %v3182 = vpop.f32.mrf.mxu0
  %v3183 = vadd.f32 0.0, %v3182
  %v3184 = vpop.f32.mrf.mxu0
  %v3185 = vadd.f32 0.0, %v3184
  %3186 = vdwg.mxu0
  %v3191 = vrot.slane %v3112, 6
  %v3192 = vrot.slane %v3114, 6
  %v3193 = vrot.slane %v3183, 6
  %v3194 = vrot.slane %v3185, 6
  %v3199 = vadd.f32 %v3038, %v3191
  %v3200 = vadd.f32 %v3039, %v3192
  %v3201 = vadd.f32 %v3040, %v3193
  %v3202 = vadd.f32 %v3041, %v3194
  %v3203 = vxor.u32 %v3199, 2147483648
  %v3204 = vmul.f32 %v3203, 1.442695
  %v3205 = vpow.pop %v3204
  %v3206 = vadd.f32 %v3205, 1.0
  %v3207 = vrcp.pop %v3206
  %v3208 = vmul.f32 1.0, %v3207
  %v3209 = vxor.u32 %v3200, 2147483648
  %v3210 = vmul.f32 %v3209, 1.442695
  %v3211 = vpow.pop %v3210
  %v3212 = vadd.f32 %v3211, 1.0
  %v3213 = vrcp.pop %v3212
  %v3214 = vmul.f32 1.0, %v3213
  %v3215 = vtanh.pop %v3201
  %v3216 = vxor.u32 %v3202, 2147483648
  %v3217 = vmul.f32 %v3216, 1.442695
  %v3218 = vpow.pop %v3217
  %v3219 = vadd.f32 %v3218, 1.0
  %v3220 = vrcp.pop %v3219
  %v3221 = vmul.f32 1.0, %v3220
  %v3223 = vrot.slane %v3023, 6
  %v3225 = vmul.f32 %v3214, %v3223
  %v3226 = vmul.f32 %v3208, %v3215
  %v3227 = vadd.f32 %v3225, %v3226
  %v3228 = vtanh.pop %v3227
  %v3229 = vmul.f32 %v3221, %v3228
  %v3230 = vrot.slane %v2756, 4
  %v3231 = vrot.slane %v2758, 4
  %v3232 = vrot.slane %v2827, 4
  %v3233 = vrot.slane %v2829, 4
  %v3238 = vadd.f32 %v2560, %v3230
  %v3239 = vadd.f32 %v2562, %v3231
  %v3240 = vadd.f32 %v2637, %v3232
  %v3241 = vadd.f32 %v2639, %v3233
  %v3243 = vrot.slane %v3229, 2
  %v3244 = vsel %vm2685, %v3243, 0
  %3246 = vmatprep.subr.mxu0 0.0
  %3247 = vmatpush1.msra.mxu0 0.0
  %3248 = vmatprep.subr.mxu0 0.0
  %3249 = vmatpush1.msra.mxu0 0.0
  %3250 = vmatprep.subr.mxu0 0.0
  %3251 = vmatpush1.msra.mxu0 0.0
  %3252 = vmatprep.subr.mxu0 0.0
  %3253 = vmatpush1.msra.mxu0 0.0
  %3254 = vmatprep.subr.mxu0 0.0
  %3255 = vmatpush1.msra.mxu0 0.0
  %3256 = vmatprep.subr.mxu0 0.0
  %3257 = vmatpush1.msra.mxu0 0.0
  %3258 = vmatprep.subr.mxu0 0.0
  %3259 = vmatpush1.msra.mxu0 0.0
  %3260 = vmatprep.subr.mxu0 0.0
  %3261 = vmatpush1.msra.mxu0 0.0
  %3262 = vmatprep.subr.mxu0 0.0
  %3263 = vmatpush1.msra.mxu0 0.0
  %3264 = vmatprep.subr.mxu0 0.0
  %3265 = vmatpush1.msra.mxu0 0.0
  %3266 = vmatprep.subr.mxu0 0.0
  %3267 = vmatpush1.msra.mxu0 0.0
  %3268 = vmatprep.subr.mxu0 0.0
  %3269 = vmatpush1.msra.mxu0 0.0
  %3270 = vmatprep.subr.mxu0 %v2850
  %3271 = vmatpush1.msra.mxu0 %v2849
  %3272 = vmatprep.subr.mxu0 %v2846
  %3273 = vmatpush1.msra.mxu0 %v2845
  %3274 = vmatprep.subr.mxu0 %v2842
  %3275 = vmatpush1.msra.mxu0 %v2841
  %3276 = vmatprep.subr.mxu0 %v2838
  %3277 = vmatpush1.msra.mxu0 %v2837
  %3278 = vmatprep.subr.mxu0 0.0
  %3279 = vmatpush2.msra.mxu0 0.0
  %3280 = vmatprep.subr.mxu0 0.0
  %3281 = vmatpush2.msra.mxu0 0.0
  %3282 = vmatprep.subr.mxu0 0.0
  %3283 = vmatpush2.msra.mxu0 0.0
  %3284 = vmatprep.subr.mxu0 0.0
  %3285 = vmatpush2.msra.mxu0 0.0
  %3286 = vmatprep.subr.mxu0 0.0
  %3287 = vmatpush2.msra.mxu0 0.0
  %3288 = vmatprep.subr.mxu0 0.0
  %3289 = vmatpush2.msra.mxu0 0.0
  %3290 = vmatprep.subr.mxu0 0.0
  %3291 = vmatpush2.msra.mxu0 0.0
  %3292 = vmatprep.subr.mxu0 0.0
  %3293 = vmatpush2.msra.mxu0 0.0
  %3294 = vmatprep.subr.mxu0 0.0
  %3295 = vmatpush2.msra.mxu0 0.0
  %3296 = vmatprep.subr.mxu0 0.0
  %3297 = vmatpush2.msra.mxu0 0.0
  %3298 = vmatprep.subr.mxu0 0.0
  %3299 = vmatpush2.msra.mxu0 0.0
  %3300 = vmatprep.subr.mxu0 0.0
  %3301 = vmatpush2.msra.mxu0 0.0
  %3302 = vmatprep.subr.mxu0 0.0
  %3303 = vmatpush2.msra.mxu0 0.0
  %3304 = vmatprep.subr.mxu0 0.0
  %3305 = vmatpush2.msra.mxu0 0.0
  %3306 = vmatprep.subr.mxu0 0.0
  %3307 = vmatpush2.msra.mxu0 0.0
  %3308 = vmatprep.subr.mxu0 0.0
  %3309 = vmatpush2.msra.mxu0 0.0
  %3310 = vmatprep.mubr.f32.mxu0 0.0
  %3311 = vmatmul.mubr.f32.gmra.mxu0 %v3244
  %v3312 = vpop.f32.mrf.mxu0
  %v3313 = vadd.f32 0.0, %v3312
  %v3314 = vpop.f32.mrf.mxu0
  %v3315 = vadd.f32 0.0, %v3314
  %3316 = vdwg.mxu0
  %3317 = vmatprep.subr.mxu0 0.0
  %3318 = vmatpush1.msra.mxu0 0.0
  %3319 = vmatprep.subr.mxu0 0.0
  %3320 = vmatpush1.msra.mxu0 0.0
  %3321 = vmatprep.subr.mxu0 0.0
  %3322 = vmatpush1.msra.mxu0 0.0
  %3323 = vmatprep.subr.mxu0 0.0
  %3324 = vmatpush1.msra.mxu0 0.0
  %3325 = vmatprep.subr.mxu0 0.0
  %3326 = vmatpush1.msra.mxu0 0.0
  %3327 = vmatprep.subr.mxu0 0.0
  %3328 = vmatpush1.msra.mxu0 0.0
  %3329 = vmatprep.subr.mxu0 0.0
  %3330 = vmatpush1.msra.mxu0 0.0
  %3331 = vmatprep.subr.mxu0 0.0
  %3332 = vmatpush1.msra.mxu0 0.0
  %3333 = vmatprep.subr.mxu0 0.0
  %3334 = vmatpush1.msra.mxu0 0.0
  %3335 = vmatprep.subr.mxu0 0.0
  %3336 = vmatpush1.msra.mxu0 0.0
  %3337 = vmatprep.subr.mxu0 0.0
  %3338 = vmatpush1.msra.mxu0 0.0
  %3339 = vmatprep.subr.mxu0 0.0
  %3340 = vmatpush1.msra.mxu0 0.0
  %3341 = vmatprep.subr.mxu0 %v2852
  %3342 = vmatpush1.msra.mxu0 %v2851
  %3343 = vmatprep.subr.mxu0 %v2848
  %3344 = vmatpush1.msra.mxu0 %v2847
  %3345 = vmatprep.subr.mxu0 %v2844
  %3346 = vmatpush1.msra.mxu0 %v2843
  %3347 = vmatprep.subr.mxu0 %v2840
  %3348 = vmatpush1.msra.mxu0 %v2839
  %3349 = vmatprep.subr.mxu0 0.0
  %3350 = vmatpush2.msra.mxu0 0.0
  %3351 = vmatprep.subr.mxu0 0.0
  %3352 = vmatpush2.msra.mxu0 0.0
  %3353 = vmatprep.subr.mxu0 0.0
  %3354 = vmatpush2.msra.mxu0 0.0
  %3355 = vmatprep.subr.mxu0 0.0
  %3356 = vmatpush2.msra.mxu0 0.0
  %3357 = vmatprep.subr.mxu0 0.0
  %3358 = vmatpush2.msra.mxu0 0.0
  %3359 = vmatprep.subr.mxu0 0.0
  %3360 = vmatpush2.msra.mxu0 0.0
  %3361 = vmatprep.subr.mxu0 0.0
  %3362 = vmatpush2.msra.mxu0 0.0
  %3363 = vmatprep.subr.mxu0 0.0
  %3364 = vmatpush2.msra.mxu0 0.0
  %3365 = vmatprep.subr.mxu0 0.0
  %3366 = vmatpush2.msra.mxu0 0.0
  %3367 = vmatprep.subr.mxu0 0.0
  %3368 = vmatpush2.msra.mxu0 0.0
  %3369 = vmatprep.subr.mxu0 0.0
  %3370 = vmatpush2.msra.mxu0 0.0
  %3371 = vmatprep.subr.mxu0 0.0
  %3372 = vmatpush2.msra.mxu0 0.0
  %3373 = vmatprep.subr.mxu0 0.0
  %3374 = vmatpush2.msra.mxu0 0.0
  %3375 = vmatprep.subr.mxu0 0.0
  %3376 = vmatpush2.msra.mxu0 0.0
  %3377 = vmatprep.subr.mxu0 0.0
  %3378 = vmatpush2.msra.mxu0 0.0
  %3379 = vmatprep.subr.mxu0 0.0
  %3380 = vmatpush2.msra.mxu0 0.0
  %3381 = vmatprep.mubr.f32.mxu0 0.0
  %3382 = vmatmul.mubr.f32.gmra.mxu0 %v3244
  %v3383 = vpop.f32.mrf.mxu0
  %v3384 = vadd.f32 0.0, %v3383
  %v3385 = vpop.f32.mrf.mxu0
  %v3386 = vadd.f32 0.0, %v3385
  %3387 = vdwg.mxu0
  %v3392 = vrot.slane %v3313, 4
  %v3393 = vrot.slane %v3315, 4
  %v3394 = vrot.slane %v3384, 4
  %v3395 = vrot.slane %v3386, 4
  %v3400 = vadd.f32 %v3238, %v3392
  %v3401 = vadd.f32 %v3239, %v3393
  %v3402 = vadd.f32 %v3240, %v3394
  %v3403 = vadd.f32 %v3241, %v3395
  %v3404 = vxor.u32 %v3400, 2147483648
  %v3405 = vmul.f32 %v3404, 1.442695
  %v3406 = vpow.pop %v3405
  %v3407 = vadd.f32 %v3406, 1.0
  %v3408 = vrcp.pop %v3407
  %v3409 = vmul.f32 1.0, %v3408
  %v3410 = vxor.u32 %v3401, 2147483648
  %v3411 = vmul.f32 %v3410, 1.442695
  %v3412 = vpow.pop %v3411
  %v3413 = vadd.f32 %v3412, 1.0
  %v3414 = vrcp.pop %v3413
  %v3415 = vmul.f32 1.0, %v3414
  %v3416 = vtanh.pop %v3402
  %v3417 = vxor.u32 %v3403, 2147483648
  %v3418 = vmul.f32 %v3417, 1.442695
  %v3419 = vpow.pop %v3418
  %v3420 = vadd.f32 %v3419, 1.0
  %v3421 = vrcp.pop %v3420
  %v3422 = vmul.f32 1.0, %v3421
  %v3424 = vrot.slane %v3227, 6
  %v3426 = vmul.f32 %v3415, %v3424
  %v3427 = vmul.f32 %v3409, %v3416
  %v3428 = vadd.f32 %v3426, %v3427
  %v3429 = vtanh.pop %v3428
  %v3430 = vmul.f32 %v3422, %v3429
  %v3431 = vrot.slane %v2756, 2
  %v3432 = vrot.slane %v2758, 2
  %v3433 = vrot.slane %v2827, 2
  %v3434 = vrot.slane %v2829, 2
  %v3439 = vadd.f32 %v2560, %v3431
  %v3440 = vadd.f32 %v2562, %v3432
  %v3441 = vadd.f32 %v2637, %v3433
  %v3442 = vadd.f32 %v2639, %v3434
  %v3444 = vrot.slane %v3430, 4
  %v3445 = vsel %vm2685, %v3444, 0
  %3447 = vmatprep.subr.mxu0 0.0
  %3448 = vmatpush1.msra.mxu0 0.0
  %3449 = vmatprep.subr.mxu0 0.0
  %3450 = vmatpush1.msra.mxu0 0.0
  %3451 = vmatprep.subr.mxu0 0.0
  %3452 = vmatpush1.msra.mxu0 0.0
  %3453 = vmatprep.subr.mxu0 0.0
  %3454 = vmatpush1.msra.mxu0 0.0
  %3455 = vmatprep.subr.mxu0 0.0
  %3456 = vmatpush1.msra.mxu0 0.0
  %3457 = vmatprep.subr.mxu0 0.0
  %3458 = vmatpush1.msra.mxu0 0.0
  %3459 = vmatprep.subr.mxu0 0.0
  %3460 = vmatpush1.msra.mxu0 0.0
  %3461 = vmatprep.subr.mxu0 0.0
  %3462 = vmatpush1.msra.mxu0 0.0
  %3463 = vmatprep.subr.mxu0 0.0
  %3464 = vmatpush1.msra.mxu0 0.0
  %3465 = vmatprep.subr.mxu0 0.0
  %3466 = vmatpush1.msra.mxu0 0.0
  %3467 = vmatprep.subr.mxu0 0.0
  %3468 = vmatpush1.msra.mxu0 0.0
  %3469 = vmatprep.subr.mxu0 0.0
  %3470 = vmatpush1.msra.mxu0 0.0
  %3471 = vmatprep.subr.mxu0 %v2850
  %3472 = vmatpush1.msra.mxu0 %v2849
  %3473 = vmatprep.subr.mxu0 %v2846
  %3474 = vmatpush1.msra.mxu0 %v2845
  %3475 = vmatprep.subr.mxu0 %v2842
  %3476 = vmatpush1.msra.mxu0 %v2841
  %3477 = vmatprep.subr.mxu0 %v2838
  %3478 = vmatpush1.msra.mxu0 %v2837
  %3479 = vmatprep.subr.mxu0 0.0
  %3480 = vmatpush2.msra.mxu0 0.0
  %3481 = vmatprep.subr.mxu0 0.0
  %3482 = vmatpush2.msra.mxu0 0.0
  %3483 = vmatprep.subr.mxu0 0.0
  %3484 = vmatpush2.msra.mxu0 0.0
  %3485 = vmatprep.subr.mxu0 0.0
  %3486 = vmatpush2.msra.mxu0 0.0
  %3487 = vmatprep.subr.mxu0 0.0
  %3488 = vmatpush2.msra.mxu0 0.0
  %3489 = vmatprep.subr.mxu0 0.0
  %3490 = vmatpush2.msra.mxu0 0.0
  %3491 = vmatprep.subr.mxu0 0.0
  %3492 = vmatpush2.msra.mxu0 0.0
  %3493 = vmatprep.subr.mxu0 0.0
  %3494 = vmatpush2.msra.mxu0 0.0
  %3495 = vmatprep.subr.mxu0 0.0
  %3496 = vmatpush2.msra.mxu0 0.0
  %3497 = vmatprep.subr.mxu0 0.0
  %3498 = vmatpush2.msra.mxu0 0.0
  %3499 = vmatprep.subr.mxu0 0.0
  %3500 = vmatpush2.msra.mxu0 0.0
  %3501 = vmatprep.subr.mxu0 0.0
  %3502 = vmatpush2.msra.mxu0 0.0
  %3503 = vmatprep.subr.mxu0 0.0
  %3504 = vmatpush2.msra.mxu0 0.0
  %3505 = vmatprep.subr.mxu0 0.0
  %3506 = vmatpush2.msra.mxu0 0.0
  %3507 = vmatprep.subr.mxu0 0.0
  %3508 = vmatpush2.msra.mxu0 0.0
  %3509 = vmatprep.subr.mxu0 0.0
  %3510 = vmatpush2.msra.mxu0 0.0
  %3511 = vmatprep.mubr.f32.mxu0 0.0
  %3512 = vmatmul.mubr.f32.gmra.mxu0 %v3445
  %v3513 = vpop.f32.mrf.mxu0
  %v3514 = vadd.f32 0.0, %v3513
  %v3515 = vpop.f32.mrf.mxu0
  %v3516 = vadd.f32 0.0, %v3515
  %3517 = vdwg.mxu0
  %3518 = vmatprep.subr.mxu0 0.0
  %3519 = vmatpush1.msra.mxu0 0.0
  %3520 = vmatprep.subr.mxu0 0.0
  %3521 = vmatpush1.msra.mxu0 0.0
  %3522 = vmatprep.subr.mxu0 0.0
  %3523 = vmatpush1.msra.mxu0 0.0
  %3524 = vmatprep.subr.mxu0 0.0
  %3525 = vmatpush1.msra.mxu0 0.0
  %3526 = vmatprep.subr.mxu0 0.0
  %3527 = vmatpush1.msra.mxu0 0.0
  %3528 = vmatprep.subr.mxu0 0.0
  %3529 = vmatpush1.msra.mxu0 0.0
  %3530 = vmatprep.subr.mxu0 0.0
  %3531 = vmatpush1.msra.mxu0 0.0
  %3532 = vmatprep.subr.mxu0 0.0
  %3533 = vmatpush1.msra.mxu0 0.0
  %3534 = vmatprep.subr.mxu0 0.0
  %3535 = vmatpush1.msra.mxu0 0.0
  %3536 = vmatprep.subr.mxu0 0.0
  %3537 = vmatpush1.msra.mxu0 0.0
  %3538 = vmatprep.subr.mxu0 0.0
  %3539 = vmatpush1.msra.mxu0 0.0
  %3540 = vmatprep.subr.mxu0 0.0
  %3541 = vmatpush1.msra.mxu0 0.0
  %3542 = vmatprep.subr.mxu0 %v2852
  %3543 = vmatpush1.msra.mxu0 %v2851
  %3544 = vmatprep.subr.mxu0 %v2848
  %3545 = vmatpush1.msra.mxu0 %v2847
  %3546 = vmatprep.subr.mxu0 %v2844
  %3547 = vmatpush1.msra.mxu0 %v2843
  %3548 = vmatprep.subr.mxu0 %v2840
  %3549 = vmatpush1.msra.mxu0 %v2839
  %3550 = vmatprep.subr.mxu0 0.0
  %3551 = vmatpush2.msra.mxu0 0.0
  %3552 = vmatprep.subr.mxu0 0.0
  %3553 = vmatpush2.msra.mxu0 0.0
  %3554 = vmatprep.subr.mxu0 0.0
  %3555 = vmatpush2.msra.mxu0 0.0
  %3556 = vmatprep.subr.mxu0 0.0
  %3557 = vmatpush2.msra.mxu0 0.0
  %3558 = vmatprep.subr.mxu0 0.0
  %3559 = vmatpush2.msra.mxu0 0.0
  %3560 = vmatprep.subr.mxu0 0.0
  %3561 = vmatpush2.msra.mxu0 0.0
  %3562 = vmatprep.subr.mxu0 0.0
  %3563 = vmatpush2.msra.mxu0 0.0
  %3564 = vmatprep.subr.mxu0 0.0
  %3565 = vmatpush2.msra.mxu0 0.0
  %3566 = vmatprep.subr.mxu0 0.0
  %3567 = vmatpush2.msra.mxu0 0.0
  %3568 = vmatprep.subr.mxu0 0.0
  %3569 = vmatpush2.msra.mxu0 0.0
  %3570 = vmatprep.subr.mxu0 0.0
  %3571 = vmatpush2.msra.mxu0 0.0
  %3572 = vmatprep.subr.mxu0 0.0
  %3573 = vmatpush2.msra.mxu0 0.0
  %3574 = vmatprep.subr.mxu0 0.0
  %3575 = vmatpush2.msra.mxu0 0.0
  %3576 = vmatprep.subr.mxu0 0.0
  %3577 = vmatpush2.msra.mxu0 0.0
  %3578 = vmatprep.subr.mxu0 0.0
  %3579 = vmatpush2.msra.mxu0 0.0
  %3580 = vmatprep.subr.mxu0 0.0
  %3581 = vmatpush2.msra.mxu0 0.0
  %3582 = vmatprep.mubr.f32.mxu0 0.0
  %3583 = vmatmul.mubr.f32.gmra.mxu0 %v3445
  %v3584 = vpop.f32.mrf.mxu0
  %v3585 = vadd.f32 0.0, %v3584
  %v3586 = vpop.f32.mrf.mxu0
  %v3587 = vadd.f32 0.0, %v3586
  %3588 = vdwg.mxu0
  %v3593 = vrot.slane %v3514, 2
  %v3594 = vrot.slane %v3516, 2
  %v3595 = vrot.slane %v3585, 2
  %v3596 = vrot.slane %v3587, 2
  %v3601 = vadd.f32 %v3439, %v3593
  %v3602 = vadd.f32 %v3440, %v3594
  %v3603 = vadd.f32 %v3441, %v3595
  %v3604 = vadd.f32 %v3442, %v3596
  %v3605 = vxor.u32 %v3601, 2147483648
  %v3606 = vmul.f32 %v3605, 1.442695
  %v3607 = vpow.pop %v3606
  %v3608 = vadd.f32 %v3607, 1.0
  %v3609 = vrcp.pop %v3608
  %v3610 = vmul.f32 1.0, %v3609
  %v3611 = vxor.u32 %v3602, 2147483648
  %v3612 = vmul.f32 %v3611, 1.442695
  %v3613 = vpow.pop %v3612
  %v3614 = vadd.f32 %v3613, 1.0
  %v3615 = vrcp.pop %v3614
  %v3616 = vmul.f32 1.0, %v3615
  %v3617 = vtanh.pop %v3603
  %v3618 = vxor.u32 %v3604, 2147483648
  %v3619 = vmul.f32 %v3618, 1.442695
  %v3620 = vpow.pop %v3619
  %v3621 = vadd.f32 %v3620, 1.0
  %v3622 = vrcp.pop %v3621
  %v3623 = vmul.f32 1.0, %v3622
  %v3625 = vrot.slane %v3428, 6
  %v3627 = vmul.f32 %v3616, %v3625
  %v3628 = vmul.f32 %v3610, %v3617
  %v3629 = vadd.f32 %v3627, %v3628
  %v3630 = vtanh.pop %v3629
  %v3631 = vmul.f32 %v3623, %v3630
  %v3632 = vadd.f32 %v2566, %v2756
  %v3633 = vadd.f32 %v2568, %v2758
  %v3634 = vadd.f32 %v2643, %v2827
  %v3635 = vadd.f32 %v2645, %v2829
  %v3637 = vrot.slane %v3631, 6
  %v3638 = vsel %vm2685, %v3637, 0
  %3640 = vmatprep.subr.mxu0 0.0
  %3641 = vmatpush1.msra.mxu0 0.0
  %3642 = vmatprep.subr.mxu0 0.0
  %3643 = vmatpush1.msra.mxu0 0.0
  %3644 = vmatprep.subr.mxu0 0.0
  %3645 = vmatpush1.msra.mxu0 0.0
  %3646 = vmatprep.subr.mxu0 0.0
  %3647 = vmatpush1.msra.mxu0 0.0
  %3648 = vmatprep.subr.mxu0 0.0
  %3649 = vmatpush1.msra.mxu0 0.0
  %3650 = vmatprep.subr.mxu0 0.0
  %3651 = vmatpush1.msra.mxu0 0.0
  %3652 = vmatprep.subr.mxu0 0.0
  %3653 = vmatpush1.msra.mxu0 0.0
  %3654 = vmatprep.subr.mxu0 0.0
  %3655 = vmatpush1.msra.mxu0 0.0
  %3656 = vmatprep.subr.mxu0 0.0
  %3657 = vmatpush1.msra.mxu0 0.0
  %3658 = vmatprep.subr.mxu0 0.0
  %3659 = vmatpush1.msra.mxu0 0.0
  %3660 = vmatprep.subr.mxu0 0.0
  %3661 = vmatpush1.msra.mxu0 0.0
  %3662 = vmatprep.subr.mxu0 0.0
  %3663 = vmatpush1.msra.mxu0 0.0
  %3664 = vmatprep.subr.mxu0 %v2850
  %3665 = vmatpush1.msra.mxu0 %v2849
  %3666 = vmatprep.subr.mxu0 %v2846
  %3667 = vmatpush1.msra.mxu0 %v2845
  %3668 = vmatprep.subr.mxu0 %v2842
  %3669 = vmatpush1.msra.mxu0 %v2841
  %3670 = vmatprep.subr.mxu0 %v2838
  %3671 = vmatpush1.msra.mxu0 %v2837
  %3672 = vmatprep.subr.mxu0 0.0
  %3673 = vmatpush2.msra.mxu0 0.0
  %3674 = vmatprep.subr.mxu0 0.0
  %3675 = vmatpush2.msra.mxu0 0.0
  %3676 = vmatprep.subr.mxu0 0.0
  %3677 = vmatpush2.msra.mxu0 0.0
  %3678 = vmatprep.subr.mxu0 0.0
  %3679 = vmatpush2.msra.mxu0 0.0
  %3680 = vmatprep.subr.mxu0 0.0
  %3681 = vmatpush2.msra.mxu0 0.0
  %3682 = vmatprep.subr.mxu0 0.0
  %3683 = vmatpush2.msra.mxu0 0.0
  %3684 = vmatprep.subr.mxu0 0.0
  %3685 = vmatpush2.msra.mxu0 0.0
  %3686 = vmatprep.subr.mxu0 0.0
  %3687 = vmatpush2.msra.mxu0 0.0
  %3688 = vmatprep.subr.mxu0 0.0
  %3689 = vmatpush2.msra.mxu0 0.0
  %3690 = vmatprep.subr.mxu0 0.0
  %3691 = vmatpush2.msra.mxu0 0.0
  %3692 = vmatprep.subr.mxu0 0.0
  %3693 = vmatpush2.msra.mxu0 0.0
  %3694 = vmatprep.subr.mxu0 0.0
  %3695 = vmatpush2.msra.mxu0 0.0
  %3696 = vmatprep.subr.mxu0 0.0
  %3697 = vmatpush2.msra.mxu0 0.0
  %3698 = vmatprep.subr.mxu0 0.0
  %3699 = vmatpush2.msra.mxu0 0.0
  %3700 = vmatprep.subr.mxu0 0.0
  %3701 = vmatpush2.msra.mxu0 0.0
  %3702 = vmatprep.subr.mxu0 0.0
  %3703 = vmatpush2.msra.mxu0 0.0
  %3704 = vmatprep.mubr.f32.mxu0 0.0
  %3705 = vmatmul.mubr.f32.gmra.mxu0 %v3638
  %v3706 = vpop.f32.mrf.mxu0
  %v3707 = vadd.f32 0.0, %v3706
  %v3708 = vpop.f32.mrf.mxu0
  %v3709 = vadd.f32 0.0, %v3708
  %3710 = vdwg.mxu0
  %3711 = vmatprep.subr.mxu0 0.0
  %3712 = vmatpush1.msra.mxu0 0.0
  %3713 = vmatprep.subr.mxu0 0.0
  %3714 = vmatpush1.msra.mxu0 0.0
  %3715 = vmatprep.subr.mxu0 0.0
  %3716 = vmatpush1.msra.mxu0 0.0
  %3717 = vmatprep.subr.mxu0 0.0
  %3718 = vmatpush1.msra.mxu0 0.0
  %3719 = vmatprep.subr.mxu0 0.0
  %3720 = vmatpush1.msra.mxu0 0.0
  %3721 = vmatprep.subr.mxu0 0.0
  %3722 = vmatpush1.msra.mxu0 0.0
  %3723 = vmatprep.subr.mxu0 0.0
  %3724 = vmatpush1.msra.mxu0 0.0
  %3725 = vmatprep.subr.mxu0 0.0
  %3726 = vmatpush1.msra.mxu0 0.0
  %3727 = vmatprep.subr.mxu0 0.0
  %3728 = vmatpush1.msra.mxu0 0.0
  %3729 = vmatprep.subr.mxu0 0.0
  %3730 = vmatpush1.msra.mxu0 0.0
  %3731 = vmatprep.subr.mxu0 0.0
  %3732 = vmatpush1.msra.mxu0 0.0
  %3733 = vmatprep.subr.mxu0 0.0
  %3734 = vmatpush1.msra.mxu0 0.0
  %3735 = vmatprep.subr.mxu0 %v2852
  %3736 = vmatpush1.msra.mxu0 %v2851
  %3737 = vmatprep.subr.mxu0 %v2848
  %3738 = vmatpush1.msra.mxu0 %v2847
  %3739 = vmatprep.subr.mxu0 %v2844
  %3740 = vmatpush1.msra.mxu0 %v2843
  %3741 = vmatprep.subr.mxu0 %v2840
  %3742 = vmatpush1.msra.mxu0 %v2839
  %3743 = vmatprep.subr.mxu0 0.0
  %3744 = vmatpush2.msra.mxu0 0.0
  %3745 = vmatprep.subr.mxu0 0.0
  %3746 = vmatpush2.msra.mxu0 0.0
  %3747 = vmatprep.subr.mxu0 0.0
  %3748 = vmatpush2.msra.mxu0 0.0
  %3749 = vmatprep.subr.mxu0 0.0
  %3750 = vmatpush2.msra.mxu0 0.0
  %3751 = vmatprep.subr.mxu0 0.0
  %3752 = vmatpush2.msra.mxu0 0.0
  %3753 = vmatprep.subr.mxu0 0.0
  %3754 = vmatpush2.msra.mxu0 0.0
  %3755 = vmatprep.subr.mxu0 0.0
  %3756 = vmatpush2.msra.mxu0 0.0
  %3757 = vmatprep.subr.mxu0 0.0
  %3758 = vmatpush2.msra.mxu0 0.0
  %3759 = vmatprep.subr.mxu0 0.0
  %3760 = vmatpush2.msra.mxu0 0.0
  %3761 = vmatprep.subr.mxu0 0.0
  %3762 = vmatpush2.msra.mxu0 0.0
  %3763 = vmatprep.subr.mxu0 0.0
  %3764 = vmatpush2.msra.mxu0 0.0
  %3765 = vmatprep.subr.mxu0 0.0
  %3766 = vmatpush2.msra.mxu0 0.0
  %3767 = vmatprep.subr.mxu0 0.0
  %3768 = vmatpush2.msra.mxu0 0.0
  %3769 = vmatprep.subr.mxu0 0.0
  %3770 = vmatpush2.msra.mxu0 0.0
  %3771 = vmatprep.subr.mxu0 0.0
  %3772 = vmatpush2.msra.mxu0 0.0
  %3773 = vmatprep.subr.mxu0 0.0
  %3774 = vmatpush2.msra.mxu0 0.0
  %3775 = vmatprep.mubr.f32.mxu0 0.0
  %3776 = vmatmul.mubr.f32.gmra.mxu0 %v3638
  %v3777 = vpop.f32.mrf.mxu0
  %v3778 = vadd.f32 0.0, %v3777
  %v3779 = vpop.f32.mrf.mxu0
  %v3780 = vadd.f32 0.0, %v3779
  %3781 = vdwg.mxu0
  %v3782 = vadd.f32 %v3632, %v3707
  %v3783 = vadd.f32 %v3633, %v3709
  %v3784 = vadd.f32 %v3634, %v3778
  %v3785 = vadd.f32 %v3635, %v3780
  %v3786 = vxor.u32 %v3782, 2147483648
  %v3787 = vmul.f32 %v3786, 1.442695
  %v3788 = vpow.pop %v3787
  %v3789 = vadd.f32 %v3788, 1.0
  %v3790 = vrcp.pop %v3789
  %v3791 = vmul.f32 1.0, %v3790
  %v3792 = vxor.u32 %v3783, 2147483648
  %v3793 = vmul.f32 %v3792, 1.442695
  %v3794 = vpow.pop %v3793
  %v3795 = vadd.f32 %v3794, 1.0
  %v3796 = vrcp.pop %v3795
  %v3797 = vmul.f32 1.0, %v3796
  %v3798 = vtanh.pop %v3784
  %v3799 = vxor.u32 %v3785, 2147483648
  %v3800 = vmul.f32 %v3799, 1.442695
  %v3801 = vpow.pop %v3800
  %v3802 = vadd.f32 %v3801, 1.0
  %v3803 = vrcp.pop %v3802
  %v3804 = vmul.f32 1.0, %v3803
  %v3806 = vrot.slane %v3629, 6
  %v3808 = vmul.f32 %v3797, %v3806
  %v3809 = vmul.f32 %v3791, %v3798
  %v3810 = vadd.f32 %v3808, %v3809
  %v3811 = vtanh.pop %v3810
  %v3812 = vmul.f32 %v3804, %v3811
  %v3813 = vadd.f32 %v2566, %v3030
  %v3814 = vadd.f32 %v2568, %v3031
  %v3815 = vadd.f32 %v2643, %v3032
  %v3816 = vadd.f32 %v2645, %v3033
  %v3818 = vsel %vm2685, %v3812, 0
  %3820 = vmatprep.subr.mxu0 0.0
  %3821 = vmatpush1.msra.mxu0 0.0
  %3822 = vmatprep.subr.mxu0 0.0
  %3823 = vmatpush1.msra.mxu0 0.0
  %3824 = vmatprep.subr.mxu0 0.0
  %3825 = vmatpush1.msra.mxu0 0.0
  %3826 = vmatprep.subr.mxu0 0.0
  %3827 = vmatpush1.msra.mxu0 0.0
  %3828 = vmatprep.subr.mxu0 0.0
  %3829 = vmatpush1.msra.mxu0 0.0
  %3830 = vmatprep.subr.mxu0 0.0
  %3831 = vmatpush1.msra.mxu0 0.0
  %3832 = vmatprep.subr.mxu0 0.0
  %3833 = vmatpush1.msra.mxu0 0.0
  %3834 = vmatprep.subr.mxu0 0.0
  %3835 = vmatpush1.msra.mxu0 0.0
  %3836 = vmatprep.subr.mxu0 0.0
  %3837 = vmatpush1.msra.mxu0 0.0
  %3838 = vmatprep.subr.mxu0 0.0
  %3839 = vmatpush1.msra.mxu0 0.0
  %3840 = vmatprep.subr.mxu0 0.0
  %3841 = vmatpush1.msra.mxu0 0.0
  %3842 = vmatprep.subr.mxu0 0.0
  %3843 = vmatpush1.msra.mxu0 0.0
  %3844 = vmatprep.subr.mxu0 %v2850
  %3845 = vmatpush1.msra.mxu0 %v2849
  %3846 = vmatprep.subr.mxu0 %v2846
  %3847 = vmatpush1.msra.mxu0 %v2845
  %3848 = vmatprep.subr.mxu0 %v2842
  %3849 = vmatpush1.msra.mxu0 %v2841
  %3850 = vmatprep.subr.mxu0 %v2838
  %3851 = vmatpush1.msra.mxu0 %v2837
  %3852 = vmatprep.subr.mxu0 0.0
  %3853 = vmatpush2.msra.mxu0 0.0
  %3854 = vmatprep.subr.mxu0 0.0
  %3855 = vmatpush2.msra.mxu0 0.0
  %3856 = vmatprep.subr.mxu0 0.0
  %3857 = vmatpush2.msra.mxu0 0.0
  %3858 = vmatprep.subr.mxu0 0.0
  %3859 = vmatpush2.msra.mxu0 0.0
  %3860 = vmatprep.subr.mxu0 0.0
  %3861 = vmatpush2.msra.mxu0 0.0
  %3862 = vmatprep.subr.mxu0 0.0
  %3863 = vmatpush2.msra.mxu0 0.0
  %3864 = vmatprep.subr.mxu0 0.0
  %3865 = vmatpush2.msra.mxu0 0.0
  %3866 = vmatprep.subr.mxu0 0.0
  %3867 = vmatpush2.msra.mxu0 0.0
  %3868 = vmatprep.subr.mxu0 0.0
  %3869 = vmatpush2.msra.mxu0 0.0
  %3870 = vmatprep.subr.mxu0 0.0
  %3871 = vmatpush2.msra.mxu0 0.0
  %3872 = vmatprep.subr.mxu0 0.0
  %3873 = vmatpush2.msra.mxu0 0.0
  %3874 = vmatprep.subr.mxu0 0.0
  %3875 = vmatpush2.msra.mxu0 0.0
  %3876 = vmatprep.subr.mxu0 0.0
  %3877 = vmatpush2.msra.mxu0 0.0
  %3878 = vmatprep.subr.mxu0 0.0
  %3879 = vmatpush2.msra.mxu0 0.0
  %3880 = vmatprep.subr.mxu0 0.0
  %3881 = vmatpush2.msra.mxu0 0.0
  %3882 = vmatprep.subr.mxu0 0.0
  %3883 = vmatpush2.msra.mxu0 0.0
  %3884 = vmatprep.mubr.f32.mxu0 0.0
  %3885 = vmatmul.mubr.f32.gmra.mxu0 %v3818
  %v3886 = vpop.f32.mrf.mxu0
  %v3887 = vadd.f32 0.0, %v3886
  %v3888 = vpop.f32.mrf.mxu0
  %v3889 = vadd.f32 0.0, %v3888
  %3890 = vdwg.mxu0
  %3891 = vmatprep.subr.mxu0 0.0
  %3892 = vmatpush1.msra.mxu0 0.0
  %3893 = vmatprep.subr.mxu0 0.0
  %3894 = vmatpush1.msra.mxu0 0.0
  %3895 = vmatprep.subr.mxu0 0.0
  %3896 = vmatpush1.msra.mxu0 0.0
  %3897 = vmatprep.subr.mxu0 0.0
  %3898 = vmatpush1.msra.mxu0 0.0
  %3899 = vmatprep.subr.mxu0 0.0
  %3900 = vmatpush1.msra.mxu0 0.0
  %3901 = vmatprep.subr.mxu0 0.0
  %3902 = vmatpush1.msra.mxu0 0.0
  %3903 = vmatprep.subr.mxu0 0.0
  %3904 = vmatpush1.msra.mxu0 0.0
  %3905 = vmatprep.subr.mxu0 0.0
  %3906 = vmatpush1.msra.mxu0 0.0
  %3907 = vmatprep.subr.mxu0 0.0
  %3908 = vmatpush1.msra.mxu0 0.0
  %3909 = vmatprep.subr.mxu0 0.0
  %3910 = vmatpush1.msra.mxu0 0.0
  %3911 = vmatprep.subr.mxu0 0.0
  %3912 = vmatpush1.msra.mxu0 0.0
  %3913 = vmatprep.subr.mxu0 0.0
  %3914 = vmatpush1.msra.mxu0 0.0
  %3915 = vmatprep.subr.mxu0 %v2852
  %3916 = vmatpush1.msra.mxu0 %v2851
  %3917 = vmatprep.subr.mxu0 %v2848
  %3918 = vmatpush1.msra.mxu0 %v2847
  %3919 = vmatprep.subr.mxu0 %v2844
  %3920 = vmatpush1.msra.mxu0 %v2843
  %3921 = vmatprep.subr.mxu0 %v2840
  %3922 = vmatpush1.msra.mxu0 %v2839
  %3923 = vmatprep.subr.mxu0 0.0
  %3924 = vmatpush2.msra.mxu0 0.0
  %3925 = vmatprep.subr.mxu0 0.0
  %3926 = vmatpush2.msra.mxu0 0.0
  %3927 = vmatprep.subr.mxu0 0.0
  %3928 = vmatpush2.msra.mxu0 0.0
  %3929 = vmatprep.subr.mxu0 0.0
  %3930 = vmatpush2.msra.mxu0 0.0
  %3931 = vmatprep.subr.mxu0 0.0
  %3932 = vmatpush2.msra.mxu0 0.0
  %3933 = vmatprep.subr.mxu0 0.0
  %3934 = vmatpush2.msra.mxu0 0.0
  %3935 = vmatprep.subr.mxu0 0.0
  %3936 = vmatpush2.msra.mxu0 0.0
  %3937 = vmatprep.subr.mxu0 0.0
  %3938 = vmatpush2.msra.mxu0 0.0
  %3939 = vmatprep.subr.mxu0 0.0
  %3940 = vmatpush2.msra.mxu0 0.0
  %3941 = vmatprep.subr.mxu0 0.0
  %3942 = vmatpush2.msra.mxu0 0.0
  %3943 = vmatprep.subr.mxu0 0.0
  %3944 = vmatpush2.msra.mxu0 0.0
  %3945 = vmatprep.subr.mxu0 0.0
  %3946 = vmatpush2.msra.mxu0 0.0
  %3947 = vmatprep.subr.mxu0 0.0
  %3948 = vmatpush2.msra.mxu0 0.0
  %3949 = vmatprep.subr.mxu0 0.0
  %3950 = vmatpush2.msra.mxu0 0.0
  %3951 = vmatprep.subr.mxu0 0.0
  %3952 = vmatpush2.msra.mxu0 0.0
  %3953 = vmatprep.subr.mxu0 0.0
  %3954 = vmatpush2.msra.mxu0 0.0
  %3955 = vmatprep.mubr.f32.mxu0 0.0
  %3956 = vmatmul.mubr.f32.gmra.mxu0 %v3818
  %v3957 = vpop.f32.mrf.mxu0
  %v3958 = vadd.f32 0.0, %v3957
  %v3959 = vpop.f32.mrf.mxu0
  %v3960 = vadd.f32 0.0, %v3959
  %3961 = vdwg.mxu0
  %v3966 = vrot.slane %v3887, 6
  %v3967 = vrot.slane %v3889, 6
  %v3968 = vrot.slane %v3958, 6
  %v3969 = vrot.slane %v3960, 6
  %v3974 = vadd.f32 %v3813, %v3966
  %v3975 = vadd.f32 %v3814, %v3967
  %v3976 = vadd.f32 %v3815, %v3968
  %v3977 = vadd.f32 %v3816, %v3969
  %v3978 = vxor.u32 %v3974, 2147483648
  %v3979 = vmul.f32 %v3978, 1.442695
  %v3980 = vpow.pop %v3979
  %v3981 = vadd.f32 %v3980, 1.0
  %v3982 = vrcp.pop %v3981
  %v3983 = vmul.f32 1.0, %v3982
  %v3984 = vxor.u32 %v3975, 2147483648
  %v3985 = vmul.f32 %v3984, 1.442695
  %v3986 = vpow.pop %v3985
  %v3987 = vadd.f32 %v3986, 1.0
  %v3988 = vrcp.pop %v3987
  %v3989 = vmul.f32 1.0, %v3988
  %v3990 = vtanh.pop %v3976
  %v3991 = vxor.u32 %v3977, 2147483648
  %v3992 = vmul.f32 %v3991, 1.442695
  %v3993 = vpow.pop %v3992
  %v3994 = vadd.f32 %v3993, 1.0
  %v3995 = vrcp.pop %v3994
  %v3996 = vmul.f32 1.0, %v3995
  %v3998 = vrot.slane %v3810, 6
  %v4000 = vmul.f32 %v3989, %v3998
  %v4001 = vmul.f32 %v3983, %v3990
  %v4002 = vadd.f32 %v4000, %v4001
  %v4003 = vtanh.pop %v4002
  %v4004 = vmul.f32 %v3996, %v4003
  %v4005 = vadd.f32 %v2566, %v3230
  %v4006 = vadd.f32 %v2568, %v3231
  %v4007 = vadd.f32 %v2643, %v3232
  %v4008 = vadd.f32 %v2645, %v3233
  %v4010 = vrot.slane %v4004, 2
  %v4011 = vsel %vm2685, %v4010, 0
  %4013 = vmatprep.subr.mxu0 0.0
  %4014 = vmatpush1.msra.mxu0 0.0
  %4015 = vmatprep.subr.mxu0 0.0
  %4016 = vmatpush1.msra.mxu0 0.0
  %4017 = vmatprep.subr.mxu0 0.0
  %4018 = vmatpush1.msra.mxu0 0.0
  %4019 = vmatprep.subr.mxu0 0.0
  %4020 = vmatpush1.msra.mxu0 0.0
  %4021 = vmatprep.subr.mxu0 0.0
  %4022 = vmatpush1.msra.mxu0 0.0
  %4023 = vmatprep.subr.mxu0 0.0
  %4024 = vmatpush1.msra.mxu0 0.0
  %4025 = vmatprep.subr.mxu0 0.0
  %4026 = vmatpush1.msra.mxu0 0.0
  %4027 = vmatprep.subr.mxu0 0.0
  %4028 = vmatpush1.msra.mxu0 0.0
  %4029 = vmatprep.subr.mxu0 0.0
  %4030 = vmatpush1.msra.mxu0 0.0
  %4031 = vmatprep.subr.mxu0 0.0
  %4032 = vmatpush1.msra.mxu0 0.0
  %4033 = vmatprep.subr.mxu0 0.0
  %4034 = vmatpush1.msra.mxu0 0.0
  %4035 = vmatprep.subr.mxu0 0.0
  %4036 = vmatpush1.msra.mxu0 0.0
  %4037 = vmatprep.subr.mxu0 %v2850
  %4038 = vmatpush1.msra.mxu0 %v2849
  %4039 = vmatprep.subr.mxu0 %v2846
  %4040 = vmatpush1.msra.mxu0 %v2845
  %4041 = vmatprep.subr.mxu0 %v2842
  %4042 = vmatpush1.msra.mxu0 %v2841
  %4043 = vmatprep.subr.mxu0 %v2838
  %4044 = vmatpush1.msra.mxu0 %v2837
  %4045 = vmatprep.subr.mxu0 0.0
  %4046 = vmatpush2.msra.mxu0 0.0
  %4047 = vmatprep.subr.mxu0 0.0
  %4048 = vmatpush2.msra.mxu0 0.0
  %4049 = vmatprep.subr.mxu0 0.0
  %4050 = vmatpush2.msra.mxu0 0.0
  %4051 = vmatprep.subr.mxu0 0.0
  %4052 = vmatpush2.msra.mxu0 0.0
  %4053 = vmatprep.subr.mxu0 0.0
  %4054 = vmatpush2.msra.mxu0 0.0
  %4055 = vmatprep.subr.mxu0 0.0
  %4056 = vmatpush2.msra.mxu0 0.0
  %4057 = vmatprep.subr.mxu0 0.0
  %4058 = vmatpush2.msra.mxu0 0.0
  %4059 = vmatprep.subr.mxu0 0.0
  %4060 = vmatpush2.msra.mxu0 0.0
  %4061 = vmatprep.subr.mxu0 0.0
  %4062 = vmatpush2.msra.mxu0 0.0
  %4063 = vmatprep.subr.mxu0 0.0
  %4064 = vmatpush2.msra.mxu0 0.0
  %4065 = vmatprep.subr.mxu0 0.0
  %4066 = vmatpush2.msra.mxu0 0.0
  %4067 = vmatprep.subr.mxu0 0.0
  %4068 = vmatpush2.msra.mxu0 0.0
  %4069 = vmatprep.subr.mxu0 0.0
  %4070 = vmatpush2.msra.mxu0 0.0
  %4071 = vmatprep.subr.mxu0 0.0
  %4072 = vmatpush2.msra.mxu0 0.0
  %4073 = vmatprep.subr.mxu0 0.0
  %4074 = vmatpush2.msra.mxu0 0.0
  %4075 = vmatprep.subr.mxu0 0.0
  %4076 = vmatpush2.msra.mxu0 0.0
  %4077 = vmatprep.mubr.f32.mxu0 0.0
  %4078 = vmatmul.mubr.f32.gmra.mxu0 %v4011
  %v4079 = vpop.f32.mrf.mxu0
  %v4080 = vadd.f32 0.0, %v4079
  %v4081 = vpop.f32.mrf.mxu0
  %v4082 = vadd.f32 0.0, %v4081
  %4083 = vdwg.mxu0
  %4084 = vmatprep.subr.mxu0 0.0
  %4085 = vmatpush1.msra.mxu0 0.0
  %4086 = vmatprep.subr.mxu0 0.0
  %4087 = vmatpush1.msra.mxu0 0.0
  %4088 = vmatprep.subr.mxu0 0.0
  %4089 = vmatpush1.msra.mxu0 0.0
  %4090 = vmatprep.subr.mxu0 0.0
  %4091 = vmatpush1.msra.mxu0 0.0
  %4092 = vmatprep.subr.mxu0 0.0
  %4093 = vmatpush1.msra.mxu0 0.0
  %4094 = vmatprep.subr.mxu0 0.0
  %4095 = vmatpush1.msra.mxu0 0.0
  %4096 = vmatprep.subr.mxu0 0.0
  %4097 = vmatpush1.msra.mxu0 0.0
  %4098 = vmatprep.subr.mxu0 0.0
  %4099 = vmatpush1.msra.mxu0 0.0
  %4100 = vmatprep.subr.mxu0 0.0
  %4101 = vmatpush1.msra.mxu0 0.0
  %4102 = vmatprep.subr.mxu0 0.0
  %4103 = vmatpush1.msra.mxu0 0.0
  %4104 = vmatprep.subr.mxu0 0.0
  %4105 = vmatpush1.msra.mxu0 0.0
  %4106 = vmatprep.subr.mxu0 0.0
  %4107 = vmatpush1.msra.mxu0 0.0
  %4108 = vmatprep.subr.mxu0 %v2852
  %4109 = vmatpush1.msra.mxu0 %v2851
  %4110 = vmatprep.subr.mxu0 %v2848
  %4111 = vmatpush1.msra.mxu0 %v2847
  %4112 = vmatprep.subr.mxu0 %v2844
  %4113 = vmatpush1.msra.mxu0 %v2843
  %4114 = vmatprep.subr.mxu0 %v2840
  %4115 = vmatpush1.msra.mxu0 %v2839
  %4116 = vmatprep.subr.mxu0 0.0
  %4117 = vmatpush2.msra.mxu0 0.0
  %4118 = vmatprep.subr.mxu0 0.0
  %4119 = vmatpush2.msra.mxu0 0.0
  %4120 = vmatprep.subr.mxu0 0.0
  %4121 = vmatpush2.msra.mxu0 0.0
  %4122 = vmatprep.subr.mxu0 0.0
  %4123 = vmatpush2.msra.mxu0 0.0
  %4124 = vmatprep.subr.mxu0 0.0
  %4125 = vmatpush2.msra.mxu0 0.0
  %4126 = vmatprep.subr.mxu0 0.0
  %4127 = vmatpush2.msra.mxu0 0.0
  %4128 = vmatprep.subr.mxu0 0.0
  %4129 = vmatpush2.msra.mxu0 0.0
  %4130 = vmatprep.subr.mxu0 0.0
  %4131 = vmatpush2.msra.mxu0 0.0
  %4132 = vmatprep.subr.mxu0 0.0
  %4133 = vmatpush2.msra.mxu0 0.0
  %4134 = vmatprep.subr.mxu0 0.0
  %4135 = vmatpush2.msra.mxu0 0.0
  %4136 = vmatprep.subr.mxu0 0.0
  %4137 = vmatpush2.msra.mxu0 0.0
  %4138 = vmatprep.subr.mxu0 0.0
  %4139 = vmatpush2.msra.mxu0 0.0
  %4140 = vmatprep.subr.mxu0 0.0
  %4141 = vmatpush2.msra.mxu0 0.0
  %4142 = vmatprep.subr.mxu0 0.0
  %4143 = vmatpush2.msra.mxu0 0.0
  %4144 = vmatprep.subr.mxu0 0.0
  %4145 = vmatpush2.msra.mxu0 0.0
  %4146 = vmatprep.subr.mxu0 0.0
  %4147 = vmatpush2.msra.mxu0 0.0
  %4148 = vmatprep.mubr.f32.mxu0 0.0
  %4149 = vmatmul.mubr.f32.gmra.mxu0 %v4011
  %v4150 = vpop.f32.mrf.mxu0
  %v4151 = vadd.f32 0.0, %v4150
  %v4152 = vpop.f32.mrf.mxu0
  %v4153 = vadd.f32 0.0, %v4152
  %4154 = vdwg.mxu0
  %v4159 = vrot.slane %v4080, 4
  %v4160 = vrot.slane %v4082, 4
  %v4161 = vrot.slane %v4151, 4
  %v4162 = vrot.slane %v4153, 4
  %v4167 = vadd.f32 %v4005, %v4159
  %v4168 = vadd.f32 %v4006, %v4160
  %v4169 = vadd.f32 %v4007, %v4161
  %v4170 = vadd.f32 %v4008, %v4162
  %v4171 = vxor.u32 %v4167, 2147483648
  %v4172 = vmul.f32 %v4171, 1.442695
  %v4173 = vpow.pop %v4172
  %v4174 = vadd.f32 %v4173, 1.0
  %v4175 = vrcp.pop %v4174
  %v4176 = vmul.f32 1.0, %v4175
  %v4177 = vxor.u32 %v4168, 2147483648
  %v4178 = vmul.f32 %v4177, 1.442695
  %v4179 = vpow.pop %v4178
  %v4180 = vadd.f32 %v4179, 1.0
  %v4181 = vrcp.pop %v4180
  %v4182 = vmul.f32 1.0, %v4181
  %v4183 = vtanh.pop %v4169
  %v4184 = vxor.u32 %v4170, 2147483648
  %v4185 = vmul.f32 %v4184, 1.442695
  %v4186 = vpow.pop %v4185
  %v4187 = vadd.f32 %v4186, 1.0
  %v4188 = vrcp.pop %v4187
  %v4189 = vmul.f32 1.0, %v4188
  %v4191 = vrot.slane %v4002, 6
  %v4193 = vmul.f32 %v4182, %v4191
  %v4194 = vmul.f32 %v4176, %v4183
  %v4195 = vadd.f32 %v4193, %v4194
  %v4196 = vtanh.pop %v4195
  %v4197 = vmul.f32 %v4189, %v4196
  %v4198 = vadd.f32 %v2566, %v3431
  %v4199 = vadd.f32 %v2568, %v3432
  %v4200 = vadd.f32 %v2643, %v3433
  %v4201 = vadd.f32 %v2645, %v3434
  %v4203 = vrot.slane %v4197, 4
  %v4204 = vsel %vm2685, %v4203, 0
  %4206 = vmatprep.subr.mxu0 0.0
  %4207 = vmatpush1.msra.mxu0 0.0
  %4208 = vmatprep.subr.mxu0 0.0
  %4209 = vmatpush1.msra.mxu0 0.0
  %4210 = vmatprep.subr.mxu0 0.0
  %4211 = vmatpush1.msra.mxu0 0.0
  %4212 = vmatprep.subr.mxu0 0.0
  %4213 = vmatpush1.msra.mxu0 0.0
  %4214 = vmatprep.subr.mxu0 0.0
  %4215 = vmatpush1.msra.mxu0 0.0
  %4216 = vmatprep.subr.mxu0 0.0
  %4217 = vmatpush1.msra.mxu0 0.0
  %4218 = vmatprep.subr.mxu0 0.0
  %4219 = vmatpush1.msra.mxu0 0.0
  %4220 = vmatprep.subr.mxu0 0.0
  %4221 = vmatpush1.msra.mxu0 0.0
  %4222 = vmatprep.subr.mxu0 0.0
  %4223 = vmatpush1.msra.mxu0 0.0
  %4224 = vmatprep.subr.mxu0 0.0
  %4225 = vmatpush1.msra.mxu0 0.0
  %4226 = vmatprep.subr.mxu0 0.0
  %4227 = vmatpush1.msra.mxu0 0.0
  %4228 = vmatprep.subr.mxu0 0.0
  %4229 = vmatpush1.msra.mxu0 0.0
  %4230 = vmatprep.subr.mxu0 %v2850
  %4231 = vmatpush1.msra.mxu0 %v2849
  %4232 = vmatprep.subr.mxu0 %v2846
  %4233 = vmatpush1.msra.mxu0 %v2845
  %4234 = vmatprep.subr.mxu0 %v2842
  %4235 = vmatpush1.msra.mxu0 %v2841
  %4236 = vmatprep.subr.mxu0 %v2838
  %4237 = vmatpush1.msra.mxu0 %v2837
  %4238 = vmatprep.subr.mxu0 0.0
  %4239 = vmatpush2.msra.mxu0 0.0
  %4240 = vmatprep.subr.mxu0 0.0
  %4241 = vmatpush2.msra.mxu0 0.0
  %4242 = vmatprep.subr.mxu0 0.0
  %4243 = vmatpush2.msra.mxu0 0.0
  %4244 = vmatprep.subr.mxu0 0.0
  %4245 = vmatpush2.msra.mxu0 0.0
  %4246 = vmatprep.subr.mxu0 0.0
  %4247 = vmatpush2.msra.mxu0 0.0
  %4248 = vmatprep.subr.mxu0 0.0
  %4249 = vmatpush2.msra.mxu0 0.0
  %4250 = vmatprep.subr.mxu0 0.0
  %4251 = vmatpush2.msra.mxu0 0.0
  %4252 = vmatprep.subr.mxu0 0.0
  %4253 = vmatpush2.msra.mxu0 0.0
  %4254 = vmatprep.subr.mxu0 0.0
  %4255 = vmatpush2.msra.mxu0 0.0
  %4256 = vmatprep.subr.mxu0 0.0
  %4257 = vmatpush2.msra.mxu0 0.0
  %4258 = vmatprep.subr.mxu0 0.0
  %4259 = vmatpush2.msra.mxu0 0.0
  %4260 = vmatprep.subr.mxu0 0.0
  %4261 = vmatpush2.msra.mxu0 0.0
  %4262 = vmatprep.subr.mxu0 0.0
  %4263 = vmatpush2.msra.mxu0 0.0
  %4264 = vmatprep.subr.mxu0 0.0
  %4265 = vmatpush2.msra.mxu0 0.0
  %4266 = vmatprep.subr.mxu0 0.0
  %4267 = vmatpush2.msra.mxu0 0.0
  %4268 = vmatprep.subr.mxu0 0.0
  %4269 = vmatpush2.msra.mxu0 0.0
  %4270 = vmatprep.mubr.f32.mxu0 0.0
  %4271 = vmatmul.mubr.f32.gmra.mxu0 %v4204
  %v4272 = vpop.f32.mrf.mxu0
  %v4273 = vadd.f32 0.0, %v4272
  %v4274 = vpop.f32.mrf.mxu0
  %v4275 = vadd.f32 0.0, %v4274
  %4276 = vdwg.mxu0
  %4277 = vmatprep.subr.mxu0 0.0
  %4278 = vmatpush1.msra.mxu0 0.0
  %4279 = vmatprep.subr.mxu0 0.0
  %4280 = vmatpush1.msra.mxu0 0.0
  %4281 = vmatprep.subr.mxu0 0.0
  %4282 = vmatpush1.msra.mxu0 0.0
  %4283 = vmatprep.subr.mxu0 0.0
  %4284 = vmatpush1.msra.mxu0 0.0
  %4285 = vmatprep.subr.mxu0 0.0
  %4286 = vmatpush1.msra.mxu0 0.0
  %4287 = vmatprep.subr.mxu0 0.0
  %4288 = vmatpush1.msra.mxu0 0.0
  %4289 = vmatprep.subr.mxu0 0.0
  %4290 = vmatpush1.msra.mxu0 0.0
  %4291 = vmatprep.subr.mxu0 0.0
  %4292 = vmatpush1.msra.mxu0 0.0
  %4293 = vmatprep.subr.mxu0 0.0
  %4294 = vmatpush1.msra.mxu0 0.0
  %4295 = vmatprep.subr.mxu0 0.0
  %4296 = vmatpush1.msra.mxu0 0.0
  %4297 = vmatprep.subr.mxu0 0.0
  %4298 = vmatpush1.msra.mxu0 0.0
  %4299 = vmatprep.subr.mxu0 0.0
  %4300 = vmatpush1.msra.mxu0 0.0
  %4301 = vmatprep.subr.mxu0 %v2852
  %4302 = vmatpush1.msra.mxu0 %v2851
  %4303 = vmatprep.subr.mxu0 %v2848
  %4304 = vmatpush1.msra.mxu0 %v2847
  %4305 = vmatprep.subr.mxu0 %v2844
  %4306 = vmatpush1.msra.mxu0 %v2843
  %4307 = vmatprep.subr.mxu0 %v2840
  %4308 = vmatpush1.msra.mxu0 %v2839
  %4309 = vmatprep.subr.mxu0 0.0
  %4310 = vmatpush2.msra.mxu0 0.0
  %4311 = vmatprep.subr.mxu0 0.0
  %4312 = vmatpush2.msra.mxu0 0.0
  %4313 = vmatprep.subr.mxu0 0.0
  %4314 = vmatpush2.msra.mxu0 0.0
  %4315 = vmatprep.subr.mxu0 0.0
  %4316 = vmatpush2.msra.mxu0 0.0
  %4317 = vmatprep.subr.mxu0 0.0
  %4318 = vmatpush2.msra.mxu0 0.0
  %4319 = vmatprep.subr.mxu0 0.0
  %4320 = vmatpush2.msra.mxu0 0.0
  %4321 = vmatprep.subr.mxu0 0.0
  %4322 = vmatpush2.msra.mxu0 0.0
  %4323 = vmatprep.subr.mxu0 0.0
  %4324 = vmatpush2.msra.mxu0 0.0
  %4325 = vmatprep.subr.mxu0 0.0
  %4326 = vmatpush2.msra.mxu0 0.0
  %4327 = vmatprep.subr.mxu0 0.0
  %4328 = vmatpush2.msra.mxu0 0.0
  %4329 = vmatprep.subr.mxu0 0.0
  %4330 = vmatpush2.msra.mxu0 0.0
  %4331 = vmatprep.subr.mxu0 0.0
  %4332 = vmatpush2.msra.mxu0 0.0
  %4333 = vmatprep.subr.mxu0 0.0
  %4334 = vmatpush2.msra.mxu0 0.0
  %4335 = vmatprep.subr.mxu0 0.0
  %4336 = vmatpush2.msra.mxu0 0.0
  %4337 = vmatprep.subr.mxu0 0.0
  %4338 = vmatpush2.msra.mxu0 0.0
  %4339 = vmatprep.subr.mxu0 0.0
  %4340 = vmatpush2.msra.mxu0 0.0
  %4341 = vmatprep.mubr.f32.mxu0 0.0
  %4342 = vmatmul.mubr.f32.gmra.mxu0 %v4204
  %v4343 = vpop.f32.mrf.mxu0
  %v4344 = vadd.f32 0.0, %v4343
  %v4345 = vpop.f32.mrf.mxu0
  %v4346 = vadd.f32 0.0, %v4345
  %4347 = vdwg.mxu0
  %v4352 = vrot.slane %v4273, 2
  %v4353 = vrot.slane %v4275, 2
  %v4354 = vrot.slane %v4344, 2
  %v4355 = vrot.slane %v4346, 2
  %v4360 = vadd.f32 %v4198, %v4352
  %v4361 = vadd.f32 %v4199, %v4353
  %v4362 = vadd.f32 %v4200, %v4354
  %v4363 = vadd.f32 %v4201, %v4355
  %v4364 = vxor.u32 %v4360, 2147483648
  %v4365 = vmul.f32 %v4364, 1.442695
  %v4366 = vpow.pop %v4365
  %v4367 = vadd.f32 %v4366, 1.0
  %v4368 = vrcp.pop %v4367
  %v4369 = vmul.f32 1.0, %v4368
  %v4370 = vxor.u32 %v4361, 2147483648
  %v4371 = vmul.f32 %v4370, 1.442695
  %v4372 = vpow.pop %v4371
  %v4373 = vadd.f32 %v4372, 1.0
  %v4374 = vrcp.pop %v4373
  %v4375 = vmul.f32 1.0, %v4374
  %v4376 = vtanh.pop %v4362
  %v4377 = vxor.u32 %v4363, 2147483648
  %v4378 = vmul.f32 %v4377, 1.442695
  %v4379 = vpow.pop %v4378
  %v4380 = vadd.f32 %v4379, 1.0
  %v4381 = vrcp.pop %v4380
  %v4382 = vmul.f32 1.0, %v4381
  %v4384 = vrot.slane %v4195, 6
  %v4386 = vmul.f32 %v4375, %v4384
  %v4387 = vmul.f32 %v4369, %v4376
  %v4388 = vadd.f32 %v4386, %v4387
  %v4389 = vtanh.pop %v4388
  %v4390 = vmul.f32 %v4382, %v4389
  %4391 = vrot.lane.b32.xlu0 %v3243, 32
  %v4392 = vpop.permute.xlu0 %4391
  %4394 = vrot.lane.b32.xlu0 %v3444, 64
  %v4395 = vpop.permute.xlu0 %4394
  %4397 = vrot.lane.b32.xlu0 %v3637, 96
  %v4398 = vpop.permute.xlu0 %4397
  %4400 = vrot.lane.b32.xlu0 %v4010, 32
  %v4401 = vpop.permute.xlu0 %4400
  %4403 = vrot.lane.b32.xlu0 %v4203, 64
  %v4404 = vpop.permute.xlu0 %4403
  %v4407 = vrot.slane %v4390, 6
  %4408 = vrot.lane.b32.xlu0 %v4407, 96
  %v4409 = vpop.permute.xlu0 %4408
  %v4411 = vsel %vm2685, %v3025, %v4392
  %vm4412 = vcmask 523264
  %v4413 = vsel %vm4412, %v4411, %v4395
  %vm4414 = vcmask 785408
  %v4415 = vsel %vm4414, %v4413, %v4398
  %v4416 = vsel %vm2685, %v3812, %v4401
  %v4417 = vsel %vm4412, %v4416, %v4404
  %v4418 = vsel %vm4414, %v4417, %v4409
  %v4419 = vld [vmem:[%s13] sm:$0xff]
  %v4420 = vld [vmem:[%s13 + $0x8] sm:$0xff]
  %v4421 = vld [vmem:[%s13 + $0x10] sm:$0xff]
  %v4422 = vld [vmem:[%s13 + $0x18] sm:$0xff]
  %v4423 = vld [vmem:[%s13 + $0x20] sm:$0xff]
  %v4424 = vld [vmem:[%s13 + $0x28] sm:$0xff]
  %v4425 = vld [vmem:[%s13 + $0x30] sm:$0xff]
  %v4426 = vld [vmem:[%s13 + $0x38] sm:$0xff]
  %v4427 = vld [vmem:[%s13 + $0x40] sm:$0xff]
  %v4428 = vld [vmem:[%s13 + $0x48] sm:$0xff]
  %v4429 = vld [vmem:[%s13 + $0x50] sm:$0xff]
  %v4430 = vld [vmem:[%s13 + $0x58] sm:$0xff]
  %v4431 = vld [vmem:[%s13 + $0x60] sm:$0xff]
  %v4432 = vld [vmem:[%s13 + $0x68] sm:$0xff]
  %v4433 = vld [vmem:[%s13 + $0x70] sm:$0xff]
  %v4434 = vld [vmem:[%s13 + $0x78] sm:$0xff]
  %v4435 = vld [vmem:[%s13 + $0x80] sm:$0xff]
  %v4436 = vld [vmem:[%s13 + $0x88] sm:$0xff]
  %v4437 = vld [vmem:[%s13 + $0x90] sm:$0xff]
  %v4438 = vld [vmem:[%s13 + $0x98] sm:$0xff]
  %v4439 = vld [vmem:[%s13 + $0xa0] sm:$0xff]
  %v4440 = vld [vmem:[%s13 + $0xa8] sm:$0xff]
  %v4441 = vld [vmem:[%s13 + $0xb0] sm:$0xff]
  %v4442 = vld [vmem:[%s13 + $0xb8] sm:$0xff]
  %v4443 = vld [vmem:[%s13 + $0xc0] sm:$0xff]
  %v4444 = vld [vmem:[%s13 + $0xc8] sm:$0xff]
  %v4445 = vld [vmem:[%s13 + $0xd0] sm:$0xff]
  %v4446 = vld [vmem:[%s13 + $0xd8] sm:$0xff]
  %v4447 = vld [vmem:[%s13 + $0xe0] sm:$0xff]
  %v4448 = vld [vmem:[%s13 + $0xe8] sm:$0xff]
  %v4449 = vld [vmem:[%s13 + $0xf0] sm:$0xff]
  %v4450 = vld [vmem:[%s13 + $0xf8] sm:$0xff]
  %v4451 = vld [vmem:[%s14] sm:$0x1]
  %v4453 = vlaneseq
  %v4454 = vshrl.u32 %v4453, 7
  %v4455 = vsub.s32 0, %v4454
  %v4456 = vrot.slane %v4451, %v4455
  %4458 = vmatprep.subr.mxu0 0.0
  %4459 = vmatpush1.msra.mxu0 %v4434
  %4460 = vmatprep.subr.mxu0 0.0
  %4461 = vmatpush1.msra.mxu0 %v4433
  %4462 = vmatprep.subr.mxu0 0.0
  %4463 = vmatpush1.msra.mxu0 %v4432
  %4464 = vmatprep.subr.mxu0 0.0
  %4465 = vmatpush1.msra.mxu0 %v4431
  %4466 = vmatprep.subr.mxu0 0.0
  %4467 = vmatpush1.msra.mxu0 %v4430
  %4468 = vmatprep.subr.mxu0 0.0
  %4469 = vmatpush1.msra.mxu0 %v4429
  %4470 = vmatprep.subr.mxu0 0.0
  %4471 = vmatpush1.msra.mxu0 %v4428
  %4472 = vmatprep.subr.mxu0 0.0
  %4473 = vmatpush1.msra.mxu0 %v4427
  %4474 = vmatprep.subr.mxu0 0.0
  %4475 = vmatpush1.msra.mxu0 %v4426
  %4476 = vmatprep.subr.mxu0 0.0
  %4477 = vmatpush1.msra.mxu0 %v4425
  %4478 = vmatprep.subr.mxu0 0.0
  %4479 = vmatpush1.msra.mxu0 %v4424
  %4480 = vmatprep.subr.mxu0 0.0
  %4481 = vmatpush1.msra.mxu0 %v4423
  %4482 = vmatprep.subr.mxu0 0.0
  %4483 = vmatpush1.msra.mxu0 %v4422
  %4484 = vmatprep.subr.mxu0 0.0
  %4485 = vmatpush1.msra.mxu0 %v4421
  %4486 = vmatprep.subr.mxu0 0.0
  %4487 = vmatpush1.msra.mxu0 %v4420
  %4488 = vmatprep.subr.mxu0 0.0
  %4489 = vmatpush1.msra.mxu0 %v4419
  %4490 = vmatprep.subr.mxu0 0.0
  %4491 = vmatpush2.msra.mxu0 %v4450
  %4492 = vmatprep.subr.mxu0 0.0
  %4493 = vmatpush2.msra.mxu0 %v4449
  %4494 = vmatprep.subr.mxu0 0.0
  %4495 = vmatpush2.msra.mxu0 %v4448
  %4496 = vmatprep.subr.mxu0 0.0
  %4497 = vmatpush2.msra.mxu0 %v4447
  %4498 = vmatprep.subr.mxu0 0.0
  %4499 = vmatpush2.msra.mxu0 %v4446
  %4500 = vmatprep.subr.mxu0 0.0
  %4501 = vmatpush2.msra.mxu0 %v4445
  %4502 = vmatprep.subr.mxu0 0.0
  %4503 = vmatpush2.msra.mxu0 %v4444
  %4504 = vmatprep.subr.mxu0 0.0
  %4505 = vmatpush2.msra.mxu0 %v4443
  %4506 = vmatprep.subr.mxu0 0.0
  %4507 = vmatpush2.msra.mxu0 %v4442
  %4508 = vmatprep.subr.mxu0 0.0
  %4509 = vmatpush2.msra.mxu0 %v4441
  %4510 = vmatprep.subr.mxu0 0.0
  %4511 = vmatpush2.msra.mxu0 %v4440
  %4512 = vmatprep.subr.mxu0 0.0
  %4513 = vmatpush2.msra.mxu0 %v4439
  %4514 = vmatprep.subr.mxu0 0.0
  %4515 = vmatpush2.msra.mxu0 %v4438
  %4516 = vmatprep.subr.mxu0 0.0
  %4517 = vmatpush2.msra.mxu0 %v4437
  %4518 = vmatprep.subr.mxu0 0.0
  %4519 = vmatpush2.msra.mxu0 %v4436
  %4520 = vmatprep.subr.mxu0 0.0
  %4521 = vmatpush2.msra.mxu0 %v4435
  %4522 = vmatprep.mubr.f32.mxu0 %v4418
  %4523 = vmatmul.mubr.f32.gmra.mxu0 %v4415
  %v4524 = vpop.f32.mrf.mxu0
  %v4525 = vadd.f32 %v4456, %v4524
  %v4526 = vpop.f32.mrf.mxu0
  %4527 = vdwg.mxu0
  %4528 = vst [vmem:[%s17] sm:$0x3] %v4525
  %4530 = vrot.lane.b32.xlu0 %v4388, 32
  %v4531 = vpop.permute.xlu0 %4530
  %v4533 = vsel %vm2685, %v4390, %v4531
  %vm4534 = vcmask 523270
  %4535 = vst.msk [vmem:[%s18 - $0x6] sm:$0xc0] %vm4534, %v4533
  // Predicated region
  $region66: #{finetune_synth_forward.1} parent=0 // pred_check
    _
  $region67: #{finetune_synth_forward.1} parent=0 // pred_check_branch
    %4537 = sbr.rel (0) target = $region69
  $region68: #{finetune_synth_forward.1} parent=0 // pred_region
    _
  $region69: #{finetune_synth_forward.1} parent=0 // pred_fallthru
    _
  // Predicated region
  $region70: #{finetune_synth_forward.1} parent=0 // pred_check
    _
  $region71: #{finetune_synth_forward.1} parent=0 // pred_check_branch
    %4539 = sbr.rel (0) target = $region73
  $region72: #{finetune_synth_forward.1} parent=0 // pred_region
    _
  $region73: #{finetune_synth_forward.1} parent=0 // pred_fallthru
    _
  // Predicated region
  $region74: #{finetune_synth_forward.1} parent=0 // pred_check
    _
  $region75: #{finetune_synth_forward.1} parent=0 // pred_check_branch
    %4541 = sbr.rel (0) target = $region77
  $region76: #{finetune_synth_forward.1} parent=0 // pred_region
    _
  $region77: #{finetune_synth_forward.1} parent=0 // pred_fallthru
    _
  // Predicated region
  $region78: #{finetune_synth_forward.1} parent=0 // pred_check
    _
  $region79: #{finetune_synth_forward.1} parent=0 // pred_check_branch
    %4543 = sbr.rel (0) target = $region81
  $region80: #{finetune_synth_forward.1} parent=0 // pred_region
    _
  $region81: #{finetune_synth_forward.1} parent=0 // pred_fallthru
    _

</llo_original>
